<compile_context>
chip_gen: v7x
topology: tpu7x:2x2x1
jax: 0.10.0
libtpu: 0.0.40
codegen_flags: <defaults>
</compile_context>

<pallas_src>
import jax
import jax.numpy as jnp
from jax.experimental import pallas as pl
from jax.experimental.pallas import tpu as pltpu


# ----------------------------- Pallas kernel -----------------------------

def _make_sparsemax_kernel(K, chunk):
    """Row-wise sparsemax over the last axis of a (rows, K) block."""
    n_full, rem = divmod(K, chunk)

    def kernel(x_ref, o_ref):
        z = x_ref[...].astype(jnp.float32)                      # (R, K)
        z = z - jnp.max(z, axis=-1, keepdims=True)              # shift (torch)
        zi = z[:, :, None]                                      # (R, K, 1)

        def excess_of(zj):                                      # zj: (R, C)
            # sum_j relu(z_j - z_i) over this j-chunk -> (R, K)
            return jnp.sum(jnp.maximum(zj[:, None, :] - zi, 0.0), axis=-1)

        if chunk >= K:
            excess = excess_of(z)                               # one (R,K,K) table
        else:
            # j-tiled pairwise reduction: live table bounded to (R, K, chunk)
            excess = jnp.zeros(z.shape, jnp.float32)
            for c in range(n_full):                             # static trip count
                excess = excess + excess_of(z[:, c * chunk:(c + 1) * chunk])
            if rem:
                excess = excess + excess_of(z[:, n_full * chunk:])

        # Support test (== "1 + rank*zs > cumsum" of the sorted formulation;
        # tie-safe, and the max element always satisfies it so k >= 1).
        in_sup = (excess < 1.0).astype(jnp.float32)             # (R, K)
        k = jnp.sum(in_sup, axis=-1, keepdims=True)             # (R, 1)
        ssum = jnp.sum(in_sup * z, axis=-1, keepdims=True)      # (R, 1)
        tau = (ssum - 1.0) / k
        o_ref[...] = jnp.maximum(z - tau, 0.0).astype(o_ref.dtype)

    return kernel


# ------------------------------ tiling ------------------------------------

def _vmem_params():
    """(pairwise-table budget, scoped-VMEM allowance), sized from the chip."""
    try:
        vmem_cap = int(pltpu.get_tpu_info().vmem_capacity_bytes)
    except Exception:
        vmem_cap = 64 << 20                        # conservative (v7x-sized)
    budget = max(4 << 20, vmem_cap // 8)           # 16 MiB v5e/v6e, 8 MiB v7x
    limit = min((vmem_cap * 3) // 4, 96 << 20)     # leave headroom everywhere
    return budget, limit


def _tile_params(B, K, budget_bytes):
    """Pick (row_tile, j_chunk) so the (row_tile, K, j_chunk) f32 table fits."""
    # j-chunk: full K if an 8-row full table fits, else a lane-aligned chunk.
    if 8 * K * K * 4 <= budget_bytes:
        chunk = K
    else:
        chunk = (budget_bytes // (8 * K * 4)) // 128 * 128
        chunk = min(K, max(128, chunk))
        # TODO(synk): for K beyond ~12k the i axis would also need tiling.
    # Row tile: as many rows as fit the table budget, multiple of 8, <= 256.
    bt = budget_bytes // max(1, K * chunk * 4)
    bt = max(8, min(256, (bt // 8) * 8))
    if B >= 16:
        # Guarantee >= 2 grid steps so a 2-TensorCore chip can split the rows.
        bt = min(bt, ((pl.cdiv(B, 2) + 7) // 8) * 8)
    if B <= bt:
        bt = B                                     # single full-dim block
    return bt, chunk


# ------------------------------ wrappers -----------------------------------

def _sparsemax_rows(x2):
    """Sparsemax along axis -1 of a 2-D (B, K) array via one pallas_call."""
    B, K = x2.shape
    budget, vmem_limit = _vmem_params()
    bt, chunk = _tile_params(B, K, budget)

    return pl.pallas_call(
        _make_sparsemax_kernel(K, chunk),
        out_shape=jax.ShapeDtypeStruct((B, K), x2.dtype),
        grid=(pl.cdiv(B, bt),),                    # partial final block is OK:
        in_specs=[pl.BlockSpec((bt, K), lambda i: (i, 0))],   # rows independent,
        out_specs=pl.BlockSpec((bt, K), lambda i: (i, 0)),    # OOB writes masked
        compiler_params=pltpu.CompilerParams(
            dimension_semantics=("parallel",),
            vmem_limit_bytes=vmem_limit),
    )(x2)


def sparsemax(x, dim=-1):
    """Matches Sparsemax.forward: sparsemax along `dim`, independently over the
    remaining axes (the PyTorch transpose/reshape dance nets out to this)."""
    dim = dim % x.ndim if x.ndim > 0 else 0
    x_m = jnp.moveaxis(x, dim, -1)
    lead, K = x_m.shape[:-1], x_m.shape[-1]
    x2 = x_m.reshape((-1, K)) if lead else x_m.reshape((1, K))
    out2 = _sparsemax_rows(x2)
    out = out2.reshape(lead + (K,)) if lead else out2.reshape((K,))
    return jnp.moveaxis(out, -1, dim)


# -------------------- pure-JAX reference (PyTorch exact) --------------------

def sparsemax_reference(x, dim=-1):
    x_t = jnp.swapaxes(x, 0, dim)
    original_size = x_t.shape
    x2 = x_t.reshape((x_t.shape[0], -1)).T
    K = x2.shape[1]
    z = x2 - jnp.max(x2, axis=1, keepdims=True)
    zs = -jnp.sort(-z, axis=1)                                # descending
    rng = jnp.arange(1, K + 1, dtype=z.dtype).reshape(1, -1)
    bound = 1.0 + rng * zs
    cum = jnp.cumsum(zs, axis=1)
    is_gt = (bound > cum).astype(z.dtype)
    k = jnp.max(is_gt * rng, axis=1, keepdims=True)
    taus = (jnp.sum(is_gt * zs, axis=1, keepdims=True) - 1.0) / k
    out = jnp.maximum(jnp.zeros_like(z), z - taus)
    out = out.T.reshape(original_size)
    return jnp.swapaxes(out, 0, dim)


# --------------------------------- main ------------------------------------

if __name__ == "__main__":
    key = jax.random.PRNGKey(0)
    k1, k2, k3, k4 = jax.random.split(key, 4)

    # Case 1: lane-dense logits axis (batch=8, number_of_logits=128).
    x1 = 3.0 * jax.random.normal(k1, (8, 128), jnp.float32)
    # Case 2: small, unaligned shape (batch=2, number_of_logits=21).
    x2 = 2.0 * jax.random.normal(k2, (2, 21), jnp.float32)
    # Case 3: crafted ties / constant rows (exercise tie handling).
    x3 = jnp.array([[1.0, 1.0, 0.0, -1.0, 1.0, 0.0],
                    [0.0, 0.0, 0.0, 0.0, 0.0, 0.0],
                    [2.0, -3.0, 2.0, 2.0, -3.0, 7.0],
                    [-1.0, -1.0, -2.0, 5.0, 5.0, 5.0]], jnp.float32)
    # Case 4: multi-step grid with a partial final row-block (B=40 -> >=2 steps).
    x4 = 1.5 * jax.random.normal(k3, (40, 64), jnp.float32)
    # Case 5: 3-D input, default dim=-1 (checks the reshape/moveaxis plumbing).
    x5 = jax.random.normal(k4, (2, 3, 16), jnp.float32)

    fn = jax.jit(sparsemax)
    for x in (x1, x2, x3, x4, x5):
        out = jax.block_until_ready(fn(x))
        ref = sparsemax_reference(x)
        assert out.shape == x.shape, (out.shape, x.shape)
        assert jnp.allclose(out, ref, atol=1e-5, rtol=1e-5), (
            float(jnp.max(jnp.abs(out - ref))))
        # sparsemax outputs form a probability distribution along the last axis
        assert jnp.allclose(jnp.sum(out, axis=-1), 1.0, atol=1e-4)

    print("KERNEL_OK")
</pallas_src>

<mosaic_0001>
module attributes {stable_mosaic.version = 11 : i64} {
  func.func @kernel(%arg0: i32, %arg1: memref<8x128xf32, #tpu.memory_space<vmem>>, %arg2: memref<8x128xf32, #tpu.memory_space<vmem>>) attributes {dimension_semantics = [#tpu.dimension_semantics<parallel>], iteration_bounds = array<i64: 1>, scalar_prefetch = 0 : i64, scratch_operands = 0 : i64, tpu.core_type = #tpu.core_type<tc>, window_params = [{transform_indices = @transform_0, window_bounds = array<i64: 8, 128>}, {transform_indices = @transform_1, window_bounds = array<i64: 8, 128>}]} {
    %c0 = arith.constant 0 : index
    %c0_0 = arith.constant 0 : index
    %0 = vector.load %arg1[%c0, %c0_0] : memref<8x128xf32, #tpu.memory_space<vmem>>, vector<8x128xf32>
    %cst = arith.constant dense<0xFF800000> : vector<8xf32>
    %1 = vector.multi_reduction <maximumf>, %0, %cst [1] : vector<8x128xf32> to vector<8xf32>
    %2 = vector.shape_cast %1 : vector<8xf32> to vector<8x1xf32>
    %3 = vector.broadcast %2 : vector<8x1xf32> to vector<8x128xf32>
    %4 = arith.subf %0, %3 : vector<8x128xf32>
    %5 = vector.shape_cast %4 : vector<8x128xf32> to vector<8x128x1xf32>
    %6 = vector.shape_cast %4 : vector<8x128xf32> to vector<8x1x128xf32>
    %7 = vector.broadcast %6 : vector<8x1x128xf32> to vector<8x128x128xf32>
    %8 = vector.broadcast %5 : vector<8x128x1xf32> to vector<8x128x128xf32>
    %9 = arith.subf %7, %8 : vector<8x128x128xf32>
    %cst_1 = arith.constant 0.000000e+00 : f32
    %10 = vector.broadcast %cst_1 : f32 to vector<8x128x128xf32>
    %11 = arith.maximumf %9, %10 : vector<8x128x128xf32>
    %cst_2 = arith.constant dense<0.000000e+00> : vector<8x128xf32>
    %12 = vector.multi_reduction <add>, %11, %cst_2 [2] : vector<8x128x128xf32> to vector<8x128xf32>
    %cst_3 = arith.constant 1.000000e+00 : f32
    %13 = vector.broadcast %cst_3 : f32 to vector<8x128xf32>
    %14 = arith.cmpf olt, %12, %13 : vector<8x128xf32>
    %15 = arith.extui %14 : vector<8x128xi1> to vector<8x128xi32>
    %16 = arith.sitofp %15 : vector<8x128xi32> to vector<8x128xf32>
    %cst_4 = arith.constant dense<0.000000e+00> : vector<8xf32>
    %17 = vector.multi_reduction <add>, %16, %cst_4 [1] : vector<8x128xf32> to vector<8xf32>
    %18 = vector.shape_cast %17 : vector<8xf32> to vector<8x1xf32>
    %19 = arith.mulf %16, %4 : vector<8x128xf32>
    %cst_5 = arith.constant dense<0.000000e+00> : vector<8xf32>
    %20 = vector.multi_reduction <add>, %19, %cst_5 [1] : vector<8x128xf32> to vector<8xf32>
    %21 = vector.shape_cast %20 : vector<8xf32> to vector<8x1xf32>
    %cst_6 = arith.constant 1.000000e+00 : f32
    %22 = vector.broadcast %cst_6 : f32 to vector<8x1xf32>
    %23 = arith.subf %21, %22 : vector<8x1xf32>
    %24 = arith.divf %23, %18 : vector<8x1xf32>
    %25 = vector.broadcast %24 : vector<8x1xf32> to vector<8x128xf32>
    %26 = arith.subf %4, %25 : vector<8x128xf32>
    %cst_7 = arith.constant 0.000000e+00 : f32
    %27 = vector.broadcast %cst_7 : f32 to vector<8x128xf32>
    %28 = arith.maximumf %26, %27 : vector<8x128xf32>
    %c0_8 = arith.constant 0 : index
    %c0_9 = arith.constant 0 : index
    %29 = vector.load %arg2[%c0_8, %c0_9] : memref<8x128xf32, #tpu.memory_space<vmem>>, vector<8x128xf32>
    tpu.vector_store %arg2[%c0_8, %c0_9], %28 {strides = array<i32>} : memref<8x128xf32, #tpu.memory_space<vmem>>, vector<8x128xf32>,
    return
  }
  func.func @transform_0(%arg0: i32) -> (i32, i32) {
    %c0_i32 = arith.constant 0 : i32
    %c0_i32_0 = arith.constant 0 : i32
    return %arg0, %c0_i32 : i32, i32
  }
  func.func @transform_1(%arg0: i32) -> (i32, i32) {
    %c0_i32 = arith.constant 0 : i32
    %c0_i32_0 = arith.constant 0 : i32
    return %arg0, %c0_i32 : i32, i32
  }
}

</mosaic_0001>

<llo_original>
// kernel: sparsemax.1
$region0: #{sparsemax.1}
  #allocation0 [shape = 'u32[]', space=smem, size = 0x4, offset = 0x4, fixed_abs, tag = 'smem constant byte address 0x4 - core index']
  #allocation1 [shape = 'u32[144,128]{1,0:T(1,128)}', space=vmem, size = 0x12000, scoped, tag = 'internal scratch']
  %s0 = inlined_call_operand.hbm [shape: f32[8,128], index: 0, kind: input, shape index: {}]
  %s1 = inlined_call_operand.hbm [shape: f32[8,128], index: 1, kind: output, shape index: {}]
  %s2 = sld [smem:[#allocation0]]
  $region18: #{sparsemax.1} parent=0
    _
  %s4 = ssub.s32 1, %s2
  %s5 = scalar_select 0, %s4, %s2
  $region1: #{sparsemax.1} parent=0
    #allocation2 [shape = 'u8[4096]{0}', space=vmem, size = 0x1000, scoped, tag = 'input window, operand 0, single buffered']
    #allocation3 [shape = 's32[1]{0}', space=sflag, size = 0x4, scoped, tag = 'scoped memory for sparsemax.1']
    #allocation4 [shape = 's32[1]{0}', space=sflag, size = 0x4, scoped, tag = 'scoped memory for sparsemax.1']
    #allocation5 [shape = 'u8[4096]{0}', space=vmem, size = 0x1000, scoped, tag = 'output window, operand 0, single buffered']
    %6 = vsyncpa [#allocation3], 0
    %7 = vsyncpa [#allocation4], 0
    // Predicated region
    $region2: #{sparsemax.1} parent=1 // pred_check
      _
    $region3: #{sparsemax.1} parent=1 // pred_check_branch
      %9 = sbr.rel (0) target = $region5
    $region4: #{sparsemax.1} parent=1 // pred_region
      %s11 = ssub.s32 128, 128
      %12 = vsyncadd [#allocation3], %s11
      %s14 = sshll.u32 [#allocation2], 4
      %s15 = int_to_ptr.vmem [resolvable:$true] %s14
      %17 = dma.hbm_to_vmem [thread:$0]  %s0, 128, %s15, [#allocation3]
    $region5: #{sparsemax.1} parent=1 // pred_fallthru
      _
    // Predicated region
    $region6: #{sparsemax.1} parent=1 // pred_check
      _
    $region7: #{sparsemax.1} parent=1 // pred_check_branch
      %19 = sbr.rel (0) target = $region9
    $region8: #{sparsemax.1} parent=1 // pred_region
      %20 = dma.done [#allocation3], 128
    $region9: #{sparsemax.1} parent=1 // pred_fallthru
      _
    %v21 = vld [vmem:[#allocation2] sm:$0xff]
    %22 = vmax.xlane.f32.xlu0 %v21
    %v23 = vpop.xlane.xlu0 %22
    %v24 = vsub.f32 %v21, %v23
    %v25 = vlaneseq
    %v26 = vshrl.u32 %v25, 7
    %v27 = vsub.s32 0, %v26
    %v28 = vrot.slane %v24, %v27
    %30 = vbcast.lane.b32.xlu0 %v28, 256
    %v31 = vpop.permute.xlu0 %30
    %s33 = sor.u32 256, 8
    %34 = vbcast.lane.b32.xlu0 %v28, %s33
    %v35 = vpop.permute.xlu0 %34
    %s37 = sor.u32 256, 16
    %38 = vbcast.lane.b32.xlu0 %v28, %s37
    %v39 = vpop.permute.xlu0 %38
    %s41 = sor.u32 256, 24
    %42 = vbcast.lane.b32.xlu0 %v28, %s41
    %v43 = vpop.permute.xlu0 %42
    %s45 = sor.u32 256, 32
    %46 = vbcast.lane.b32.xlu0 %v28, %s45
    %v47 = vpop.permute.xlu0 %46
    %s49 = sor.u32 256, 40
    %50 = vbcast.lane.b32.xlu0 %v28, %s49
    %v51 = vpop.permute.xlu0 %50
    %s53 = sor.u32 256, 48
    %54 = vbcast.lane.b32.xlu0 %v28, %s53
    %v55 = vpop.permute.xlu0 %54
    %s57 = sor.u32 256, 56
    %58 = vbcast.lane.b32.xlu0 %v28, %s57
    %v59 = vpop.permute.xlu0 %58
    %s61 = sor.u32 256, 64
    %62 = vbcast.lane.b32.xlu0 %v28, %s61
    %v63 = vpop.permute.xlu0 %62
    %s65 = sor.u32 256, 72
    %66 = vbcast.lane.b32.xlu0 %v28, %s65
    %v67 = vpop.permute.xlu0 %66
    %s69 = sor.u32 256, 80
    %70 = vbcast.lane.b32.xlu0 %v28, %s69
    %v71 = vpop.permute.xlu0 %70
    %s73 = sor.u32 256, 88
    %74 = vbcast.lane.b32.xlu0 %v28, %s73
    %v75 = vpop.permute.xlu0 %74
    %s77 = sor.u32 256, 96
    %78 = vbcast.lane.b32.xlu0 %v28, %s77
    %v79 = vpop.permute.xlu0 %78
    %s81 = sor.u32 256, 104
    %82 = vbcast.lane.b32.xlu0 %v28, %s81
    %v83 = vpop.permute.xlu0 %82
    %s85 = sor.u32 256, 112
    %86 = vbcast.lane.b32.xlu0 %v28, %s85
    %v87 = vpop.permute.xlu0 %86
    %s89 = sor.u32 256, 120
    %90 = vbcast.lane.b32.xlu0 %v28, %s89
    %v91 = vpop.permute.xlu0 %90
    %v92 = vlaneseq
    %v93 = vshrl.u32 %v92, 7
    %v94 = vsub.s32 1, %v93
    %v95 = vrot.slane %v24, %v94
    %97 = vbcast.lane.b32.xlu0 %v95, 256
    %v98 = vpop.permute.xlu0 %97
    %s100 = sor.u32 256, 8
    %101 = vbcast.lane.b32.xlu0 %v95, %s100
    %v102 = vpop.permute.xlu0 %101
    %s104 = sor.u32 256, 16
    %105 = vbcast.lane.b32.xlu0 %v95, %s104
    %v106 = vpop.permute.xlu0 %105
    %s108 = sor.u32 256, 24
    %109 = vbcast.lane.b32.xlu0 %v95, %s108
    %v110 = vpop.permute.xlu0 %109
    %s112 = sor.u32 256, 32
    %113 = vbcast.lane.b32.xlu0 %v95, %s112
    %v114 = vpop.permute.xlu0 %113
    %s116 = sor.u32 256, 40
    %117 = vbcast.lane.b32.xlu0 %v95, %s116
    %v118 = vpop.permute.xlu0 %117
    %s120 = sor.u32 256, 48
    %121 = vbcast.lane.b32.xlu0 %v95, %s120
    %v122 = vpop.permute.xlu0 %121
    %s124 = sor.u32 256, 56
    %125 = vbcast.lane.b32.xlu0 %v95, %s124
    %v126 = vpop.permute.xlu0 %125
    %s128 = sor.u32 256, 64
    %129 = vbcast.lane.b32.xlu0 %v95, %s128
    %v130 = vpop.permute.xlu0 %129
    %s132 = sor.u32 256, 72
    %133 = vbcast.lane.b32.xlu0 %v95, %s132
    %v134 = vpop.permute.xlu0 %133
    %s136 = sor.u32 256, 80
    %137 = vbcast.lane.b32.xlu0 %v95, %s136
    %v138 = vpop.permute.xlu0 %137
    %s140 = sor.u32 256, 88
    %141 = vbcast.lane.b32.xlu0 %v95, %s140
    %v142 = vpop.permute.xlu0 %141
    %s144 = sor.u32 256, 96
    %145 = vbcast.lane.b32.xlu0 %v95, %s144
    %v146 = vpop.permute.xlu0 %145
    %s148 = sor.u32 256, 104
    %149 = vbcast.lane.b32.xlu0 %v95, %s148
    %v150 = vpop.permute.xlu0 %149
    %s152 = sor.u32 256, 112
    %153 = vbcast.lane.b32.xlu0 %v95, %s152
    %v154 = vpop.permute.xlu0 %153
    %s156 = sor.u32 256, 120
    %157 = vbcast.lane.b32.xlu0 %v95, %s156
    %v158 = vpop.permute.xlu0 %157
    %v159 = vlaneseq
    %v160 = vshrl.u32 %v159, 7
    %v161 = vsub.s32 2, %v160
    %v162 = vrot.slane %v24, %v161
    %164 = vbcast.lane.b32.xlu0 %v162, 256
    %v165 = vpop.permute.xlu0 %164
    %s167 = sor.u32 256, 8
    %168 = vbcast.lane.b32.xlu0 %v162, %s167
    %v169 = vpop.permute.xlu0 %168
    %s171 = sor.u32 256, 16
    %172 = vbcast.lane.b32.xlu0 %v162, %s171
    %v173 = vpop.permute.xlu0 %172
    %s175 = sor.u32 256, 24
    %176 = vbcast.lane.b32.xlu0 %v162, %s175
    %v177 = vpop.permute.xlu0 %176
    %s179 = sor.u32 256, 32
    %180 = vbcast.lane.b32.xlu0 %v162, %s179
    %v181 = vpop.permute.xlu0 %180
    %s183 = sor.u32 256, 40
    %184 = vbcast.lane.b32.xlu0 %v162, %s183
    %v185 = vpop.permute.xlu0 %184
    %s187 = sor.u32 256, 48
    %188 = vbcast.lane.b32.xlu0 %v162, %s187
    %v189 = vpop.permute.xlu0 %188
    %s191 = sor.u32 256, 56
    %192 = vbcast.lane.b32.xlu0 %v162, %s191
    %v193 = vpop.permute.xlu0 %192
    %s195 = sor.u32 256, 64
    %196 = vbcast.lane.b32.xlu0 %v162, %s195
    %v197 = vpop.permute.xlu0 %196
    %s199 = sor.u32 256, 72
    %200 = vbcast.lane.b32.xlu0 %v162, %s199
    %v201 = vpop.permute.xlu0 %200
    %s203 = sor.u32 256, 80
    %204 = vbcast.lane.b32.xlu0 %v162, %s203
    %v205 = vpop.permute.xlu0 %204
    %s207 = sor.u32 256, 88
    %208 = vbcast.lane.b32.xlu0 %v162, %s207
    %v209 = vpop.permute.xlu0 %208
    %s211 = sor.u32 256, 96
    %212 = vbcast.lane.b32.xlu0 %v162, %s211
    %v213 = vpop.permute.xlu0 %212
    %s215 = sor.u32 256, 104
    %216 = vbcast.lane.b32.xlu0 %v162, %s215
    %v217 = vpop.permute.xlu0 %216
    %s219 = sor.u32 256, 112
    %220 = vbcast.lane.b32.xlu0 %v162, %s219
    %v221 = vpop.permute.xlu0 %220
    %s223 = sor.u32 256, 120
    %224 = vbcast.lane.b32.xlu0 %v162, %s223
    %v225 = vpop.permute.xlu0 %224
    %v226 = vlaneseq
    %v227 = vshrl.u32 %v226, 7
    %v228 = vsub.s32 3, %v227
    %v229 = vrot.slane %v24, %v228
    %231 = vbcast.lane.b32.xlu0 %v229, 256
    %v232 = vpop.permute.xlu0 %231
    %s234 = sor.u32 256, 8
    %235 = vbcast.lane.b32.xlu0 %v229, %s234
    %v236 = vpop.permute.xlu0 %235
    %s238 = sor.u32 256, 16
    %239 = vbcast.lane.b32.xlu0 %v229, %s238
    %v240 = vpop.permute.xlu0 %239
    %s242 = sor.u32 256, 24
    %243 = vbcast.lane.b32.xlu0 %v229, %s242
    %v244 = vpop.permute.xlu0 %243
    %s246 = sor.u32 256, 32
    %247 = vbcast.lane.b32.xlu0 %v229, %s246
    %v248 = vpop.permute.xlu0 %247
    %s250 = sor.u32 256, 40
    %251 = vbcast.lane.b32.xlu0 %v229, %s250
    %v252 = vpop.permute.xlu0 %251
    %s254 = sor.u32 256, 48
    %255 = vbcast.lane.b32.xlu0 %v229, %s254
    %v256 = vpop.permute.xlu0 %255
    %s258 = sor.u32 256, 56
    %259 = vbcast.lane.b32.xlu0 %v229, %s258
    %v260 = vpop.permute.xlu0 %259
    %s262 = sor.u32 256, 64
    %263 = vbcast.lane.b32.xlu0 %v229, %s262
    %v264 = vpop.permute.xlu0 %263
    %s266 = sor.u32 256, 72
    %267 = vbcast.lane.b32.xlu0 %v229, %s266
    %v268 = vpop.permute.xlu0 %267
    %s270 = sor.u32 256, 80
    %271 = vbcast.lane.b32.xlu0 %v229, %s270
    %v272 = vpop.permute.xlu0 %271
    %s274 = sor.u32 256, 88
    %275 = vbcast.lane.b32.xlu0 %v229, %s274
    %v276 = vpop.permute.xlu0 %275
    %s278 = sor.u32 256, 96
    %279 = vbcast.lane.b32.xlu0 %v229, %s278
    %v280 = vpop.permute.xlu0 %279
    %s282 = sor.u32 256, 104
    %283 = vbcast.lane.b32.xlu0 %v229, %s282
    %v284 = vpop.permute.xlu0 %283
    %s286 = sor.u32 256, 112
    %287 = vbcast.lane.b32.xlu0 %v229, %s286
    %v288 = vpop.permute.xlu0 %287
    %s290 = sor.u32 256, 120
    %291 = vbcast.lane.b32.xlu0 %v229, %s290
    %v292 = vpop.permute.xlu0 %291
    %v293 = vlaneseq
    %v294 = vshrl.u32 %v293, 7
    %v295 = vsub.s32 4, %v294
    %v296 = vrot.slane %v24, %v295
    %298 = vbcast.lane.b32.xlu0 %v296, 256
    %v299 = vpop.permute.xlu0 %298
    %s301 = sor.u32 256, 8
    %302 = vbcast.lane.b32.xlu0 %v296, %s301
    %v303 = vpop.permute.xlu0 %302
    %s305 = sor.u32 256, 16
    %306 = vbcast.lane.b32.xlu0 %v296, %s305
    %v307 = vpop.permute.xlu0 %306
    %s309 = sor.u32 256, 24
    %310 = vbcast.lane.b32.xlu0 %v296, %s309
    %v311 = vpop.permute.xlu0 %310
    %s313 = sor.u32 256, 32
    %314 = vbcast.lane.b32.xlu0 %v296, %s313
    %v315 = vpop.permute.xlu0 %314
    %s317 = sor.u32 256, 40
    %318 = vbcast.lane.b32.xlu0 %v296, %s317
    %v319 = vpop.permute.xlu0 %318
    %s321 = sor.u32 256, 48
    %322 = vbcast.lane.b32.xlu0 %v296, %s321
    %v323 = vpop.permute.xlu0 %322
    %s325 = sor.u32 256, 56
    %326 = vbcast.lane.b32.xlu0 %v296, %s325
    %v327 = vpop.permute.xlu0 %326
    %s329 = sor.u32 256, 64
    %330 = vbcast.lane.b32.xlu0 %v296, %s329
    %v331 = vpop.permute.xlu0 %330
    %s333 = sor.u32 256, 72
    %334 = vbcast.lane.b32.xlu0 %v296, %s333
    %v335 = vpop.permute.xlu0 %334
    %s337 = sor.u32 256, 80
    %338 = vbcast.lane.b32.xlu0 %v296, %s337
    %v339 = vpop.permute.xlu0 %338
    %s341 = sor.u32 256, 88
    %342 = vbcast.lane.b32.xlu0 %v296, %s341
    %v343 = vpop.permute.xlu0 %342
    %s345 = sor.u32 256, 96
    %346 = vbcast.lane.b32.xlu0 %v296, %s345
    %v347 = vpop.permute.xlu0 %346
    %s349 = sor.u32 256, 104
    %350 = vbcast.lane.b32.xlu0 %v296, %s349
    %v351 = vpop.permute.xlu0 %350
    %s353 = sor.u32 256, 112
    %354 = vbcast.lane.b32.xlu0 %v296, %s353
    %v355 = vpop.permute.xlu0 %354
    %s357 = sor.u32 256, 120
    %358 = vbcast.lane.b32.xlu0 %v296, %s357
    %v359 = vpop.permute.xlu0 %358
    %v360 = vlaneseq
    %v361 = vshrl.u32 %v360, 7
    %v362 = vsub.s32 5, %v361
    %v363 = vrot.slane %v24, %v362
    %365 = vbcast.lane.b32.xlu0 %v363, 256
    %v366 = vpop.permute.xlu0 %365
    %s368 = sor.u32 256, 8
    %369 = vbcast.lane.b32.xlu0 %v363, %s368
    %v370 = vpop.permute.xlu0 %369
    %s372 = sor.u32 256, 16
    %373 = vbcast.lane.b32.xlu0 %v363, %s372
    %v374 = vpop.permute.xlu0 %373
    %s376 = sor.u32 256, 24
    %377 = vbcast.lane.b32.xlu0 %v363, %s376
    %v378 = vpop.permute.xlu0 %377
    %s380 = sor.u32 256, 32
    %381 = vbcast.lane.b32.xlu0 %v363, %s380
    %v382 = vpop.permute.xlu0 %381
    %s384 = sor.u32 256, 40
    %385 = vbcast.lane.b32.xlu0 %v363, %s384
    %v386 = vpop.permute.xlu0 %385
    %s388 = sor.u32 256, 48
    %389 = vbcast.lane.b32.xlu0 %v363, %s388
    %v390 = vpop.permute.xlu0 %389
    %s392 = sor.u32 256, 56
    %393 = vbcast.lane.b32.xlu0 %v363, %s392
    %v394 = vpop.permute.xlu0 %393
    %s396 = sor.u32 256, 64
    %397 = vbcast.lane.b32.xlu0 %v363, %s396
    %v398 = vpop.permute.xlu0 %397
    %s400 = sor.u32 256, 72
    %401 = vbcast.lane.b32.xlu0 %v363, %s400
    %v402 = vpop.permute.xlu0 %401
    %s404 = sor.u32 256, 80
    %405 = vbcast.lane.b32.xlu0 %v363, %s404
    %v406 = vpop.permute.xlu0 %405
    %s408 = sor.u32 256, 88
    %409 = vbcast.lane.b32.xlu0 %v363, %s408
    %v410 = vpop.permute.xlu0 %409
    %s412 = sor.u32 256, 96
    %413 = vbcast.lane.b32.xlu0 %v363, %s412
    %v414 = vpop.permute.xlu0 %413
    %s416 = sor.u32 256, 104
    %417 = vbcast.lane.b32.xlu0 %v363, %s416
    %v418 = vpop.permute.xlu0 %417
    %s420 = sor.u32 256, 112
    %421 = vbcast.lane.b32.xlu0 %v363, %s420
    %v422 = vpop.permute.xlu0 %421
    %s424 = sor.u32 256, 120
    %425 = vbcast.lane.b32.xlu0 %v363, %s424
    %v426 = vpop.permute.xlu0 %425
    %v427 = vlaneseq
    %v428 = vshrl.u32 %v427, 7
    %v429 = vsub.s32 6, %v428
    %v430 = vrot.slane %v24, %v429
    %432 = vbcast.lane.b32.xlu0 %v430, 256
    %v433 = vpop.permute.xlu0 %432
    %s435 = sor.u32 256, 8
    %436 = vbcast.lane.b32.xlu0 %v430, %s435
    %v437 = vpop.permute.xlu0 %436
    %s439 = sor.u32 256, 16
    %440 = vbcast.lane.b32.xlu0 %v430, %s439
    %v441 = vpop.permute.xlu0 %440
    %s443 = sor.u32 256, 24
    %444 = vbcast.lane.b32.xlu0 %v430, %s443
    %v445 = vpop.permute.xlu0 %444
    %s447 = sor.u32 256, 32
    %448 = vbcast.lane.b32.xlu0 %v430, %s447
    %v449 = vpop.permute.xlu0 %448
    %s451 = sor.u32 256, 40
    %452 = vbcast.lane.b32.xlu0 %v430, %s451
    %v453 = vpop.permute.xlu0 %452
    %s455 = sor.u32 256, 48
    %456 = vbcast.lane.b32.xlu0 %v430, %s455
    %v457 = vpop.permute.xlu0 %456
    %s459 = sor.u32 256, 56
    %460 = vbcast.lane.b32.xlu0 %v430, %s459
    %v461 = vpop.permute.xlu0 %460
    %s463 = sor.u32 256, 64
    %464 = vbcast.lane.b32.xlu0 %v430, %s463
    %v465 = vpop.permute.xlu0 %464
    %s467 = sor.u32 256, 72
    %468 = vbcast.lane.b32.xlu0 %v430, %s467
    %v469 = vpop.permute.xlu0 %468
    %s471 = sor.u32 256, 80
    %472 = vbcast.lane.b32.xlu0 %v430, %s471
    %v473 = vpop.permute.xlu0 %472
    %s475 = sor.u32 256, 88
    %476 = vbcast.lane.b32.xlu0 %v430, %s475
    %v477 = vpop.permute.xlu0 %476
    %s479 = sor.u32 256, 96
    %480 = vbcast.lane.b32.xlu0 %v430, %s479
    %v481 = vpop.permute.xlu0 %480
    %s483 = sor.u32 256, 104
    %484 = vbcast.lane.b32.xlu0 %v430, %s483
    %v485 = vpop.permute.xlu0 %484
    %s487 = sor.u32 256, 112
    %488 = vbcast.lane.b32.xlu0 %v430, %s487
    %v489 = vpop.permute.xlu0 %488
    %s491 = sor.u32 256, 120
    %492 = vbcast.lane.b32.xlu0 %v430, %s491
    %v493 = vpop.permute.xlu0 %492
    %v494 = vlaneseq
    %v495 = vshrl.u32 %v494, 7
    %v496 = vsub.s32 7, %v495
    %v497 = vrot.slane %v24, %v496
    %499 = vbcast.lane.b32.xlu0 %v497, 256
    %v500 = vpop.permute.xlu0 %499
    %s502 = sor.u32 256, 8
    %503 = vbcast.lane.b32.xlu0 %v497, %s502
    %v504 = vpop.permute.xlu0 %503
    %s506 = sor.u32 256, 16
    %507 = vbcast.lane.b32.xlu0 %v497, %s506
    %v508 = vpop.permute.xlu0 %507
    %s510 = sor.u32 256, 24
    %511 = vbcast.lane.b32.xlu0 %v497, %s510
    %v512 = vpop.permute.xlu0 %511
    %s514 = sor.u32 256, 32
    %515 = vbcast.lane.b32.xlu0 %v497, %s514
    %v516 = vpop.permute.xlu0 %515
    %s518 = sor.u32 256, 40
    %519 = vbcast.lane.b32.xlu0 %v497, %s518
    %v520 = vpop.permute.xlu0 %519
    %s522 = sor.u32 256, 48
    %523 = vbcast.lane.b32.xlu0 %v497, %s522
    %v524 = vpop.permute.xlu0 %523
    %s526 = sor.u32 256, 56
    %527 = vbcast.lane.b32.xlu0 %v497, %s526
    %v528 = vpop.permute.xlu0 %527
    %s530 = sor.u32 256, 64
    %531 = vbcast.lane.b32.xlu0 %v497, %s530
    %v532 = vpop.permute.xlu0 %531
    %s534 = sor.u32 256, 72
    %535 = vbcast.lane.b32.xlu0 %v497, %s534
    %v536 = vpop.permute.xlu0 %535
    %s538 = sor.u32 256, 80
    %539 = vbcast.lane.b32.xlu0 %v497, %s538
    %v540 = vpop.permute.xlu0 %539
    %s542 = sor.u32 256, 88
    %543 = vbcast.lane.b32.xlu0 %v497, %s542
    %v544 = vpop.permute.xlu0 %543
    %s546 = sor.u32 256, 96
    %547 = vbcast.lane.b32.xlu0 %v497, %s546
    %v548 = vpop.permute.xlu0 %547
    %s550 = sor.u32 256, 104
    %551 = vbcast.lane.b32.xlu0 %v497, %s550
    %v552 = vpop.permute.xlu0 %551
    %s554 = sor.u32 256, 112
    %555 = vbcast.lane.b32.xlu0 %v497, %s554
    %v556 = vpop.permute.xlu0 %555
    %s558 = sor.u32 256, 120
    %559 = vbcast.lane.b32.xlu0 %v497, %s558
    %v560 = vpop.permute.xlu0 %559
    %v562 = vcombine.high %v24, %v24
    %v564 = vunpack.c.l.s4 1966171168
    %v565 = vunpack.c.0.s8 %v564
    %v566 = vlaneseq
    %v567 = vshrl.u32 %v566, 7
    %v568 = vsub.s32 %v565, %v567
    %v569 = vrot.slane %v24, %v568
    %v571 = vunpack.c.l.s4 1966171168
    %v572 = vunpack.c.0.s8 %v571
    %v573 = vlaneseq
    %v574 = vshrl.u32 %v573, 7
    %v575 = vsub.s32 %v572, %v574
    %v576 = vrot.slane %v562, %v575
    %v577 = vcombine.high %v569, %v569
    %v578 = vcombine.high %v576, %v576
    %v580 = vunpack.c.l.s4 1966171168
    %v581 = vunpack.c.0.s8 %v580
    %v582 = vlaneseq
    %v583 = vshrl.u32 %v582, 7
    %v584 = vsub.s32 %v581, %v583
    %v585 = vrot.slane %v569, %v584
    %v587 = vunpack.c.l.s4 1966171168
    %v588 = vunpack.c.0.s8 %v587
    %v589 = vlaneseq
    %v590 = vshrl.u32 %v589, 7
    %v591 = vsub.s32 %v588, %v590
    %v592 = vrot.slane %v576, %v591
    %v594 = vunpack.c.l.s4 1966171168
    %v595 = vunpack.c.0.s8 %v594
    %v596 = vlaneseq
    %v597 = vshrl.u32 %v596, 7
    %v598 = vsub.s32 %v595, %v597
    %v599 = vrot.slane %v577, %v598
    %v601 = vunpack.c.l.s4 1966171168
    %v602 = vunpack.c.0.s8 %v601
    %v603 = vlaneseq
    %v604 = vshrl.u32 %v603, 7
    %v605 = vsub.s32 %v602, %v604
    %v606 = vrot.slane %v578, %v605
    %v607 = vcombine.high %v585, %v585
    %v608 = vcombine.high %v592, %v592
    %v609 = vcombine.high %v599, %v599
    %v610 = vcombine.high %v606, %v606
    %v611 = vlaneseq
    %v612 = vshrl.u32 %v611, 7
    %v613 = vsub.s32 0, %v612
    %v614 = vrot.slane %v585, %v613
    %v615 = vlaneseq
    %v616 = vshrl.u32 %v615, 7
    %v617 = vsub.s32 0, %v616
    %v618 = vrot.slane %v599, %v617
    %v619 = vlaneseq
    %v620 = vshrl.u32 %v619, 7
    %v621 = vsub.s32 0, %v620
    %v622 = vrot.slane %v607, %v621
    %v623 = vlaneseq
    %v624 = vshrl.u32 %v623, 7
    %v625 = vsub.s32 0, %v624
    %v626 = vrot.slane %v609, %v625
    %v627 = vlaneseq
    %v628 = vshrl.u32 %v627, 7
    %v629 = vsub.s32 0, %v628
    %v630 = vrot.slane %v592, %v629
    %v631 = vlaneseq
    %v632 = vshrl.u32 %v631, 7
    %v633 = vsub.s32 0, %v632
    %v634 = vrot.slane %v606, %v633
    %v635 = vlaneseq
    %v636 = vshrl.u32 %v635, 7
    %v637 = vsub.s32 0, %v636
    %v638 = vrot.slane %v608, %v637
    %v639 = vlaneseq
    %v640 = vshrl.u32 %v639, 7
    %v641 = vsub.s32 0, %v640
    %v642 = vrot.slane %v610, %v641
    %v651 = vsub.f32 %v614, %v31
    %v652 = vsub.f32 %v614, %v35
    %v653 = vsub.f32 %v614, %v39
    %v654 = vsub.f32 %v614, %v43
    %v655 = vsub.f32 %v614, %v47
    %v656 = vsub.f32 %v614, %v51
    %v657 = vsub.f32 %v614, %v55
    %v658 = vsub.f32 %v614, %v59
    %v659 = vsub.f32 %v614, %v63
    %v660 = vsub.f32 %v614, %v67
    %v661 = vsub.f32 %v614, %v71
    %v662 = vsub.f32 %v614, %v75
    %v663 = vsub.f32 %v614, %v79
    %v664 = vsub.f32 %v614, %v83
    %v665 = vsub.f32 %v614, %v87
    %v666 = vsub.f32 %v614, %v91
    %v667 = vsub.f32 %v618, %v98
    %v668 = vsub.f32 %v618, %v102
    %v669 = vsub.f32 %v618, %v106
    %v670 = vsub.f32 %v618, %v110
    %v671 = vsub.f32 %v618, %v114
    %v672 = vsub.f32 %v618, %v118
    %v673 = vsub.f32 %v618, %v122
    %v674 = vsub.f32 %v618, %v126
    %v675 = vsub.f32 %v618, %v130
    %v676 = vsub.f32 %v618, %v134
    %v677 = vsub.f32 %v618, %v138
    %v678 = vsub.f32 %v618, %v142
    %v679 = vsub.f32 %v618, %v146
    %v680 = vsub.f32 %v618, %v150
    %v681 = vsub.f32 %v618, %v154
    %v682 = vsub.f32 %v618, %v158
    %v683 = vsub.f32 %v622, %v165
    %v684 = vsub.f32 %v622, %v169
    %v685 = vsub.f32 %v622, %v173
    %v686 = vsub.f32 %v622, %v177
    %v687 = vsub.f32 %v622, %v181
    %v688 = vsub.f32 %v622, %v185
    %v689 = vsub.f32 %v622, %v189
    %v690 = vsub.f32 %v622, %v193
    %v691 = vsub.f32 %v622, %v197
    %v692 = vsub.f32 %v622, %v201
    %v693 = vsub.f32 %v622, %v205
    %v694 = vsub.f32 %v622, %v209
    %v695 = vsub.f32 %v622, %v213
    %v696 = vsub.f32 %v622, %v217
    %v697 = vsub.f32 %v622, %v221
    %v698 = vsub.f32 %v622, %v225
    %v699 = vsub.f32 %v626, %v232
    %v700 = vsub.f32 %v626, %v236
    %v701 = vsub.f32 %v626, %v240
    %v702 = vsub.f32 %v626, %v244
    %v703 = vsub.f32 %v626, %v248
    %v704 = vsub.f32 %v626, %v252
    %v705 = vsub.f32 %v626, %v256
    %v706 = vsub.f32 %v626, %v260
    %v707 = vsub.f32 %v626, %v264
    %v708 = vsub.f32 %v626, %v268
    %v709 = vsub.f32 %v626, %v272
    %v710 = vsub.f32 %v626, %v276
    %v711 = vsub.f32 %v626, %v280
    %v712 = vsub.f32 %v626, %v284
    %v713 = vsub.f32 %v626, %v288
    %v714 = vsub.f32 %v626, %v292
    %v715 = vsub.f32 %v630, %v299
    %v716 = vsub.f32 %v630, %v303
    %v717 = vsub.f32 %v630, %v307
    %v718 = vsub.f32 %v630, %v311
    %v719 = vsub.f32 %v630, %v315
    %v720 = vsub.f32 %v630, %v319
    %v721 = vsub.f32 %v630, %v323
    %v722 = vsub.f32 %v630, %v327
    %v723 = vsub.f32 %v630, %v331
    %v724 = vsub.f32 %v630, %v335
    %v725 = vsub.f32 %v630, %v339
    %v726 = vsub.f32 %v630, %v343
    %v727 = vsub.f32 %v630, %v347
    %v728 = vsub.f32 %v630, %v351
    %v729 = vsub.f32 %v630, %v355
    %v730 = vsub.f32 %v630, %v359
    %v731 = vsub.f32 %v634, %v366
    %v732 = vsub.f32 %v634, %v370
    %v733 = vsub.f32 %v634, %v374
    %v734 = vsub.f32 %v634, %v378
    %v735 = vsub.f32 %v634, %v382
    %v736 = vsub.f32 %v634, %v386
    %v737 = vsub.f32 %v634, %v390
    %v738 = vsub.f32 %v634, %v394
    %v739 = vsub.f32 %v634, %v398
    %v740 = vsub.f32 %v634, %v402
    %v741 = vsub.f32 %v634, %v406
    %v742 = vsub.f32 %v634, %v410
    %v743 = vsub.f32 %v634, %v414
    %v744 = vsub.f32 %v634, %v418
    %v745 = vsub.f32 %v634, %v422
    %v746 = vsub.f32 %v634, %v426
    %v747 = vsub.f32 %v638, %v433
    %v748 = vsub.f32 %v638, %v437
    %v749 = vsub.f32 %v638, %v441
    %v750 = vsub.f32 %v638, %v445
    %v751 = vsub.f32 %v638, %v449
    %v752 = vsub.f32 %v638, %v453
    %v753 = vsub.f32 %v638, %v457
    %v754 = vsub.f32 %v638, %v461
    %v755 = vsub.f32 %v638, %v465
    %v756 = vsub.f32 %v638, %v469
    %v757 = vsub.f32 %v638, %v473
    %v758 = vsub.f32 %v638, %v477
    %v759 = vsub.f32 %v638, %v481
    %v760 = vsub.f32 %v638, %v485
    %v761 = vsub.f32 %v638, %v489
    %v762 = vsub.f32 %v638, %v493
    %v763 = vsub.f32 %v642, %v500
    %v764 = vsub.f32 %v642, %v504
    %v765 = vsub.f32 %v642, %v508
    %v766 = vsub.f32 %v642, %v512
    %v767 = vsub.f32 %v642, %v516
    %v768 = vsub.f32 %v642, %v520
    %v769 = vsub.f32 %v642, %v524
    %v770 = vsub.f32 %v642, %v528
    %v771 = vsub.f32 %v642, %v532
    %v772 = vsub.f32 %v642, %v536
    %v773 = vsub.f32 %v642, %v540
    %v774 = vsub.f32 %v642, %v544
    %v775 = vsub.f32 %v642, %v548
    %v776 = vsub.f32 %v642, %v552
    %v777 = vsub.f32 %v642, %v556
    %v778 = vsub.f32 %v642, %v560
    %v779 = vmax.f32 %v651, 0.0
    %v780 = vmax.f32 %v652, 0.0
    %v781 = vmax.f32 %v653, 0.0
    %v782 = vmax.f32 %v654, 0.0
    %v783 = vmax.f32 %v655, 0.0
    %v784 = vmax.f32 %v656, 0.0
    %v785 = vmax.f32 %v657, 0.0
    %v786 = vmax.f32 %v658, 0.0
    %v787 = vmax.f32 %v659, 0.0
    %v788 = vmax.f32 %v660, 0.0
    %v789 = vmax.f32 %v661, 0.0
    %v790 = vmax.f32 %v662, 0.0
    %v791 = vmax.f32 %v663, 0.0
    %v792 = vmax.f32 %v664, 0.0
    %v793 = vmax.f32 %v665, 0.0
    %v794 = vmax.f32 %v666, 0.0
    %v795 = vmax.f32 %v667, 0.0
    %v796 = vmax.f32 %v668, 0.0
    %v797 = vmax.f32 %v669, 0.0
    %v798 = vmax.f32 %v670, 0.0
    %v799 = vmax.f32 %v671, 0.0
    %v800 = vmax.f32 %v672, 0.0
    %v801 = vmax.f32 %v673, 0.0
    %v802 = vmax.f32 %v674, 0.0
    %v803 = vmax.f32 %v675, 0.0
    %v804 = vmax.f32 %v676, 0.0
    %v805 = vmax.f32 %v677, 0.0
    %v806 = vmax.f32 %v678, 0.0
    %v807 = vmax.f32 %v679, 0.0
    %v808 = vmax.f32 %v680, 0.0
    %v809 = vmax.f32 %v681, 0.0
    %v810 = vmax.f32 %v682, 0.0
    %v811 = vmax.f32 %v683, 0.0
    %v812 = vmax.f32 %v684, 0.0
    %v813 = vmax.f32 %v685, 0.0
    %v814 = vmax.f32 %v686, 0.0
    %v815 = vmax.f32 %v687, 0.0
    %v816 = vmax.f32 %v688, 0.0
    %v817 = vmax.f32 %v689, 0.0
    %v818 = vmax.f32 %v690, 0.0
    %v819 = vmax.f32 %v691, 0.0
    %v820 = vmax.f32 %v692, 0.0
    %v821 = vmax.f32 %v693, 0.0
    %v822 = vmax.f32 %v694, 0.0
    %v823 = vmax.f32 %v695, 0.0
    %v824 = vmax.f32 %v696, 0.0
    %v825 = vmax.f32 %v697, 0.0
    %v826 = vmax.f32 %v698, 0.0
    %v827 = vmax.f32 %v699, 0.0
    %v828 = vmax.f32 %v700, 0.0
    %v829 = vmax.f32 %v701, 0.0
    %v830 = vmax.f32 %v702, 0.0
    %v831 = vmax.f32 %v703, 0.0
    %v832 = vmax.f32 %v704, 0.0
    %v833 = vmax.f32 %v705, 0.0
    %v834 = vmax.f32 %v706, 0.0
    %v835 = vmax.f32 %v707, 0.0
    %v836 = vmax.f32 %v708, 0.0
    %v837 = vmax.f32 %v709, 0.0
    %v838 = vmax.f32 %v710, 0.0
    %v839 = vmax.f32 %v711, 0.0
    %v840 = vmax.f32 %v712, 0.0
    %v841 = vmax.f32 %v713, 0.0
    %v842 = vmax.f32 %v714, 0.0
    %v843 = vmax.f32 %v715, 0.0
    %v844 = vmax.f32 %v716, 0.0
    %v845 = vmax.f32 %v717, 0.0
    %v846 = vmax.f32 %v718, 0.0
    %v847 = vmax.f32 %v719, 0.0
    %v848 = vmax.f32 %v720, 0.0
    %v849 = vmax.f32 %v721, 0.0
    %v850 = vmax.f32 %v722, 0.0
    %v851 = vmax.f32 %v723, 0.0
    %v852 = vmax.f32 %v724, 0.0
    %v853 = vmax.f32 %v725, 0.0
    %v854 = vmax.f32 %v726, 0.0
    %v855 = vmax.f32 %v727, 0.0
    %v856 = vmax.f32 %v728, 0.0
    %v857 = vmax.f32 %v729, 0.0
    %v858 = vmax.f32 %v730, 0.0
    %v859 = vmax.f32 %v731, 0.0
    %v860 = vmax.f32 %v732, 0.0
    %v861 = vmax.f32 %v733, 0.0
    %v862 = vmax.f32 %v734, 0.0
    %v863 = vmax.f32 %v735, 0.0
    %v864 = vmax.f32 %v736, 0.0
    %v865 = vmax.f32 %v737, 0.0
    %v866 = vmax.f32 %v738, 0.0
    %v867 = vmax.f32 %v739, 0.0
    %v868 = vmax.f32 %v740, 0.0
    %v869 = vmax.f32 %v741, 0.0
    %v870 = vmax.f32 %v742, 0.0
    %v871 = vmax.f32 %v743, 0.0
    %v872 = vmax.f32 %v744, 0.0
    %v873 = vmax.f32 %v745, 0.0
    %v874 = vmax.f32 %v746, 0.0
    %v875 = vmax.f32 %v747, 0.0
    %v876 = vmax.f32 %v748, 0.0
    %v877 = vmax.f32 %v749, 0.0
    %v878 = vmax.f32 %v750, 0.0
    %v879 = vmax.f32 %v751, 0.0
    %v880 = vmax.f32 %v752, 0.0
    %v881 = vmax.f32 %v753, 0.0
    %v882 = vmax.f32 %v754, 0.0
    %v883 = vmax.f32 %v755, 0.0
    %v884 = vmax.f32 %v756, 0.0
    %v885 = vmax.f32 %v757, 0.0
    %v886 = vmax.f32 %v758, 0.0
    %v887 = vmax.f32 %v759, 0.0
    %v888 = vmax.f32 %v760, 0.0
    %v889 = vmax.f32 %v761, 0.0
    %v890 = vmax.f32 %v762, 0.0
    %v891 = vmax.f32 %v763, 0.0
    %v892 = vmax.f32 %v764, 0.0
    %v893 = vmax.f32 %v765, 0.0
    %v894 = vmax.f32 %v766, 0.0
    %v895 = vmax.f32 %v767, 0.0
    %v896 = vmax.f32 %v768, 0.0
    %v897 = vmax.f32 %v769, 0.0
    %v898 = vmax.f32 %v770, 0.0
    %v899 = vmax.f32 %v771, 0.0
    %v900 = vmax.f32 %v772, 0.0
    %v901 = vmax.f32 %v773, 0.0
    %v902 = vmax.f32 %v774, 0.0
    %v903 = vmax.f32 %v775, 0.0
    %v904 = vmax.f32 %v776, 0.0
    %v905 = vmax.f32 %v777, 0.0
    %v906 = vmax.f32 %v778, 0.0
    %907 = vadd.xlane.f32.xlu0 %v779
    %v908 = vpop.xlane.xlu0 %907
    %909 = vadd.xlane.f32.xlu0 %v780
    %v910 = vpop.xlane.xlu0 %909
    %911 = vadd.xlane.f32.xlu0 %v781
    %v912 = vpop.xlane.xlu0 %911
    %913 = vadd.xlane.f32.xlu0 %v782
    %v914 = vpop.xlane.xlu0 %913
    %915 = vadd.xlane.f32.xlu0 %v783
    %v916 = vpop.xlane.xlu0 %915
    %917 = vadd.xlane.f32.xlu0 %v784
    %v918 = vpop.xlane.xlu0 %917
    %919 = vadd.xlane.f32.xlu0 %v785
    %v920 = vpop.xlane.xlu0 %919
    %921 = vadd.xlane.f32.xlu0 %v786
    %v922 = vpop.xlane.xlu0 %921
    %923 = vadd.xlane.f32.xlu0 %v787
    %v924 = vpop.xlane.xlu0 %923
    %925 = vadd.xlane.f32.xlu0 %v788
    %v926 = vpop.xlane.xlu0 %925
    %927 = vadd.xlane.f32.xlu0 %v789
    %v928 = vpop.xlane.xlu0 %927
    %929 = vadd.xlane.f32.xlu0 %v790
    %v930 = vpop.xlane.xlu0 %929
    %931 = vadd.xlane.f32.xlu0 %v791
    %v932 = vpop.xlane.xlu0 %931
    %933 = vadd.xlane.f32.xlu0 %v792
    %v934 = vpop.xlane.xlu0 %933
    %935 = vadd.xlane.f32.xlu0 %v793
    %v936 = vpop.xlane.xlu0 %935
    %937 = vadd.xlane.f32.xlu0 %v794
    %v938 = vpop.xlane.xlu0 %937
    %939 = vadd.xlane.f32.xlu0 %v795
    %v940 = vpop.xlane.xlu0 %939
    %941 = vadd.xlane.f32.xlu0 %v796
    %v942 = vpop.xlane.xlu0 %941
    %943 = vadd.xlane.f32.xlu0 %v797
    %v944 = vpop.xlane.xlu0 %943
    %945 = vadd.xlane.f32.xlu0 %v798
    %v946 = vpop.xlane.xlu0 %945
    %947 = vadd.xlane.f32.xlu0 %v799
    %v948 = vpop.xlane.xlu0 %947
    %949 = vadd.xlane.f32.xlu0 %v800
    %v950 = vpop.xlane.xlu0 %949
    %951 = vadd.xlane.f32.xlu0 %v801
    %v952 = vpop.xlane.xlu0 %951
    %953 = vadd.xlane.f32.xlu0 %v802
    %v954 = vpop.xlane.xlu0 %953
    %955 = vadd.xlane.f32.xlu0 %v803
    %v956 = vpop.xlane.xlu0 %955
    %957 = vadd.xlane.f32.xlu0 %v804
    %v958 = vpop.xlane.xlu0 %957
    %959 = vadd.xlane.f32.xlu0 %v805
    %v960 = vpop.xlane.xlu0 %959
    %961 = vadd.xlane.f32.xlu0 %v806
    %v962 = vpop.xlane.xlu0 %961
    %963 = vadd.xlane.f32.xlu0 %v807
    %v964 = vpop.xlane.xlu0 %963
    %965 = vadd.xlane.f32.xlu0 %v808
    %v966 = vpop.xlane.xlu0 %965
    %967 = vadd.xlane.f32.xlu0 %v809
    %v968 = vpop.xlane.xlu0 %967
    %969 = vadd.xlane.f32.xlu0 %v810
    %v970 = vpop.xlane.xlu0 %969
    %971 = vadd.xlane.f32.xlu0 %v811
    %v972 = vpop.xlane.xlu0 %971
    %973 = vadd.xlane.f32.xlu0 %v812
    %v974 = vpop.xlane.xlu0 %973
    %975 = vadd.xlane.f32.xlu0 %v813
    %v976 = vpop.xlane.xlu0 %975
    %977 = vadd.xlane.f32.xlu0 %v814
    %v978 = vpop.xlane.xlu0 %977
    %979 = vadd.xlane.f32.xlu0 %v815
    %v980 = vpop.xlane.xlu0 %979
    %981 = vadd.xlane.f32.xlu0 %v816
    %v982 = vpop.xlane.xlu0 %981
    %983 = vadd.xlane.f32.xlu0 %v817
    %v984 = vpop.xlane.xlu0 %983
    %985 = vadd.xlane.f32.xlu0 %v818
    %v986 = vpop.xlane.xlu0 %985
    %987 = vadd.xlane.f32.xlu0 %v819
    %v988 = vpop.xlane.xlu0 %987
    %989 = vadd.xlane.f32.xlu0 %v820
    %v990 = vpop.xlane.xlu0 %989
    %991 = vadd.xlane.f32.xlu0 %v821
    %v992 = vpop.xlane.xlu0 %991
    %993 = vadd.xlane.f32.xlu0 %v822
    %v994 = vpop.xlane.xlu0 %993
    %995 = vadd.xlane.f32.xlu0 %v823
    %v996 = vpop.xlane.xlu0 %995
    %997 = vadd.xlane.f32.xlu0 %v824
    %v998 = vpop.xlane.xlu0 %997
    %999 = vadd.xlane.f32.xlu0 %v825
    %v1000 = vpop.xlane.xlu0 %999
    %1001 = vadd.xlane.f32.xlu0 %v826
    %v1002 = vpop.xlane.xlu0 %1001
    %1003 = vadd.xlane.f32.xlu0 %v827
    %v1004 = vpop.xlane.xlu0 %1003
    %1005 = vadd.xlane.f32.xlu0 %v828
    %v1006 = vpop.xlane.xlu0 %1005
    %1007 = vadd.xlane.f32.xlu0 %v829
    %v1008 = vpop.xlane.xlu0 %1007
    %1009 = vadd.xlane.f32.xlu0 %v830
    %v1010 = vpop.xlane.xlu0 %1009
    %1011 = vadd.xlane.f32.xlu0 %v831
    %v1012 = vpop.xlane.xlu0 %1011
    %1013 = vadd.xlane.f32.xlu0 %v832
    %v1014 = vpop.xlane.xlu0 %1013
    %1015 = vadd.xlane.f32.xlu0 %v833
    %v1016 = vpop.xlane.xlu0 %1015
    %1017 = vadd.xlane.f32.xlu0 %v834
    %v1018 = vpop.xlane.xlu0 %1017
    %1019 = vadd.xlane.f32.xlu0 %v835
    %v1020 = vpop.xlane.xlu0 %1019
    %1021 = vadd.xlane.f32.xlu0 %v836
    %v1022 = vpop.xlane.xlu0 %1021
    %1023 = vadd.xlane.f32.xlu0 %v837
    %v1024 = vpop.xlane.xlu0 %1023
    %1025 = vadd.xlane.f32.xlu0 %v838
    %v1026 = vpop.xlane.xlu0 %1025
    %1027 = vadd.xlane.f32.xlu0 %v839
    %v1028 = vpop.xlane.xlu0 %1027
    %1029 = vadd.xlane.f32.xlu0 %v840
    %v1030 = vpop.xlane.xlu0 %1029
    %1031 = vadd.xlane.f32.xlu0 %v841
    %v1032 = vpop.xlane.xlu0 %1031
    %1033 = vadd.xlane.f32.xlu0 %v842
    %v1034 = vpop.xlane.xlu0 %1033
    %1035 = vadd.xlane.f32.xlu0 %v843
    %v1036 = vpop.xlane.xlu0 %1035
    %1037 = vadd.xlane.f32.xlu0 %v844
    %v1038 = vpop.xlane.xlu0 %1037
    %1039 = vadd.xlane.f32.xlu0 %v845
    %v1040 = vpop.xlane.xlu0 %1039
    %1041 = vadd.xlane.f32.xlu0 %v846
    %v1042 = vpop.xlane.xlu0 %1041
    %1043 = vadd.xlane.f32.xlu0 %v847
    %v1044 = vpop.xlane.xlu0 %1043
    %1045 = vadd.xlane.f32.xlu0 %v848
    %v1046 = vpop.xlane.xlu0 %1045
    %1047 = vadd.xlane.f32.xlu0 %v849
    %v1048 = vpop.xlane.xlu0 %1047
    %1049 = vadd.xlane.f32.xlu0 %v850
    %v1050 = vpop.xlane.xlu0 %1049
    %1051 = vadd.xlane.f32.xlu0 %v851
    %v1052 = vpop.xlane.xlu0 %1051
    %1053 = vadd.xlane.f32.xlu0 %v852
    %v1054 = vpop.xlane.xlu0 %1053
    %1055 = vadd.xlane.f32.xlu0 %v853
    %v1056 = vpop.xlane.xlu0 %1055
    %1057 = vadd.xlane.f32.xlu0 %v854
    %v1058 = vpop.xlane.xlu0 %1057
    %1059 = vadd.xlane.f32.xlu0 %v855
    %v1060 = vpop.xlane.xlu0 %1059
    %1061 = vadd.xlane.f32.xlu0 %v856
    %v1062 = vpop.xlane.xlu0 %1061
    %1063 = vadd.xlane.f32.xlu0 %v857
    %v1064 = vpop.xlane.xlu0 %1063
    %1065 = vadd.xlane.f32.xlu0 %v858
    %v1066 = vpop.xlane.xlu0 %1065
    %1067 = vadd.xlane.f32.xlu0 %v859
    %v1068 = vpop.xlane.xlu0 %1067
    %1069 = vadd.xlane.f32.xlu0 %v860
    %v1070 = vpop.xlane.xlu0 %1069
    %1071 = vadd.xlane.f32.xlu0 %v861
    %v1072 = vpop.xlane.xlu0 %1071
    %1073 = vadd.xlane.f32.xlu0 %v862
    %v1074 = vpop.xlane.xlu0 %1073
    %1075 = vadd.xlane.f32.xlu0 %v863
    %v1076 = vpop.xlane.xlu0 %1075
    %1077 = vadd.xlane.f32.xlu0 %v864
    %v1078 = vpop.xlane.xlu0 %1077
    %1079 = vadd.xlane.f32.xlu0 %v865
    %v1080 = vpop.xlane.xlu0 %1079
    %1081 = vadd.xlane.f32.xlu0 %v866
    %v1082 = vpop.xlane.xlu0 %1081
    %1083 = vadd.xlane.f32.xlu0 %v867
    %v1084 = vpop.xlane.xlu0 %1083
    %1085 = vadd.xlane.f32.xlu0 %v868
    %v1086 = vpop.xlane.xlu0 %1085
    %1087 = vadd.xlane.f32.xlu0 %v869
    %v1088 = vpop.xlane.xlu0 %1087
    %1089 = vadd.xlane.f32.xlu0 %v870
    %v1090 = vpop.xlane.xlu0 %1089
    %1091 = vadd.xlane.f32.xlu0 %v871
    %v1092 = vpop.xlane.xlu0 %1091
    %1093 = vadd.xlane.f32.xlu0 %v872
    %v1094 = vpop.xlane.xlu0 %1093
    %1095 = vadd.xlane.f32.xlu0 %v873
    %v1096 = vpop.xlane.xlu0 %1095
    %1097 = vadd.xlane.f32.xlu0 %v874
    %v1098 = vpop.xlane.xlu0 %1097
    %1099 = vadd.xlane.f32.xlu0 %v875
    %v1100 = vpop.xlane.xlu0 %1099
    %1101 = vadd.xlane.f32.xlu0 %v876
    %v1102 = vpop.xlane.xlu0 %1101
    %1103 = vadd.xlane.f32.xlu0 %v877
    %v1104 = vpop.xlane.xlu0 %1103
    %1105 = vadd.xlane.f32.xlu0 %v878
    %v1106 = vpop.xlane.xlu0 %1105
    %1107 = vadd.xlane.f32.xlu0 %v879
    %v1108 = vpop.xlane.xlu0 %1107
    %1109 = vadd.xlane.f32.xlu0 %v880
    %v1110 = vpop.xlane.xlu0 %1109
    %1111 = vadd.xlane.f32.xlu0 %v881
    %v1112 = vpop.xlane.xlu0 %1111
    %1113 = vadd.xlane.f32.xlu0 %v882
    %v1114 = vpop.xlane.xlu0 %1113
    %1115 = vadd.xlane.f32.xlu0 %v883
    %v1116 = vpop.xlane.xlu0 %1115
    %1117 = vadd.xlane.f32.xlu0 %v884
    %v1118 = vpop.xlane.xlu0 %1117
    %1119 = vadd.xlane.f32.xlu0 %v885
    %v1120 = vpop.xlane.xlu0 %1119
    %1121 = vadd.xlane.f32.xlu0 %v886
    %v1122 = vpop.xlane.xlu0 %1121
    %1123 = vadd.xlane.f32.xlu0 %v887
    %v1124 = vpop.xlane.xlu0 %1123
    %1125 = vadd.xlane.f32.xlu0 %v888
    %v1126 = vpop.xlane.xlu0 %1125
    %1127 = vadd.xlane.f32.xlu0 %v889
    %v1128 = vpop.xlane.xlu0 %1127
    %1129 = vadd.xlane.f32.xlu0 %v890
    %v1130 = vpop.xlane.xlu0 %1129
    %1131 = vadd.xlane.f32.xlu0 %v891
    %v1132 = vpop.xlane.xlu0 %1131
    %1133 = vadd.xlane.f32.xlu0 %v892
    %v1134 = vpop.xlane.xlu0 %1133
    %1135 = vadd.xlane.f32.xlu0 %v893
    %v1136 = vpop.xlane.xlu0 %1135
    %1137 = vadd.xlane.f32.xlu0 %v894
    %v1138 = vpop.xlane.xlu0 %1137
    %1139 = vadd.xlane.f32.xlu0 %v895
    %v1140 = vpop.xlane.xlu0 %1139
    %1141 = vadd.xlane.f32.xlu0 %v896
    %v1142 = vpop.xlane.xlu0 %1141
    %1143 = vadd.xlane.f32.xlu0 %v897
    %v1144 = vpop.xlane.xlu0 %1143
    %1145 = vadd.xlane.f32.xlu0 %v898
    %v1146 = vpop.xlane.xlu0 %1145
    %1147 = vadd.xlane.f32.xlu0 %v899
    %v1148 = vpop.xlane.xlu0 %1147
    %1149 = vadd.xlane.f32.xlu0 %v900
    %v1150 = vpop.xlane.xlu0 %1149
    %1151 = vadd.xlane.f32.xlu0 %v901
    %v1152 = vpop.xlane.xlu0 %1151
    %1153 = vadd.xlane.f32.xlu0 %v902
    %v1154 = vpop.xlane.xlu0 %1153
    %1155 = vadd.xlane.f32.xlu0 %v903
    %v1156 = vpop.xlane.xlu0 %1155
    %1157 = vadd.xlane.f32.xlu0 %v904
    %v1158 = vpop.xlane.xlu0 %1157
    %1159 = vadd.xlane.f32.xlu0 %v905
    %v1160 = vpop.xlane.xlu0 %1159
    %1161 = vadd.xlane.f32.xlu0 %v906
    %v1162 = vpop.xlane.xlu0 %1161
    %vm1163 = vcmp.lt.f32.partialorder %v908, 1.0
    %vm1164 = vcmp.lt.f32.partialorder %v910, 1.0
    %vm1165 = vcmp.lt.f32.partialorder %v912, 1.0
    %vm1166 = vcmp.lt.f32.partialorder %v914, 1.0
    %vm1167 = vcmp.lt.f32.partialorder %v916, 1.0
    %vm1168 = vcmp.lt.f32.partialorder %v918, 1.0
    %vm1169 = vcmp.lt.f32.partialorder %v920, 1.0
    %vm1170 = vcmp.lt.f32.partialorder %v922, 1.0
    %vm1171 = vcmp.lt.f32.partialorder %v924, 1.0
    %vm1172 = vcmp.lt.f32.partialorder %v926, 1.0
    %vm1173 = vcmp.lt.f32.partialorder %v928, 1.0
    %vm1174 = vcmp.lt.f32.partialorder %v930, 1.0
    %vm1175 = vcmp.lt.f32.partialorder %v932, 1.0
    %vm1176 = vcmp.lt.f32.partialorder %v934, 1.0
    %vm1177 = vcmp.lt.f32.partialorder %v936, 1.0
    %vm1178 = vcmp.lt.f32.partialorder %v938, 1.0
    %vm1179 = vcmp.lt.f32.partialorder %v940, 1.0
    %vm1180 = vcmp.lt.f32.partialorder %v942, 1.0
    %vm1181 = vcmp.lt.f32.partialorder %v944, 1.0
    %vm1182 = vcmp.lt.f32.partialorder %v946, 1.0
    %vm1183 = vcmp.lt.f32.partialorder %v948, 1.0
    %vm1184 = vcmp.lt.f32.partialorder %v950, 1.0
    %vm1185 = vcmp.lt.f32.partialorder %v952, 1.0
    %vm1186 = vcmp.lt.f32.partialorder %v954, 1.0
    %vm1187 = vcmp.lt.f32.partialorder %v956, 1.0
    %vm1188 = vcmp.lt.f32.partialorder %v958, 1.0
    %vm1189 = vcmp.lt.f32.partialorder %v960, 1.0
    %vm1190 = vcmp.lt.f32.partialorder %v962, 1.0
    %vm1191 = vcmp.lt.f32.partialorder %v964, 1.0
    %vm1192 = vcmp.lt.f32.partialorder %v966, 1.0
    %vm1193 = vcmp.lt.f32.partialorder %v968, 1.0
    %vm1194 = vcmp.lt.f32.partialorder %v970, 1.0
    %vm1195 = vcmp.lt.f32.partialorder %v972, 1.0
    %vm1196 = vcmp.lt.f32.partialorder %v974, 1.0
    %vm1197 = vcmp.lt.f32.partialorder %v976, 1.0
    %vm1198 = vcmp.lt.f32.partialorder %v978, 1.0
    %vm1199 = vcmp.lt.f32.partialorder %v980, 1.0
    %vm1200 = vcmp.lt.f32.partialorder %v982, 1.0
    %vm1201 = vcmp.lt.f32.partialorder %v984, 1.0
    %vm1202 = vcmp.lt.f32.partialorder %v986, 1.0
    %vm1203 = vcmp.lt.f32.partialorder %v988, 1.0
    %vm1204 = vcmp.lt.f32.partialorder %v990, 1.0
    %vm1205 = vcmp.lt.f32.partialorder %v992, 1.0
    %vm1206 = vcmp.lt.f32.partialorder %v994, 1.0
    %vm1207 = vcmp.lt.f32.partialorder %v996, 1.0
    %vm1208 = vcmp.lt.f32.partialorder %v998, 1.0
    %vm1209 = vcmp.lt.f32.partialorder %v1000, 1.0
    %vm1210 = vcmp.lt.f32.partialorder %v1002, 1.0
    %vm1211 = vcmp.lt.f32.partialorder %v1004, 1.0
    %vm1212 = vcmp.lt.f32.partialorder %v1006, 1.0
    %vm1213 = vcmp.lt.f32.partialorder %v1008, 1.0
    %vm1214 = vcmp.lt.f32.partialorder %v1010, 1.0
    %vm1215 = vcmp.lt.f32.partialorder %v1012, 1.0
    %vm1216 = vcmp.lt.f32.partialorder %v1014, 1.0
    %vm1217 = vcmp.lt.f32.partialorder %v1016, 1.0
    %vm1218 = vcmp.lt.f32.partialorder %v1018, 1.0
    %vm1219 = vcmp.lt.f32.partialorder %v1020, 1.0
    %vm1220 = vcmp.lt.f32.partialorder %v1022, 1.0
    %vm1221 = vcmp.lt.f32.partialorder %v1024, 1.0
    %vm1222 = vcmp.lt.f32.partialorder %v1026, 1.0
    %vm1223 = vcmp.lt.f32.partialorder %v1028, 1.0
    %vm1224 = vcmp.lt.f32.partialorder %v1030, 1.0
    %vm1225 = vcmp.lt.f32.partialorder %v1032, 1.0
    %vm1226 = vcmp.lt.f32.partialorder %v1034, 1.0
    %vm1227 = vcmp.lt.f32.partialorder %v1036, 1.0
    %vm1228 = vcmp.lt.f32.partialorder %v1038, 1.0
    %vm1229 = vcmp.lt.f32.partialorder %v1040, 1.0
    %vm1230 = vcmp.lt.f32.partialorder %v1042, 1.0
    %vm1231 = vcmp.lt.f32.partialorder %v1044, 1.0
    %vm1232 = vcmp.lt.f32.partialorder %v1046, 1.0
    %vm1233 = vcmp.lt.f32.partialorder %v1048, 1.0
    %vm1234 = vcmp.lt.f32.partialorder %v1050, 1.0
    %vm1235 = vcmp.lt.f32.partialorder %v1052, 1.0
    %vm1236 = vcmp.lt.f32.partialorder %v1054, 1.0
    %vm1237 = vcmp.lt.f32.partialorder %v1056, 1.0
    %vm1238 = vcmp.lt.f32.partialorder %v1058, 1.0
    %vm1239 = vcmp.lt.f32.partialorder %v1060, 1.0
    %vm1240 = vcmp.lt.f32.partialorder %v1062, 1.0
    %vm1241 = vcmp.lt.f32.partialorder %v1064, 1.0
    %vm1242 = vcmp.lt.f32.partialorder %v1066, 1.0
    %vm1243 = vcmp.lt.f32.partialorder %v1068, 1.0
    %vm1244 = vcmp.lt.f32.partialorder %v1070, 1.0
    %vm1245 = vcmp.lt.f32.partialorder %v1072, 1.0
    %vm1246 = vcmp.lt.f32.partialorder %v1074, 1.0
    %vm1247 = vcmp.lt.f32.partialorder %v1076, 1.0
    %vm1248 = vcmp.lt.f32.partialorder %v1078, 1.0
    %vm1249 = vcmp.lt.f32.partialorder %v1080, 1.0
    %vm1250 = vcmp.lt.f32.partialorder %v1082, 1.0
    %vm1251 = vcmp.lt.f32.partialorder %v1084, 1.0
    %vm1252 = vcmp.lt.f32.partialorder %v1086, 1.0
    %vm1253 = vcmp.lt.f32.partialorder %v1088, 1.0
    %vm1254 = vcmp.lt.f32.partialorder %v1090, 1.0
    %vm1255 = vcmp.lt.f32.partialorder %v1092, 1.0
    %vm1256 = vcmp.lt.f32.partialorder %v1094, 1.0
    %vm1257 = vcmp.lt.f32.partialorder %v1096, 1.0
    %vm1258 = vcmp.lt.f32.partialorder %v1098, 1.0
    %vm1259 = vcmp.lt.f32.partialorder %v1100, 1.0
    %vm1260 = vcmp.lt.f32.partialorder %v1102, 1.0
    %vm1261 = vcmp.lt.f32.partialorder %v1104, 1.0
    %vm1262 = vcmp.lt.f32.partialorder %v1106, 1.0
    %vm1263 = vcmp.lt.f32.partialorder %v1108, 1.0
    %vm1264 = vcmp.lt.f32.partialorder %v1110, 1.0
    %vm1265 = vcmp.lt.f32.partialorder %v1112, 1.0
    %vm1266 = vcmp.lt.f32.partialorder %v1114, 1.0
    %vm1267 = vcmp.lt.f32.partialorder %v1116, 1.0
    %vm1268 = vcmp.lt.f32.partialorder %v1118, 1.0
    %vm1269 = vcmp.lt.f32.partialorder %v1120, 1.0
    %vm1270 = vcmp.lt.f32.partialorder %v1122, 1.0
    %vm1271 = vcmp.lt.f32.partialorder %v1124, 1.0
    %vm1272 = vcmp.lt.f32.partialorder %v1126, 1.0
    %vm1273 = vcmp.lt.f32.partialorder %v1128, 1.0
    %vm1274 = vcmp.lt.f32.partialorder %v1130, 1.0
    %vm1275 = vcmp.lt.f32.partialorder %v1132, 1.0
    %vm1276 = vcmp.lt.f32.partialorder %v1134, 1.0
    %vm1277 = vcmp.lt.f32.partialorder %v1136, 1.0
    %vm1278 = vcmp.lt.f32.partialorder %v1138, 1.0
    %vm1279 = vcmp.lt.f32.partialorder %v1140, 1.0
    %vm1280 = vcmp.lt.f32.partialorder %v1142, 1.0
    %vm1281 = vcmp.lt.f32.partialorder %v1144, 1.0
    %vm1282 = vcmp.lt.f32.partialorder %v1146, 1.0
    %vm1283 = vcmp.lt.f32.partialorder %v1148, 1.0
    %vm1284 = vcmp.lt.f32.partialorder %v1150, 1.0
    %vm1285 = vcmp.lt.f32.partialorder %v1152, 1.0
    %vm1286 = vcmp.lt.f32.partialorder %v1154, 1.0
    %vm1287 = vcmp.lt.f32.partialorder %v1156, 1.0
    %vm1288 = vcmp.lt.f32.partialorder %v1158, 1.0
    %vm1289 = vcmp.lt.f32.partialorder %v1160, 1.0
    %vm1290 = vcmp.lt.f32.partialorder %v1162, 1.0
    %v1291 = vsel %vm1163, 1, 0
    %v1292 = vsel %vm1164, 1, 0
    %v1293 = vsel %vm1165, 1, 0
    %v1294 = vsel %vm1166, 1, 0
    %v1295 = vsel %vm1167, 1, 0
    %v1296 = vsel %vm1168, 1, 0
    %v1297 = vsel %vm1169, 1, 0
    %v1298 = vsel %vm1170, 1, 0
    %v1299 = vsel %vm1171, 1, 0
    %v1300 = vsel %vm1172, 1, 0
    %v1301 = vsel %vm1173, 1, 0
    %v1302 = vsel %vm1174, 1, 0
    %v1303 = vsel %vm1175, 1, 0
    %v1304 = vsel %vm1176, 1, 0
    %v1305 = vsel %vm1177, 1, 0
    %v1306 = vsel %vm1178, 1, 0
    %v1307 = vsel %vm1179, 1, 0
    %v1308 = vsel %vm1180, 1, 0
    %v1309 = vsel %vm1181, 1, 0
    %v1310 = vsel %vm1182, 1, 0
    %v1311 = vsel %vm1183, 1, 0
    %v1312 = vsel %vm1184, 1, 0
    %v1313 = vsel %vm1185, 1, 0
    %v1314 = vsel %vm1186, 1, 0
    %v1315 = vsel %vm1187, 1, 0
    %v1316 = vsel %vm1188, 1, 0
    %v1317 = vsel %vm1189, 1, 0
    %v1318 = vsel %vm1190, 1, 0
    %v1319 = vsel %vm1191, 1, 0
    %v1320 = vsel %vm1192, 1, 0
    %v1321 = vsel %vm1193, 1, 0
    %v1322 = vsel %vm1194, 1, 0
    %v1323 = vsel %vm1195, 1, 0
    %v1324 = vsel %vm1196, 1, 0
    %v1325 = vsel %vm1197, 1, 0
    %v1326 = vsel %vm1198, 1, 0
    %v1327 = vsel %vm1199, 1, 0
    %v1328 = vsel %vm1200, 1, 0
    %v1329 = vsel %vm1201, 1, 0
    %v1330 = vsel %vm1202, 1, 0
    %v1331 = vsel %vm1203, 1, 0
    %v1332 = vsel %vm1204, 1, 0
    %v1333 = vsel %vm1205, 1, 0
    %v1334 = vsel %vm1206, 1, 0
    %v1335 = vsel %vm1207, 1, 0
    %v1336 = vsel %vm1208, 1, 0
    %v1337 = vsel %vm1209, 1, 0
    %v1338 = vsel %vm1210, 1, 0
    %v1339 = vsel %vm1211, 1, 0
    %v1340 = vsel %vm1212, 1, 0
    %v1341 = vsel %vm1213, 1, 0
    %v1342 = vsel %vm1214, 1, 0
    %v1343 = vsel %vm1215, 1, 0
    %v1344 = vsel %vm1216, 1, 0
    %v1345 = vsel %vm1217, 1, 0
    %v1346 = vsel %vm1218, 1, 0
    %v1347 = vsel %vm1219, 1, 0
    %v1348 = vsel %vm1220, 1, 0
    %v1349 = vsel %vm1221, 1, 0
    %v1350 = vsel %vm1222, 1, 0
    %v1351 = vsel %vm1223, 1, 0
    %v1352 = vsel %vm1224, 1, 0
    %v1353 = vsel %vm1225, 1, 0
    %v1354 = vsel %vm1226, 1, 0
    %v1355 = vsel %vm1227, 1, 0
    %v1356 = vsel %vm1228, 1, 0
    %v1357 = vsel %vm1229, 1, 0
    %v1358 = vsel %vm1230, 1, 0
    %v1359 = vsel %vm1231, 1, 0
    %v1360 = vsel %vm1232, 1, 0
    %v1361 = vsel %vm1233, 1, 0
    %v1362 = vsel %vm1234, 1, 0
    %v1363 = vsel %vm1235, 1, 0
    %v1364 = vsel %vm1236, 1, 0
    %v1365 = vsel %vm1237, 1, 0
    %v1366 = vsel %vm1238, 1, 0
    %v1367 = vsel %vm1239, 1, 0
    %v1368 = vsel %vm1240, 1, 0
    %v1369 = vsel %vm1241, 1, 0
    %v1370 = vsel %vm1242, 1, 0
    %v1371 = vsel %vm1243, 1, 0
    %v1372 = vsel %vm1244, 1, 0
    %v1373 = vsel %vm1245, 1, 0
    %v1374 = vsel %vm1246, 1, 0
    %v1375 = vsel %vm1247, 1, 0
    %v1376 = vsel %vm1248, 1, 0
    %v1377 = vsel %vm1249, 1, 0
    %v1378 = vsel %vm1250, 1, 0
    %v1379 = vsel %vm1251, 1, 0
    %v1380 = vsel %vm1252, 1, 0
    %v1381 = vsel %vm1253, 1, 0
    %v1382 = vsel %vm1254, 1, 0
    %v1383 = vsel %vm1255, 1, 0
    %v1384 = vsel %vm1256, 1, 0
    %v1385 = vsel %vm1257, 1, 0
    %v1386 = vsel %vm1258, 1, 0
    %v1387 = vsel %vm1259, 1, 0
    %v1388 = vsel %vm1260, 1, 0
    %v1389 = vsel %vm1261, 1, 0
    %v1390 = vsel %vm1262, 1, 0
    %v1391 = vsel %vm1263, 1, 0
    %v1392 = vsel %vm1264, 1, 0
    %v1393 = vsel %vm1265, 1, 0
    %v1394 = vsel %vm1266, 1, 0
    %v1395 = vsel %vm1267, 1, 0
    %v1396 = vsel %vm1268, 1, 0
    %v1397 = vsel %vm1269, 1, 0
    %v1398 = vsel %vm1270, 1, 0
    %v1399 = vsel %vm1271, 1, 0
    %v1400 = vsel %vm1272, 1, 0
    %v1401 = vsel %vm1273, 1, 0
    %v1402 = vsel %vm1274, 1, 0
    %v1403 = vsel %vm1275, 1, 0
    %v1404 = vsel %vm1276, 1, 0
    %v1405 = vsel %vm1277, 1, 0
    %v1406 = vsel %vm1278, 1, 0
    %v1407 = vsel %vm1279, 1, 0
    %v1408 = vsel %vm1280, 1, 0
    %v1409 = vsel %vm1281, 1, 0
    %v1410 = vsel %vm1282, 1, 0
    %v1411 = vsel %vm1283, 1, 0
    %v1412 = vsel %vm1284, 1, 0
    %v1413 = vsel %vm1285, 1, 0
    %v1414 = vsel %vm1286, 1, 0
    %v1415 = vsel %vm1287, 1, 0
    %v1416 = vsel %vm1288, 1, 0
    %v1417 = vsel %vm1289, 1, 0
    %v1418 = vsel %vm1290, 1, 0
    %v1419 = vcvt.s32.f32 %v1291
    %v1420 = vcvt.s32.f32 %v1292
    %v1421 = vcvt.s32.f32 %v1293
    %v1422 = vcvt.s32.f32 %v1294
    %v1423 = vcvt.s32.f32 %v1295
    %v1424 = vcvt.s32.f32 %v1296
    %v1425 = vcvt.s32.f32 %v1297
    %v1426 = vcvt.s32.f32 %v1298
    %v1427 = vcvt.s32.f32 %v1299
    %v1428 = vcvt.s32.f32 %v1300
    %v1429 = vcvt.s32.f32 %v1301
    %v1430 = vcvt.s32.f32 %v1302
    %v1431 = vcvt.s32.f32 %v1303
    %v1432 = vcvt.s32.f32 %v1304
    %v1433 = vcvt.s32.f32 %v1305
    %v1434 = vcvt.s32.f32 %v1306
    %v1435 = vcvt.s32.f32 %v1307
    %v1436 = vcvt.s32.f32 %v1308
    %v1437 = vcvt.s32.f32 %v1309
    %v1438 = vcvt.s32.f32 %v1310
    %v1439 = vcvt.s32.f32 %v1311
    %v1440 = vcvt.s32.f32 %v1312
    %v1441 = vcvt.s32.f32 %v1313
    %v1442 = vcvt.s32.f32 %v1314
    %v1443 = vcvt.s32.f32 %v1315
    %v1444 = vcvt.s32.f32 %v1316
    %v1445 = vcvt.s32.f32 %v1317
    %v1446 = vcvt.s32.f32 %v1318
    %v1447 = vcvt.s32.f32 %v1319
    %v1448 = vcvt.s32.f32 %v1320
    %v1449 = vcvt.s32.f32 %v1321
    %v1450 = vcvt.s32.f32 %v1322
    %v1451 = vcvt.s32.f32 %v1323
    %v1452 = vcvt.s32.f32 %v1324
    %v1453 = vcvt.s32.f32 %v1325
    %v1454 = vcvt.s32.f32 %v1326
    %v1455 = vcvt.s32.f32 %v1327
    %v1456 = vcvt.s32.f32 %v1328
    %v1457 = vcvt.s32.f32 %v1329
    %v1458 = vcvt.s32.f32 %v1330
    %v1459 = vcvt.s32.f32 %v1331
    %v1460 = vcvt.s32.f32 %v1332
    %v1461 = vcvt.s32.f32 %v1333
    %v1462 = vcvt.s32.f32 %v1334
    %v1463 = vcvt.s32.f32 %v1335
    %v1464 = vcvt.s32.f32 %v1336
    %v1465 = vcvt.s32.f32 %v1337
    %v1466 = vcvt.s32.f32 %v1338
    %v1467 = vcvt.s32.f32 %v1339
    %v1468 = vcvt.s32.f32 %v1340
    %v1469 = vcvt.s32.f32 %v1341
    %v1470 = vcvt.s32.f32 %v1342
    %v1471 = vcvt.s32.f32 %v1343
    %v1472 = vcvt.s32.f32 %v1344
    %v1473 = vcvt.s32.f32 %v1345
    %v1474 = vcvt.s32.f32 %v1346
    %v1475 = vcvt.s32.f32 %v1347
    %v1476 = vcvt.s32.f32 %v1348
    %v1477 = vcvt.s32.f32 %v1349
    %v1478 = vcvt.s32.f32 %v1350
    %v1479 = vcvt.s32.f32 %v1351
    %v1480 = vcvt.s32.f32 %v1352
    %v1481 = vcvt.s32.f32 %v1353
    %v1482 = vcvt.s32.f32 %v1354
    %v1483 = vcvt.s32.f32 %v1355
    %v1484 = vcvt.s32.f32 %v1356
    %v1485 = vcvt.s32.f32 %v1357
    %v1486 = vcvt.s32.f32 %v1358
    %v1487 = vcvt.s32.f32 %v1359
    %v1488 = vcvt.s32.f32 %v1360
    %v1489 = vcvt.s32.f32 %v1361
    %v1490 = vcvt.s32.f32 %v1362
    %v1491 = vcvt.s32.f32 %v1363
    %v1492 = vcvt.s32.f32 %v1364
    %v1493 = vcvt.s32.f32 %v1365
    %v1494 = vcvt.s32.f32 %v1366
    %v1495 = vcvt.s32.f32 %v1367
    %v1496 = vcvt.s32.f32 %v1368
    %v1497 = vcvt.s32.f32 %v1369
    %v1498 = vcvt.s32.f32 %v1370
    %v1499 = vcvt.s32.f32 %v1371
    %v1500 = vcvt.s32.f32 %v1372
    %v1501 = vcvt.s32.f32 %v1373
    %v1502 = vcvt.s32.f32 %v1374
    %v1503 = vcvt.s32.f32 %v1375
    %v1504 = vcvt.s32.f32 %v1376
    %v1505 = vcvt.s32.f32 %v1377
    %v1506 = vcvt.s32.f32 %v1378
    %v1507 = vcvt.s32.f32 %v1379
    %v1508 = vcvt.s32.f32 %v1380
    %v1509 = vcvt.s32.f32 %v1381
    %v1510 = vcvt.s32.f32 %v1382
    %v1511 = vcvt.s32.f32 %v1383
    %v1512 = vcvt.s32.f32 %v1384
    %v1513 = vcvt.s32.f32 %v1385
    %v1514 = vcvt.s32.f32 %v1386
    %v1515 = vcvt.s32.f32 %v1387
    %v1516 = vcvt.s32.f32 %v1388
    %v1517 = vcvt.s32.f32 %v1389
    %v1518 = vcvt.s32.f32 %v1390
    %v1519 = vcvt.s32.f32 %v1391
    %v1520 = vcvt.s32.f32 %v1392
    %v1521 = vcvt.s32.f32 %v1393
    %v1522 = vcvt.s32.f32 %v1394
    %v1523 = vcvt.s32.f32 %v1395
    %v1524 = vcvt.s32.f32 %v1396
    %v1525 = vcvt.s32.f32 %v1397
    %v1526 = vcvt.s32.f32 %v1398
    %v1527 = vcvt.s32.f32 %v1399
    %v1528 = vcvt.s32.f32 %v1400
    %v1529 = vcvt.s32.f32 %v1401
    %v1530 = vcvt.s32.f32 %v1402
    %v1531 = vcvt.s32.f32 %v1403
    %v1532 = vcvt.s32.f32 %v1404
    %v1533 = vcvt.s32.f32 %v1405
    %v1534 = vcvt.s32.f32 %v1406
    %v1535 = vcvt.s32.f32 %v1407
    %v1536 = vcvt.s32.f32 %v1408
    %v1537 = vcvt.s32.f32 %v1409
    %v1538 = vcvt.s32.f32 %v1410
    %v1539 = vcvt.s32.f32 %v1411
    %v1540 = vcvt.s32.f32 %v1412
    %v1541 = vcvt.s32.f32 %v1413
    %v1542 = vcvt.s32.f32 %v1414
    %v1543 = vcvt.s32.f32 %v1415
    %v1544 = vcvt.s32.f32 %v1416
    %v1545 = vcvt.s32.f32 %v1417
    %v1546 = vcvt.s32.f32 %v1418
    %v1675 = vlaneseq
    %v1676 = vand.u32 %v1675, 127
    %v1677 = vlaneseq
    %v1678 = vshrl.u32 %v1677, 7
    %v1679 = vsub.s32 %v1676, %v1678
    %v1680 = vrot.slane %v1419, %v1679
    %v1681 = vadd.s32 %v1676, 4294967288
    %v1682 = vlaneseq
    %v1683 = vshrl.u32 %v1682, 7
    %v1684 = vsub.s32 %v1681, %v1683
    %v1685 = vrot.slane %v1420, %v1684
    %vm1686 = vcmask 130112
    %v1687 = vsel %vm1686, %v1685, %v1680
    %v1688 = vadd.s32 %v1676, 4294967280
    %v1689 = vlaneseq
    %v1690 = vshrl.u32 %v1689, 7
    %v1691 = vsub.s32 %v1688, %v1690
    %v1692 = vrot.slane %v1421, %v1691
    %vm1693 = vcmask 195712
    %v1694 = vsel %vm1693, %v1692, %v1687
    %v1695 = vadd.s32 %v1676, 4294967272
    %v1696 = vlaneseq
    %v1697 = vshrl.u32 %v1696, 7
    %v1698 = vsub.s32 %v1695, %v1697
    %v1699 = vrot.slane %v1422, %v1698
    %vm1700 = vcmask 261312
    %v1701 = vsel %vm1700, %v1699, %v1694
    %v1702 = vadd.s32 %v1676, 4294967264
    %v1703 = vlaneseq
    %v1704 = vshrl.u32 %v1703, 7
    %v1705 = vsub.s32 %v1702, %v1704
    %v1706 = vrot.slane %v1423, %v1705
    %vm1707 = vcmask 326912
    %v1708 = vsel %vm1707, %v1706, %v1701
    %v1709 = vadd.s32 %v1676, 4294967256
    %v1710 = vlaneseq
    %v1711 = vshrl.u32 %v1710, 7
    %v1712 = vsub.s32 %v1709, %v1711
    %v1713 = vrot.slane %v1424, %v1712
    %vm1714 = vcmask 392512
    %v1715 = vsel %vm1714, %v1713, %v1708
    %v1716 = vadd.s32 %v1676, 4294967248
    %v1717 = vlaneseq
    %v1718 = vshrl.u32 %v1717, 7
    %v1719 = vsub.s32 %v1716, %v1718
    %v1720 = vrot.slane %v1425, %v1719
    %vm1721 = vcmask 458112
    %v1722 = vsel %vm1721, %v1720, %v1715
    %v1723 = vadd.s32 %v1676, 4294967240
    %v1724 = vlaneseq
    %v1725 = vshrl.u32 %v1724, 7
    %v1726 = vsub.s32 %v1723, %v1725
    %v1727 = vrot.slane %v1426, %v1726
    %vm1728 = vcmask 523712
    %v1729 = vsel %vm1728, %v1727, %v1722
    %v1730 = vadd.s32 %v1676, 4294967232
    %v1731 = vlaneseq
    %v1732 = vshrl.u32 %v1731, 7
    %v1733 = vsub.s32 %v1730, %v1732
    %v1734 = vrot.slane %v1427, %v1733
    %vm1735 = vcmask 589312
    %v1736 = vsel %vm1735, %v1734, %v1729
    %v1737 = vadd.s32 %v1676, 4294967224
    %v1738 = vlaneseq
    %v1739 = vshrl.u32 %v1738, 7
    %v1740 = vsub.s32 %v1737, %v1739
    %v1741 = vrot.slane %v1428, %v1740
    %vm1742 = vcmask 654912
    %v1743 = vsel %vm1742, %v1741, %v1736
    %v1744 = vadd.s32 %v1676, 4294967216
    %v1745 = vlaneseq
    %v1746 = vshrl.u32 %v1745, 7
    %v1747 = vsub.s32 %v1744, %v1746
    %v1748 = vrot.slane %v1429, %v1747
    %vm1749 = vcmask 720512
    %v1750 = vsel %vm1749, %v1748, %v1743
    %v1751 = vadd.s32 %v1676, 4294967208
    %v1752 = vlaneseq
    %v1753 = vshrl.u32 %v1752, 7
    %v1754 = vsub.s32 %v1751, %v1753
    %v1755 = vrot.slane %v1430, %v1754
    %vm1756 = vcmask 786112
    %v1757 = vsel %vm1756, %v1755, %v1750
    %v1758 = vadd.s32 %v1676, 4294967200
    %v1759 = vlaneseq
    %v1760 = vshrl.u32 %v1759, 7
    %v1761 = vsub.s32 %v1758, %v1760
    %v1762 = vrot.slane %v1431, %v1761
    %vm1763 = vcmask 851712
    %v1764 = vsel %vm1763, %v1762, %v1757
    %v1765 = vadd.s32 %v1676, 4294967192
    %v1766 = vlaneseq
    %v1767 = vshrl.u32 %v1766, 7
    %v1768 = vsub.s32 %v1765, %v1767
    %v1769 = vrot.slane %v1432, %v1768
    %vm1770 = vcmask 917312
    %v1771 = vsel %vm1770, %v1769, %v1764
    %v1772 = vadd.s32 %v1676, 4294967184
    %v1773 = vlaneseq
    %v1774 = vshrl.u32 %v1773, 7
    %v1775 = vsub.s32 %v1772, %v1774
    %v1776 = vrot.slane %v1433, %v1775
    %vm1777 = vcmask 982912
    %v1778 = vsel %vm1777, %v1776, %v1771
    %v1779 = vadd.s32 %v1676, 4294967176
    %v1780 = vlaneseq
    %v1781 = vshrl.u32 %v1780, 7
    %v1782 = vsub.s32 %v1779, %v1781
    %v1783 = vrot.slane %v1434, %v1782
    %vm1784 = vcmask 1048512
    %v1785 = vsel %vm1784, %v1783, %v1778
    %v1786 = vlaneseq
    %v1787 = vshrl.u32 %v1786, 7
    %v1788 = vsub.s32 %v1676, %v1787
    %v1789 = vrot.slane %v1435, %v1788
    %v1790 = vlaneseq
    %v1791 = vshrl.u32 %v1790, 7
    %v1792 = vsub.s32 %v1681, %v1791
    %v1793 = vrot.slane %v1436, %v1792
    %v1794 = vsel %vm1686, %v1793, %v1789
    %v1795 = vlaneseq
    %v1796 = vshrl.u32 %v1795, 7
    %v1797 = vsub.s32 %v1688, %v1796
    %v1798 = vrot.slane %v1437, %v1797
    %v1799 = vsel %vm1693, %v1798, %v1794
    %v1800 = vlaneseq
    %v1801 = vshrl.u32 %v1800, 7
    %v1802 = vsub.s32 %v1695, %v1801
    %v1803 = vrot.slane %v1438, %v1802
    %v1804 = vsel %vm1700, %v1803, %v1799
    %v1805 = vlaneseq
    %v1806 = vshrl.u32 %v1805, 7
    %v1807 = vsub.s32 %v1702, %v1806
    %v1808 = vrot.slane %v1439, %v1807
    %v1809 = vsel %vm1707, %v1808, %v1804
    %v1810 = vlaneseq
    %v1811 = vshrl.u32 %v1810, 7
    %v1812 = vsub.s32 %v1709, %v1811
    %v1813 = vrot.slane %v1440, %v1812
    %v1814 = vsel %vm1714, %v1813, %v1809
    %v1815 = vlaneseq
    %v1816 = vshrl.u32 %v1815, 7
    %v1817 = vsub.s32 %v1716, %v1816
    %v1818 = vrot.slane %v1441, %v1817
    %v1819 = vsel %vm1721, %v1818, %v1814
    %v1820 = vlaneseq
    %v1821 = vshrl.u32 %v1820, 7
    %v1822 = vsub.s32 %v1723, %v1821
    %v1823 = vrot.slane %v1442, %v1822
    %v1824 = vsel %vm1728, %v1823, %v1819
    %v1825 = vlaneseq
    %v1826 = vshrl.u32 %v1825, 7
    %v1827 = vsub.s32 %v1730, %v1826
    %v1828 = vrot.slane %v1443, %v1827
    %v1829 = vsel %vm1735, %v1828, %v1824
    %v1830 = vlaneseq
    %v1831 = vshrl.u32 %v1830, 7
    %v1832 = vsub.s32 %v1737, %v1831
    %v1833 = vrot.slane %v1444, %v1832
    %v1834 = vsel %vm1742, %v1833, %v1829
    %v1835 = vlaneseq
    %v1836 = vshrl.u32 %v1835, 7
    %v1837 = vsub.s32 %v1744, %v1836
    %v1838 = vrot.slane %v1445, %v1837
    %v1839 = vsel %vm1749, %v1838, %v1834
    %v1840 = vlaneseq
    %v1841 = vshrl.u32 %v1840, 7
    %v1842 = vsub.s32 %v1751, %v1841
    %v1843 = vrot.slane %v1446, %v1842
    %v1844 = vsel %vm1756, %v1843, %v1839
    %v1845 = vlaneseq
    %v1846 = vshrl.u32 %v1845, 7
    %v1847 = vsub.s32 %v1758, %v1846
    %v1848 = vrot.slane %v1447, %v1847
    %v1849 = vsel %vm1763, %v1848, %v1844
    %v1850 = vlaneseq
    %v1851 = vshrl.u32 %v1850, 7
    %v1852 = vsub.s32 %v1765, %v1851
    %v1853 = vrot.slane %v1448, %v1852
    %v1854 = vsel %vm1770, %v1853, %v1849
    %v1855 = vlaneseq
    %v1856 = vshrl.u32 %v1855, 7
    %v1857 = vsub.s32 %v1772, %v1856
    %v1858 = vrot.slane %v1449, %v1857
    %v1859 = vsel %vm1777, %v1858, %v1854
    %v1860 = vlaneseq
    %v1861 = vshrl.u32 %v1860, 7
    %v1862 = vsub.s32 %v1779, %v1861
    %v1863 = vrot.slane %v1450, %v1862
    %v1864 = vsel %vm1784, %v1863, %v1859
    %v1865 = vlaneseq
    %v1866 = vshrl.u32 %v1865, 7
    %v1867 = vsub.s32 %v1676, %v1866
    %v1868 = vrot.slane %v1451, %v1867
    %v1869 = vlaneseq
    %v1870 = vshrl.u32 %v1869, 7
    %v1871 = vsub.s32 %v1681, %v1870
    %v1872 = vrot.slane %v1452, %v1871
    %v1873 = vsel %vm1686, %v1872, %v1868
    %v1874 = vlaneseq
    %v1875 = vshrl.u32 %v1874, 7
    %v1876 = vsub.s32 %v1688, %v1875
    %v1877 = vrot.slane %v1453, %v1876
    %v1878 = vsel %vm1693, %v1877, %v1873
    %v1879 = vlaneseq
    %v1880 = vshrl.u32 %v1879, 7
    %v1881 = vsub.s32 %v1695, %v1880
    %v1882 = vrot.slane %v1454, %v1881
    %v1883 = vsel %vm1700, %v1882, %v1878
    %v1884 = vlaneseq
    %v1885 = vshrl.u32 %v1884, 7
    %v1886 = vsub.s32 %v1702, %v1885
    %v1887 = vrot.slane %v1455, %v1886
    %v1888 = vsel %vm1707, %v1887, %v1883
    %v1889 = vlaneseq
    %v1890 = vshrl.u32 %v1889, 7
    %v1891 = vsub.s32 %v1709, %v1890
    %v1892 = vrot.slane %v1456, %v1891
    %v1893 = vsel %vm1714, %v1892, %v1888
    %v1894 = vlaneseq
    %v1895 = vshrl.u32 %v1894, 7
    %v1896 = vsub.s32 %v1716, %v1895
    %v1897 = vrot.slane %v1457, %v1896
    %v1898 = vsel %vm1721, %v1897, %v1893
    %v1899 = vlaneseq
    %v1900 = vshrl.u32 %v1899, 7
    %v1901 = vsub.s32 %v1723, %v1900
    %v1902 = vrot.slane %v1458, %v1901
    %v1903 = vsel %vm1728, %v1902, %v1898
    %v1904 = vlaneseq
    %v1905 = vshrl.u32 %v1904, 7
    %v1906 = vsub.s32 %v1730, %v1905
    %v1907 = vrot.slane %v1459, %v1906
    %v1908 = vsel %vm1735, %v1907, %v1903
    %v1909 = vlaneseq
    %v1910 = vshrl.u32 %v1909, 7
    %v1911 = vsub.s32 %v1737, %v1910
    %v1912 = vrot.slane %v1460, %v1911
    %v1913 = vsel %vm1742, %v1912, %v1908
    %v1914 = vlaneseq
    %v1915 = vshrl.u32 %v1914, 7
    %v1916 = vsub.s32 %v1744, %v1915
    %v1917 = vrot.slane %v1461, %v1916
    %v1918 = vsel %vm1749, %v1917, %v1913
    %v1919 = vlaneseq
    %v1920 = vshrl.u32 %v1919, 7
    %v1921 = vsub.s32 %v1751, %v1920
    %v1922 = vrot.slane %v1462, %v1921
    %v1923 = vsel %vm1756, %v1922, %v1918
    %v1924 = vlaneseq
    %v1925 = vshrl.u32 %v1924, 7
    %v1926 = vsub.s32 %v1758, %v1925
    %v1927 = vrot.slane %v1463, %v1926
    %v1928 = vsel %vm1763, %v1927, %v1923
    %v1929 = vlaneseq
    %v1930 = vshrl.u32 %v1929, 7
    %v1931 = vsub.s32 %v1765, %v1930
    %v1932 = vrot.slane %v1464, %v1931
    %v1933 = vsel %vm1770, %v1932, %v1928
    %v1934 = vlaneseq
    %v1935 = vshrl.u32 %v1934, 7
    %v1936 = vsub.s32 %v1772, %v1935
    %v1937 = vrot.slane %v1465, %v1936
    %v1938 = vsel %vm1777, %v1937, %v1933
    %v1939 = vlaneseq
    %v1940 = vshrl.u32 %v1939, 7
    %v1941 = vsub.s32 %v1779, %v1940
    %v1942 = vrot.slane %v1466, %v1941
    %v1943 = vsel %vm1784, %v1942, %v1938
    %v1944 = vlaneseq
    %v1945 = vshrl.u32 %v1944, 7
    %v1946 = vsub.s32 %v1676, %v1945
    %v1947 = vrot.slane %v1467, %v1946
    %v1948 = vlaneseq
    %v1949 = vshrl.u32 %v1948, 7
    %v1950 = vsub.s32 %v1681, %v1949
    %v1951 = vrot.slane %v1468, %v1950
    %v1952 = vsel %vm1686, %v1951, %v1947
    %v1953 = vlaneseq
    %v1954 = vshrl.u32 %v1953, 7
    %v1955 = vsub.s32 %v1688, %v1954
    %v1956 = vrot.slane %v1469, %v1955
    %v1957 = vsel %vm1693, %v1956, %v1952
    %v1958 = vlaneseq
    %v1959 = vshrl.u32 %v1958, 7
    %v1960 = vsub.s32 %v1695, %v1959
    %v1961 = vrot.slane %v1470, %v1960
    %v1962 = vsel %vm1700, %v1961, %v1957
    %v1963 = vlaneseq
    %v1964 = vshrl.u32 %v1963, 7
    %v1965 = vsub.s32 %v1702, %v1964
    %v1966 = vrot.slane %v1471, %v1965
    %v1967 = vsel %vm1707, %v1966, %v1962
    %v1968 = vlaneseq
    %v1969 = vshrl.u32 %v1968, 7
    %v1970 = vsub.s32 %v1709, %v1969
    %v1971 = vrot.slane %v1472, %v1970
    %v1972 = vsel %vm1714, %v1971, %v1967
    %v1973 = vlaneseq
    %v1974 = vshrl.u32 %v1973, 7
    %v1975 = vsub.s32 %v1716, %v1974
    %v1976 = vrot.slane %v1473, %v1975
    %v1977 = vsel %vm1721, %v1976, %v1972
    %v1978 = vlaneseq
    %v1979 = vshrl.u32 %v1978, 7
    %v1980 = vsub.s32 %v1723, %v1979
    %v1981 = vrot.slane %v1474, %v1980
    %v1982 = vsel %vm1728, %v1981, %v1977
    %v1983 = vlaneseq
    %v1984 = vshrl.u32 %v1983, 7
    %v1985 = vsub.s32 %v1730, %v1984
    %v1986 = vrot.slane %v1475, %v1985
    %v1987 = vsel %vm1735, %v1986, %v1982
    %v1988 = vlaneseq
    %v1989 = vshrl.u32 %v1988, 7
    %v1990 = vsub.s32 %v1737, %v1989
    %v1991 = vrot.slane %v1476, %v1990
    %v1992 = vsel %vm1742, %v1991, %v1987
    %v1993 = vlaneseq
    %v1994 = vshrl.u32 %v1993, 7
    %v1995 = vsub.s32 %v1744, %v1994
    %v1996 = vrot.slane %v1477, %v1995
    %v1997 = vsel %vm1749, %v1996, %v1992
    %v1998 = vlaneseq
    %v1999 = vshrl.u32 %v1998, 7
    %v2000 = vsub.s32 %v1751, %v1999
    %v2001 = vrot.slane %v1478, %v2000
    %v2002 = vsel %vm1756, %v2001, %v1997
    %v2003 = vlaneseq
    %v2004 = vshrl.u32 %v2003, 7
    %v2005 = vsub.s32 %v1758, %v2004
    %v2006 = vrot.slane %v1479, %v2005
    %v2007 = vsel %vm1763, %v2006, %v2002
    %v2008 = vlaneseq
    %v2009 = vshrl.u32 %v2008, 7
    %v2010 = vsub.s32 %v1765, %v2009
    %v2011 = vrot.slane %v1480, %v2010
    %v2012 = vsel %vm1770, %v2011, %v2007
    %v2013 = vlaneseq
    %v2014 = vshrl.u32 %v2013, 7
    %v2015 = vsub.s32 %v1772, %v2014
    %v2016 = vrot.slane %v1481, %v2015
    %v2017 = vsel %vm1777, %v2016, %v2012
    %v2018 = vlaneseq
    %v2019 = vshrl.u32 %v2018, 7
    %v2020 = vsub.s32 %v1779, %v2019
    %v2021 = vrot.slane %v1482, %v2020
    %v2022 = vsel %vm1784, %v2021, %v2017
    %v2023 = vlaneseq
    %v2024 = vshrl.u32 %v2023, 7
    %v2025 = vsub.s32 %v1676, %v2024
    %v2026 = vrot.slane %v1483, %v2025
    %v2027 = vlaneseq
    %v2028 = vshrl.u32 %v2027, 7
    %v2029 = vsub.s32 %v1681, %v2028
    %v2030 = vrot.slane %v1484, %v2029
    %v2031 = vsel %vm1686, %v2030, %v2026
    %v2032 = vlaneseq
    %v2033 = vshrl.u32 %v2032, 7
    %v2034 = vsub.s32 %v1688, %v2033
    %v2035 = vrot.slane %v1485, %v2034
    %v2036 = vsel %vm1693, %v2035, %v2031
    %v2037 = vlaneseq
    %v2038 = vshrl.u32 %v2037, 7
    %v2039 = vsub.s32 %v1695, %v2038
    %v2040 = vrot.slane %v1486, %v2039
    %v2041 = vsel %vm1700, %v2040, %v2036
    %v2042 = vlaneseq
    %v2043 = vshrl.u32 %v2042, 7
    %v2044 = vsub.s32 %v1702, %v2043
    %v2045 = vrot.slane %v1487, %v2044
    %v2046 = vsel %vm1707, %v2045, %v2041
    %v2047 = vlaneseq
    %v2048 = vshrl.u32 %v2047, 7
    %v2049 = vsub.s32 %v1709, %v2048
    %v2050 = vrot.slane %v1488, %v2049
    %v2051 = vsel %vm1714, %v2050, %v2046
    %v2052 = vlaneseq
    %v2053 = vshrl.u32 %v2052, 7
    %v2054 = vsub.s32 %v1716, %v2053
    %v2055 = vrot.slane %v1489, %v2054
    %v2056 = vsel %vm1721, %v2055, %v2051
    %v2057 = vlaneseq
    %v2058 = vshrl.u32 %v2057, 7
    %v2059 = vsub.s32 %v1723, %v2058
    %v2060 = vrot.slane %v1490, %v2059
    %v2061 = vsel %vm1728, %v2060, %v2056
    %v2062 = vlaneseq
    %v2063 = vshrl.u32 %v2062, 7
    %v2064 = vsub.s32 %v1730, %v2063
    %v2065 = vrot.slane %v1491, %v2064
    %v2066 = vsel %vm1735, %v2065, %v2061
    %v2067 = vlaneseq
    %v2068 = vshrl.u32 %v2067, 7
    %v2069 = vsub.s32 %v1737, %v2068
    %v2070 = vrot.slane %v1492, %v2069
    %v2071 = vsel %vm1742, %v2070, %v2066
    %v2072 = vlaneseq
    %v2073 = vshrl.u32 %v2072, 7
    %v2074 = vsub.s32 %v1744, %v2073
    %v2075 = vrot.slane %v1493, %v2074
    %v2076 = vsel %vm1749, %v2075, %v2071
    %v2077 = vlaneseq
    %v2078 = vshrl.u32 %v2077, 7
    %v2079 = vsub.s32 %v1751, %v2078
    %v2080 = vrot.slane %v1494, %v2079
    %v2081 = vsel %vm1756, %v2080, %v2076
    %v2082 = vlaneseq
    %v2083 = vshrl.u32 %v2082, 7
    %v2084 = vsub.s32 %v1758, %v2083
    %v2085 = vrot.slane %v1495, %v2084
    %v2086 = vsel %vm1763, %v2085, %v2081
    %v2087 = vlaneseq
    %v2088 = vshrl.u32 %v2087, 7
    %v2089 = vsub.s32 %v1765, %v2088
    %v2090 = vrot.slane %v1496, %v2089
    %v2091 = vsel %vm1770, %v2090, %v2086
    %v2092 = vlaneseq
    %v2093 = vshrl.u32 %v2092, 7
    %v2094 = vsub.s32 %v1772, %v2093
    %v2095 = vrot.slane %v1497, %v2094
    %v2096 = vsel %vm1777, %v2095, %v2091
    %v2097 = vlaneseq
    %v2098 = vshrl.u32 %v2097, 7
    %v2099 = vsub.s32 %v1779, %v2098
    %v2100 = vrot.slane %v1498, %v2099
    %v2101 = vsel %vm1784, %v2100, %v2096
    %v2102 = vlaneseq
    %v2103 = vshrl.u32 %v2102, 7
    %v2104 = vsub.s32 %v1676, %v2103
    %v2105 = vrot.slane %v1499, %v2104
    %v2106 = vlaneseq
    %v2107 = vshrl.u32 %v2106, 7
    %v2108 = vsub.s32 %v1681, %v2107
    %v2109 = vrot.slane %v1500, %v2108
    %v2110 = vsel %vm1686, %v2109, %v2105
    %v2111 = vlaneseq
    %v2112 = vshrl.u32 %v2111, 7
    %v2113 = vsub.s32 %v1688, %v2112
    %v2114 = vrot.slane %v1501, %v2113
    %v2115 = vsel %vm1693, %v2114, %v2110
    %v2116 = vlaneseq
    %v2117 = vshrl.u32 %v2116, 7
    %v2118 = vsub.s32 %v1695, %v2117
    %v2119 = vrot.slane %v1502, %v2118
    %v2120 = vsel %vm1700, %v2119, %v2115
    %v2121 = vlaneseq
    %v2122 = vshrl.u32 %v2121, 7
    %v2123 = vsub.s32 %v1702, %v2122
    %v2124 = vrot.slane %v1503, %v2123
    %v2125 = vsel %vm1707, %v2124, %v2120
    %v2126 = vlaneseq
    %v2127 = vshrl.u32 %v2126, 7
    %v2128 = vsub.s32 %v1709, %v2127
    %v2129 = vrot.slane %v1504, %v2128
    %v2130 = vsel %vm1714, %v2129, %v2125
    %v2131 = vlaneseq
    %v2132 = vshrl.u32 %v2131, 7
    %v2133 = vsub.s32 %v1716, %v2132
    %v2134 = vrot.slane %v1505, %v2133
    %v2135 = vsel %vm1721, %v2134, %v2130
    %v2136 = vlaneseq
    %v2137 = vshrl.u32 %v2136, 7
    %v2138 = vsub.s32 %v1723, %v2137
    %v2139 = vrot.slane %v1506, %v2138
    %v2140 = vsel %vm1728, %v2139, %v2135
    %v2141 = vlaneseq
    %v2142 = vshrl.u32 %v2141, 7
    %v2143 = vsub.s32 %v1730, %v2142
    %v2144 = vrot.slane %v1507, %v2143
    %v2145 = vsel %vm1735, %v2144, %v2140
    %v2146 = vlaneseq
    %v2147 = vshrl.u32 %v2146, 7
    %v2148 = vsub.s32 %v1737, %v2147
    %v2149 = vrot.slane %v1508, %v2148
    %v2150 = vsel %vm1742, %v2149, %v2145
    %v2151 = vlaneseq
    %v2152 = vshrl.u32 %v2151, 7
    %v2153 = vsub.s32 %v1744, %v2152
    %v2154 = vrot.slane %v1509, %v2153
    %v2155 = vsel %vm1749, %v2154, %v2150
    %v2156 = vlaneseq
    %v2157 = vshrl.u32 %v2156, 7
    %v2158 = vsub.s32 %v1751, %v2157
    %v2159 = vrot.slane %v1510, %v2158
    %v2160 = vsel %vm1756, %v2159, %v2155
    %v2161 = vlaneseq
    %v2162 = vshrl.u32 %v2161, 7
    %v2163 = vsub.s32 %v1758, %v2162
    %v2164 = vrot.slane %v1511, %v2163
    %v2165 = vsel %vm1763, %v2164, %v2160
    %v2166 = vlaneseq
    %v2167 = vshrl.u32 %v2166, 7
    %v2168 = vsub.s32 %v1765, %v2167
    %v2169 = vrot.slane %v1512, %v2168
    %v2170 = vsel %vm1770, %v2169, %v2165
    %v2171 = vlaneseq
    %v2172 = vshrl.u32 %v2171, 7
    %v2173 = vsub.s32 %v1772, %v2172
    %v2174 = vrot.slane %v1513, %v2173
    %v2175 = vsel %vm1777, %v2174, %v2170
    %v2176 = vlaneseq
    %v2177 = vshrl.u32 %v2176, 7
    %v2178 = vsub.s32 %v1779, %v2177
    %v2179 = vrot.slane %v1514, %v2178
    %v2180 = vsel %vm1784, %v2179, %v2175
    %v2181 = vlaneseq
    %v2182 = vshrl.u32 %v2181, 7
    %v2183 = vsub.s32 %v1676, %v2182
    %v2184 = vrot.slane %v1515, %v2183
    %v2185 = vlaneseq
    %v2186 = vshrl.u32 %v2185, 7
    %v2187 = vsub.s32 %v1681, %v2186
    %v2188 = vrot.slane %v1516, %v2187
    %v2189 = vsel %vm1686, %v2188, %v2184
    %v2190 = vlaneseq
    %v2191 = vshrl.u32 %v2190, 7
    %v2192 = vsub.s32 %v1688, %v2191
    %v2193 = vrot.slane %v1517, %v2192
    %v2194 = vsel %vm1693, %v2193, %v2189
    %v2195 = vlaneseq
    %v2196 = vshrl.u32 %v2195, 7
    %v2197 = vsub.s32 %v1695, %v2196
    %v2198 = vrot.slane %v1518, %v2197
    %v2199 = vsel %vm1700, %v2198, %v2194
    %v2200 = vlaneseq
    %v2201 = vshrl.u32 %v2200, 7
    %v2202 = vsub.s32 %v1702, %v2201
    %v2203 = vrot.slane %v1519, %v2202
    %v2204 = vsel %vm1707, %v2203, %v2199
    %v2205 = vlaneseq
    %v2206 = vshrl.u32 %v2205, 7
    %v2207 = vsub.s32 %v1709, %v2206
    %v2208 = vrot.slane %v1520, %v2207
    %v2209 = vsel %vm1714, %v2208, %v2204
    %v2210 = vlaneseq
    %v2211 = vshrl.u32 %v2210, 7
    %v2212 = vsub.s32 %v1716, %v2211
    %v2213 = vrot.slane %v1521, %v2212
    %v2214 = vsel %vm1721, %v2213, %v2209
    %v2215 = vlaneseq
    %v2216 = vshrl.u32 %v2215, 7
    %v2217 = vsub.s32 %v1723, %v2216
    %v2218 = vrot.slane %v1522, %v2217
    %v2219 = vsel %vm1728, %v2218, %v2214
    %v2220 = vlaneseq
    %v2221 = vshrl.u32 %v2220, 7
    %v2222 = vsub.s32 %v1730, %v2221
    %v2223 = vrot.slane %v1523, %v2222
    %v2224 = vsel %vm1735, %v2223, %v2219
    %v2225 = vlaneseq
    %v2226 = vshrl.u32 %v2225, 7
    %v2227 = vsub.s32 %v1737, %v2226
    %v2228 = vrot.slane %v1524, %v2227
    %v2229 = vsel %vm1742, %v2228, %v2224
    %v2230 = vlaneseq
    %v2231 = vshrl.u32 %v2230, 7
    %v2232 = vsub.s32 %v1744, %v2231
    %v2233 = vrot.slane %v1525, %v2232
    %v2234 = vsel %vm1749, %v2233, %v2229
    %v2235 = vlaneseq
    %v2236 = vshrl.u32 %v2235, 7
    %v2237 = vsub.s32 %v1751, %v2236
    %v2238 = vrot.slane %v1526, %v2237
    %v2239 = vsel %vm1756, %v2238, %v2234
    %v2240 = vlaneseq
    %v2241 = vshrl.u32 %v2240, 7
    %v2242 = vsub.s32 %v1758, %v2241
    %v2243 = vrot.slane %v1527, %v2242
    %v2244 = vsel %vm1763, %v2243, %v2239
    %v2245 = vlaneseq
    %v2246 = vshrl.u32 %v2245, 7
    %v2247 = vsub.s32 %v1765, %v2246
    %v2248 = vrot.slane %v1528, %v2247
    %v2249 = vsel %vm1770, %v2248, %v2244
    %v2250 = vlaneseq
    %v2251 = vshrl.u32 %v2250, 7
    %v2252 = vsub.s32 %v1772, %v2251
    %v2253 = vrot.slane %v1529, %v2252
    %v2254 = vsel %vm1777, %v2253, %v2249
    %v2255 = vlaneseq
    %v2256 = vshrl.u32 %v2255, 7
    %v2257 = vsub.s32 %v1779, %v2256
    %v2258 = vrot.slane %v1530, %v2257
    %v2259 = vsel %vm1784, %v2258, %v2254
    %v2260 = vlaneseq
    %v2261 = vshrl.u32 %v2260, 7
    %v2262 = vsub.s32 %v1676, %v2261
    %v2263 = vrot.slane %v1531, %v2262
    %v2264 = vlaneseq
    %v2265 = vshrl.u32 %v2264, 7
    %v2266 = vsub.s32 %v1681, %v2265
    %v2267 = vrot.slane %v1532, %v2266
    %v2268 = vsel %vm1686, %v2267, %v2263
    %v2269 = vlaneseq
    %v2270 = vshrl.u32 %v2269, 7
    %v2271 = vsub.s32 %v1688, %v2270
    %v2272 = vrot.slane %v1533, %v2271
    %v2273 = vsel %vm1693, %v2272, %v2268
    %v2274 = vlaneseq
    %v2275 = vshrl.u32 %v2274, 7
    %v2276 = vsub.s32 %v1695, %v2275
    %v2277 = vrot.slane %v1534, %v2276
    %v2278 = vsel %vm1700, %v2277, %v2273
    %v2279 = vlaneseq
    %v2280 = vshrl.u32 %v2279, 7
    %v2281 = vsub.s32 %v1702, %v2280
    %v2282 = vrot.slane %v1535, %v2281
    %v2283 = vsel %vm1707, %v2282, %v2278
    %v2284 = vlaneseq
    %v2285 = vshrl.u32 %v2284, 7
    %v2286 = vsub.s32 %v1709, %v2285
    %v2287 = vrot.slane %v1536, %v2286
    %v2288 = vsel %vm1714, %v2287, %v2283
    %v2289 = vlaneseq
    %v2290 = vshrl.u32 %v2289, 7
    %v2291 = vsub.s32 %v1716, %v2290
    %v2292 = vrot.slane %v1537, %v2291
    %v2293 = vsel %vm1721, %v2292, %v2288
    %v2294 = vlaneseq
    %v2295 = vshrl.u32 %v2294, 7
    %v2296 = vsub.s32 %v1723, %v2295
    %v2297 = vrot.slane %v1538, %v2296
    %v2298 = vsel %vm1728, %v2297, %v2293
    %v2299 = vlaneseq
    %v2300 = vshrl.u32 %v2299, 7
    %v2301 = vsub.s32 %v1730, %v2300
    %v2302 = vrot.slane %v1539, %v2301
    %v2303 = vsel %vm1735, %v2302, %v2298
    %v2304 = vlaneseq
    %v2305 = vshrl.u32 %v2304, 7
    %v2306 = vsub.s32 %v1737, %v2305
    %v2307 = vrot.slane %v1540, %v2306
    %v2308 = vsel %vm1742, %v2307, %v2303
    %v2309 = vlaneseq
    %v2310 = vshrl.u32 %v2309, 7
    %v2311 = vsub.s32 %v1744, %v2310
    %v2312 = vrot.slane %v1541, %v2311
    %v2313 = vsel %vm1749, %v2312, %v2308
    %v2314 = vlaneseq
    %v2315 = vshrl.u32 %v2314, 7
    %v2316 = vsub.s32 %v1751, %v2315
    %v2317 = vrot.slane %v1542, %v2316
    %v2318 = vsel %vm1756, %v2317, %v2313
    %v2319 = vlaneseq
    %v2320 = vshrl.u32 %v2319, 7
    %v2321 = vsub.s32 %v1758, %v2320
    %v2322 = vrot.slane %v1543, %v2321
    %v2323 = vsel %vm1763, %v2322, %v2318
    %v2324 = vlaneseq
    %v2325 = vshrl.u32 %v2324, 7
    %v2326 = vsub.s32 %v1765, %v2325
    %v2327 = vrot.slane %v1544, %v2326
    %v2328 = vsel %vm1770, %v2327, %v2323
    %v2329 = vlaneseq
    %v2330 = vshrl.u32 %v2329, 7
    %v2331 = vsub.s32 %v1772, %v2330
    %v2332 = vrot.slane %v1545, %v2331
    %v2333 = vsel %vm1777, %v2332, %v2328
    %v2334 = vlaneseq
    %v2335 = vshrl.u32 %v2334, 7
    %v2336 = vsub.s32 %v1779, %v2335
    %v2337 = vrot.slane %v1546, %v2336
    %v2338 = vsel %vm1784, %v2337, %v2333
    %vm2339 = vcmask 1041409
    %v2340 = vsel %vm2339, %v1864, %v1785
    %vm2341 = vcmask 1042434
    %v2342 = vsel %vm2341, %v1943, %v2340
    %vm2343 = vcmask 1043459
    %v2344 = vsel %vm2343, %v2022, %v2342
    %vm2345 = vcmask 1044484
    %v2346 = vsel %vm2345, %v2101, %v2344
    %vm2347 = vcmask 1045509
    %v2348 = vsel %vm2347, %v2180, %v2346
    %vm2349 = vcmask 1046534
    %v2350 = vsel %vm2349, %v2259, %v2348
    %vm2351 = vcmask 1047559
    %v2352 = vsel %vm2351, %v2338, %v2350
    %2354 = vadd.xlane.f32.xlu0 %v2352
    %v2355 = vpop.xlane.xlu0 %2354
    %v2356 = vlaneseq
    %v2357 = vshrl.u32 %v2356, 7
    %v2358 = vsub.s32 0, %v2357
    %v2359 = vrot.slane %v24, %v2358
    %2361 = vbcast.lane.b32.xlu0 %v2359, 256
    %v2362 = vpop.permute.xlu0 %2361
    %s2364 = sor.u32 256, 8
    %2365 = vbcast.lane.b32.xlu0 %v2359, %s2364
    %v2366 = vpop.permute.xlu0 %2365
    %s2368 = sor.u32 256, 16
    %2369 = vbcast.lane.b32.xlu0 %v2359, %s2368
    %v2370 = vpop.permute.xlu0 %2369
    %s2372 = sor.u32 256, 24
    %2373 = vbcast.lane.b32.xlu0 %v2359, %s2372
    %v2374 = vpop.permute.xlu0 %2373
    %s2376 = sor.u32 256, 32
    %2377 = vbcast.lane.b32.xlu0 %v2359, %s2376
    %v2378 = vpop.permute.xlu0 %2377
    %s2380 = sor.u32 256, 40
    %2381 = vbcast.lane.b32.xlu0 %v2359, %s2380
    %v2382 = vpop.permute.xlu0 %2381
    %s2384 = sor.u32 256, 48
    %2385 = vbcast.lane.b32.xlu0 %v2359, %s2384
    %v2386 = vpop.permute.xlu0 %2385
    %s2388 = sor.u32 256, 56
    %2389 = vbcast.lane.b32.xlu0 %v2359, %s2388
    %v2390 = vpop.permute.xlu0 %2389
    %s2392 = sor.u32 256, 64
    %2393 = vbcast.lane.b32.xlu0 %v2359, %s2392
    %v2394 = vpop.permute.xlu0 %2393
    %s2396 = sor.u32 256, 72
    %2397 = vbcast.lane.b32.xlu0 %v2359, %s2396
    %v2398 = vpop.permute.xlu0 %2397
    %s2400 = sor.u32 256, 80
    %2401 = vbcast.lane.b32.xlu0 %v2359, %s2400
    %v2402 = vpop.permute.xlu0 %2401
    %s2404 = sor.u32 256, 88
    %2405 = vbcast.lane.b32.xlu0 %v2359, %s2404
    %v2406 = vpop.permute.xlu0 %2405
    %s2408 = sor.u32 256, 96
    %2409 = vbcast.lane.b32.xlu0 %v2359, %s2408
    %v2410 = vpop.permute.xlu0 %2409
    %s2412 = sor.u32 256, 104
    %2413 = vbcast.lane.b32.xlu0 %v2359, %s2412
    %v2414 = vpop.permute.xlu0 %2413
    %s2416 = sor.u32 256, 112
    %2417 = vbcast.lane.b32.xlu0 %v2359, %s2416
    %v2418 = vpop.permute.xlu0 %2417
    %s2420 = sor.u32 256, 120
    %2421 = vbcast.lane.b32.xlu0 %v2359, %s2420
    %v2422 = vpop.permute.xlu0 %2421
    %v2423 = vlaneseq
    %v2424 = vshrl.u32 %v2423, 7
    %v2425 = vsub.s32 1, %v2424
    %v2426 = vrot.slane %v24, %v2425
    %2428 = vbcast.lane.b32.xlu0 %v2426, 256
    %v2429 = vpop.permute.xlu0 %2428
    %s2431 = sor.u32 256, 8
    %2432 = vbcast.lane.b32.xlu0 %v2426, %s2431
    %v2433 = vpop.permute.xlu0 %2432
    %s2435 = sor.u32 256, 16
    %2436 = vbcast.lane.b32.xlu0 %v2426, %s2435
    %v2437 = vpop.permute.xlu0 %2436
    %s2439 = sor.u32 256, 24
    %2440 = vbcast.lane.b32.xlu0 %v2426, %s2439
    %v2441 = vpop.permute.xlu0 %2440
    %s2443 = sor.u32 256, 32
    %2444 = vbcast.lane.b32.xlu0 %v2426, %s2443
    %v2445 = vpop.permute.xlu0 %2444
    %s2447 = sor.u32 256, 40
    %2448 = vbcast.lane.b32.xlu0 %v2426, %s2447
    %v2449 = vpop.permute.xlu0 %2448
    %s2451 = sor.u32 256, 48
    %2452 = vbcast.lane.b32.xlu0 %v2426, %s2451
    %v2453 = vpop.permute.xlu0 %2452
    %s2455 = sor.u32 256, 56
    %2456 = vbcast.lane.b32.xlu0 %v2426, %s2455
    %v2457 = vpop.permute.xlu0 %2456
    %s2459 = sor.u32 256, 64
    %2460 = vbcast.lane.b32.xlu0 %v2426, %s2459
    %v2461 = vpop.permute.xlu0 %2460
    %s2463 = sor.u32 256, 72
    %2464 = vbcast.lane.b32.xlu0 %v2426, %s2463
    %v2465 = vpop.permute.xlu0 %2464
    %s2467 = sor.u32 256, 80
    %2468 = vbcast.lane.b32.xlu0 %v2426, %s2467
    %v2469 = vpop.permute.xlu0 %2468
    %s2471 = sor.u32 256, 88
    %2472 = vbcast.lane.b32.xlu0 %v2426, %s2471
    %v2473 = vpop.permute.xlu0 %2472
    %s2475 = sor.u32 256, 96
    %2476 = vbcast.lane.b32.xlu0 %v2426, %s2475
    %v2477 = vpop.permute.xlu0 %2476
    %s2479 = sor.u32 256, 104
    %2480 = vbcast.lane.b32.xlu0 %v2426, %s2479
    %v2481 = vpop.permute.xlu0 %2480
    %s2483 = sor.u32 256, 112
    %2484 = vbcast.lane.b32.xlu0 %v2426, %s2483
    %v2485 = vpop.permute.xlu0 %2484
    %s2487 = sor.u32 256, 120
    %2488 = vbcast.lane.b32.xlu0 %v2426, %s2487
    %v2489 = vpop.permute.xlu0 %2488
    %v2490 = vlaneseq
    %v2491 = vshrl.u32 %v2490, 7
    %v2492 = vsub.s32 2, %v2491
    %v2493 = vrot.slane %v24, %v2492
    %2495 = vbcast.lane.b32.xlu0 %v2493, 256
    %v2496 = vpop.permute.xlu0 %2495
    %s2498 = sor.u32 256, 8
    %2499 = vbcast.lane.b32.xlu0 %v2493, %s2498
    %v2500 = vpop.permute.xlu0 %2499
    %s2502 = sor.u32 256, 16
    %2503 = vbcast.lane.b32.xlu0 %v2493, %s2502
    %v2504 = vpop.permute.xlu0 %2503
    %s2506 = sor.u32 256, 24
    %2507 = vbcast.lane.b32.xlu0 %v2493, %s2506
    %v2508 = vpop.permute.xlu0 %2507
    %s2510 = sor.u32 256, 32
    %2511 = vbcast.lane.b32.xlu0 %v2493, %s2510
    %v2512 = vpop.permute.xlu0 %2511
    %s2514 = sor.u32 256, 40
    %2515 = vbcast.lane.b32.xlu0 %v2493, %s2514
    %v2516 = vpop.permute.xlu0 %2515
    %s2518 = sor.u32 256, 48
    %2519 = vbcast.lane.b32.xlu0 %v2493, %s2518
    %v2520 = vpop.permute.xlu0 %2519
    %s2522 = sor.u32 256, 56
    %2523 = vbcast.lane.b32.xlu0 %v2493, %s2522
    %v2524 = vpop.permute.xlu0 %2523
    %s2526 = sor.u32 256, 64
    %2527 = vbcast.lane.b32.xlu0 %v2493, %s2526
    %v2528 = vpop.permute.xlu0 %2527
    %s2530 = sor.u32 256, 72
    %2531 = vbcast.lane.b32.xlu0 %v2493, %s2530
    %v2532 = vpop.permute.xlu0 %2531
    %s2534 = sor.u32 256, 80
    %2535 = vbcast.lane.b32.xlu0 %v2493, %s2534
    %v2536 = vpop.permute.xlu0 %2535
    %s2538 = sor.u32 256, 88
    %2539 = vbcast.lane.b32.xlu0 %v2493, %s2538
    %v2540 = vpop.permute.xlu0 %2539
    %s2542 = sor.u32 256, 96
    %2543 = vbcast.lane.b32.xlu0 %v2493, %s2542
    %v2544 = vpop.permute.xlu0 %2543
    %s2546 = sor.u32 256, 104
    %2547 = vbcast.lane.b32.xlu0 %v2493, %s2546
    %v2548 = vpop.permute.xlu0 %2547
    %s2550 = sor.u32 256, 112
    %2551 = vbcast.lane.b32.xlu0 %v2493, %s2550
    %v2552 = vpop.permute.xlu0 %2551
    %s2554 = sor.u32 256, 120
    %2555 = vbcast.lane.b32.xlu0 %v2493, %s2554
    %v2556 = vpop.permute.xlu0 %2555
    %v2557 = vlaneseq
    %v2558 = vshrl.u32 %v2557, 7
    %v2559 = vsub.s32 3, %v2558
    %v2560 = vrot.slane %v24, %v2559
    %2562 = vbcast.lane.b32.xlu0 %v2560, 256
    %v2563 = vpop.permute.xlu0 %2562
    %s2565 = sor.u32 256, 8
    %2566 = vbcast.lane.b32.xlu0 %v2560, %s2565
    %v2567 = vpop.permute.xlu0 %2566
    %s2569 = sor.u32 256, 16
    %2570 = vbcast.lane.b32.xlu0 %v2560, %s2569
    %v2571 = vpop.permute.xlu0 %2570
    %s2573 = sor.u32 256, 24
    %2574 = vbcast.lane.b32.xlu0 %v2560, %s2573
    %v2575 = vpop.permute.xlu0 %2574
    %s2577 = sor.u32 256, 32
    %2578 = vbcast.lane.b32.xlu0 %v2560, %s2577
    %v2579 = vpop.permute.xlu0 %2578
    %s2581 = sor.u32 256, 40
    %2582 = vbcast.lane.b32.xlu0 %v2560, %s2581
    %v2583 = vpop.permute.xlu0 %2582
    %s2585 = sor.u32 256, 48
    %2586 = vbcast.lane.b32.xlu0 %v2560, %s2585
    %v2587 = vpop.permute.xlu0 %2586
    %s2589 = sor.u32 256, 56
    %2590 = vbcast.lane.b32.xlu0 %v2560, %s2589
    %v2591 = vpop.permute.xlu0 %2590
    %s2593 = sor.u32 256, 64
    %2594 = vbcast.lane.b32.xlu0 %v2560, %s2593
    %v2595 = vpop.permute.xlu0 %2594
    %s2597 = sor.u32 256, 72
    %2598 = vbcast.lane.b32.xlu0 %v2560, %s2597
    %v2599 = vpop.permute.xlu0 %2598
    %s2601 = sor.u32 256, 80
    %2602 = vbcast.lane.b32.xlu0 %v2560, %s2601
    %v2603 = vpop.permute.xlu0 %2602
    %s2605 = sor.u32 256, 88
    %2606 = vbcast.lane.b32.xlu0 %v2560, %s2605
    %v2607 = vpop.permute.xlu0 %2606
    %s2609 = sor.u32 256, 96
    %2610 = vbcast.lane.b32.xlu0 %v2560, %s2609
    %v2611 = vpop.permute.xlu0 %2610
    %s2613 = sor.u32 256, 104
    %2614 = vbcast.lane.b32.xlu0 %v2560, %s2613
    %v2615 = vpop.permute.xlu0 %2614
    %s2617 = sor.u32 256, 112
    %2618 = vbcast.lane.b32.xlu0 %v2560, %s2617
    %v2619 = vpop.permute.xlu0 %2618
    %s2621 = sor.u32 256, 120
    %2622 = vbcast.lane.b32.xlu0 %v2560, %s2621
    %v2623 = vpop.permute.xlu0 %2622
    %v2624 = vlaneseq
    %v2625 = vshrl.u32 %v2624, 7
    %v2626 = vsub.s32 4, %v2625
    %v2627 = vrot.slane %v24, %v2626
    %2629 = vbcast.lane.b32.xlu0 %v2627, 256
    %v2630 = vpop.permute.xlu0 %2629
    %s2632 = sor.u32 256, 8
    %2633 = vbcast.lane.b32.xlu0 %v2627, %s2632
    %v2634 = vpop.permute.xlu0 %2633
    %s2636 = sor.u32 256, 16
    %2637 = vbcast.lane.b32.xlu0 %v2627, %s2636
    %v2638 = vpop.permute.xlu0 %2637
    %s2640 = sor.u32 256, 24
    %2641 = vbcast.lane.b32.xlu0 %v2627, %s2640
    %v2642 = vpop.permute.xlu0 %2641
    %s2644 = sor.u32 256, 32
    %2645 = vbcast.lane.b32.xlu0 %v2627, %s2644
    %v2646 = vpop.permute.xlu0 %2645
    %s2648 = sor.u32 256, 40
    %2649 = vbcast.lane.b32.xlu0 %v2627, %s2648
    %v2650 = vpop.permute.xlu0 %2649
    %s2652 = sor.u32 256, 48
    %2653 = vbcast.lane.b32.xlu0 %v2627, %s2652
    %v2654 = vpop.permute.xlu0 %2653
    %s2656 = sor.u32 256, 56
    %2657 = vbcast.lane.b32.xlu0 %v2627, %s2656
    %v2658 = vpop.permute.xlu0 %2657
    %s2660 = sor.u32 256, 64
    %2661 = vbcast.lane.b32.xlu0 %v2627, %s2660
    %v2662 = vpop.permute.xlu0 %2661
    %s2664 = sor.u32 256, 72
    %2665 = vbcast.lane.b32.xlu0 %v2627, %s2664
    %v2666 = vpop.permute.xlu0 %2665
    %s2668 = sor.u32 256, 80
    %2669 = vbcast.lane.b32.xlu0 %v2627, %s2668
    %v2670 = vpop.permute.xlu0 %2669
    %s2672 = sor.u32 256, 88
    %2673 = vbcast.lane.b32.xlu0 %v2627, %s2672
    %v2674 = vpop.permute.xlu0 %2673
    %s2676 = sor.u32 256, 96
    %2677 = vbcast.lane.b32.xlu0 %v2627, %s2676
    %v2678 = vpop.permute.xlu0 %2677
    %s2680 = sor.u32 256, 104
    %2681 = vbcast.lane.b32.xlu0 %v2627, %s2680
    %v2682 = vpop.permute.xlu0 %2681
    %s2684 = sor.u32 256, 112
    %2685 = vbcast.lane.b32.xlu0 %v2627, %s2684
    %v2686 = vpop.permute.xlu0 %2685
    %s2688 = sor.u32 256, 120
    %2689 = vbcast.lane.b32.xlu0 %v2627, %s2688
    %v2690 = vpop.permute.xlu0 %2689
    %v2691 = vlaneseq
    %v2692 = vshrl.u32 %v2691, 7
    %v2693 = vsub.s32 5, %v2692
    %v2694 = vrot.slane %v24, %v2693
    %2696 = vbcast.lane.b32.xlu0 %v2694, 256
    %v2697 = vpop.permute.xlu0 %2696
    %s2699 = sor.u32 256, 8
    %2700 = vbcast.lane.b32.xlu0 %v2694, %s2699
    %v2701 = vpop.permute.xlu0 %2700
    %s2703 = sor.u32 256, 16
    %2704 = vbcast.lane.b32.xlu0 %v2694, %s2703
    %v2705 = vpop.permute.xlu0 %2704
    %s2707 = sor.u32 256, 24
    %2708 = vbcast.lane.b32.xlu0 %v2694, %s2707
    %v2709 = vpop.permute.xlu0 %2708
    %s2711 = sor.u32 256, 32
    %2712 = vbcast.lane.b32.xlu0 %v2694, %s2711
    %v2713 = vpop.permute.xlu0 %2712
    %s2715 = sor.u32 256, 40
    %2716 = vbcast.lane.b32.xlu0 %v2694, %s2715
    %v2717 = vpop.permute.xlu0 %2716
    %s2719 = sor.u32 256, 48
    %2720 = vbcast.lane.b32.xlu0 %v2694, %s2719
    %v2721 = vpop.permute.xlu0 %2720
    %s2723 = sor.u32 256, 56
    %2724 = vbcast.lane.b32.xlu0 %v2694, %s2723
    %v2725 = vpop.permute.xlu0 %2724
    %s2727 = sor.u32 256, 64
    %2728 = vbcast.lane.b32.xlu0 %v2694, %s2727
    %v2729 = vpop.permute.xlu0 %2728
    %s2731 = sor.u32 256, 72
    %2732 = vbcast.lane.b32.xlu0 %v2694, %s2731
    %v2733 = vpop.permute.xlu0 %2732
    %s2735 = sor.u32 256, 80
    %2736 = vbcast.lane.b32.xlu0 %v2694, %s2735
    %v2737 = vpop.permute.xlu0 %2736
    %s2739 = sor.u32 256, 88
    %2740 = vbcast.lane.b32.xlu0 %v2694, %s2739
    %v2741 = vpop.permute.xlu0 %2740
    %s2743 = sor.u32 256, 96
    %2744 = vbcast.lane.b32.xlu0 %v2694, %s2743
    %v2745 = vpop.permute.xlu0 %2744
    %s2747 = sor.u32 256, 104
    %2748 = vbcast.lane.b32.xlu0 %v2694, %s2747
    %v2749 = vpop.permute.xlu0 %2748
    %s2751 = sor.u32 256, 112
    %2752 = vbcast.lane.b32.xlu0 %v2694, %s2751
    %v2753 = vpop.permute.xlu0 %2752
    %s2755 = sor.u32 256, 120
    %2756 = vbcast.lane.b32.xlu0 %v2694, %s2755
    %v2757 = vpop.permute.xlu0 %2756
    %v2758 = vlaneseq
    %v2759 = vshrl.u32 %v2758, 7
    %v2760 = vsub.s32 6, %v2759
    %v2761 = vrot.slane %v24, %v2760
    %2763 = vbcast.lane.b32.xlu0 %v2761, 256
    %v2764 = vpop.permute.xlu0 %2763
    %s2766 = sor.u32 256, 8
    %2767 = vbcast.lane.b32.xlu0 %v2761, %s2766
    %v2768 = vpop.permute.xlu0 %2767
    %s2770 = sor.u32 256, 16
    %2771 = vbcast.lane.b32.xlu0 %v2761, %s2770
    %v2772 = vpop.permute.xlu0 %2771
    %s2774 = sor.u32 256, 24
    %2775 = vbcast.lane.b32.xlu0 %v2761, %s2774
    %v2776 = vpop.permute.xlu0 %2775
    %s2778 = sor.u32 256, 32
    %2779 = vbcast.lane.b32.xlu0 %v2761, %s2778
    %v2780 = vpop.permute.xlu0 %2779
    %s2782 = sor.u32 256, 40
    %2783 = vbcast.lane.b32.xlu0 %v2761, %s2782
    %v2784 = vpop.permute.xlu0 %2783
    %s2786 = sor.u32 256, 48
    %2787 = vbcast.lane.b32.xlu0 %v2761, %s2786
    %v2788 = vpop.permute.xlu0 %2787
    %s2790 = sor.u32 256, 56
    %2791 = vbcast.lane.b32.xlu0 %v2761, %s2790
    %v2792 = vpop.permute.xlu0 %2791
    %s2794 = sor.u32 256, 64
    %2795 = vbcast.lane.b32.xlu0 %v2761, %s2794
    %v2796 = vpop.permute.xlu0 %2795
    %s2798 = sor.u32 256, 72
    %2799 = vbcast.lane.b32.xlu0 %v2761, %s2798
    %v2800 = vpop.permute.xlu0 %2799
    %s2802 = sor.u32 256, 80
    %2803 = vbcast.lane.b32.xlu0 %v2761, %s2802
    %v2804 = vpop.permute.xlu0 %2803
    %s2806 = sor.u32 256, 88
    %2807 = vbcast.lane.b32.xlu0 %v2761, %s2806
    %v2808 = vpop.permute.xlu0 %2807
    %s2810 = sor.u32 256, 96
    %2811 = vbcast.lane.b32.xlu0 %v2761, %s2810
    %v2812 = vpop.permute.xlu0 %2811
    %s2814 = sor.u32 256, 104
    %2815 = vbcast.lane.b32.xlu0 %v2761, %s2814
    %v2816 = vpop.permute.xlu0 %2815
    %s2818 = sor.u32 256, 112
    %2819 = vbcast.lane.b32.xlu0 %v2761, %s2818
    %v2820 = vpop.permute.xlu0 %2819
    %s2822 = sor.u32 256, 120
    %2823 = vbcast.lane.b32.xlu0 %v2761, %s2822
    %v2824 = vpop.permute.xlu0 %2823
    %v2825 = vlaneseq
    %v2826 = vshrl.u32 %v2825, 7
    %v2827 = vsub.s32 7, %v2826
    %v2828 = vrot.slane %v24, %v2827
    %2830 = vbcast.lane.b32.xlu0 %v2828, 256
    %v2831 = vpop.permute.xlu0 %2830
    %s2833 = sor.u32 256, 8
    %2834 = vbcast.lane.b32.xlu0 %v2828, %s2833
    %v2835 = vpop.permute.xlu0 %2834
    %s2837 = sor.u32 256, 16
    %2838 = vbcast.lane.b32.xlu0 %v2828, %s2837
    %v2839 = vpop.permute.xlu0 %2838
    %s2841 = sor.u32 256, 24
    %2842 = vbcast.lane.b32.xlu0 %v2828, %s2841
    %v2843 = vpop.permute.xlu0 %2842
    %s2845 = sor.u32 256, 32
    %2846 = vbcast.lane.b32.xlu0 %v2828, %s2845
    %v2847 = vpop.permute.xlu0 %2846
    %s2849 = sor.u32 256, 40
    %2850 = vbcast.lane.b32.xlu0 %v2828, %s2849
    %v2851 = vpop.permute.xlu0 %2850
    %s2853 = sor.u32 256, 48
    %2854 = vbcast.lane.b32.xlu0 %v2828, %s2853
    %v2855 = vpop.permute.xlu0 %2854
    %s2857 = sor.u32 256, 56
    %2858 = vbcast.lane.b32.xlu0 %v2828, %s2857
    %v2859 = vpop.permute.xlu0 %2858
    %s2861 = sor.u32 256, 64
    %2862 = vbcast.lane.b32.xlu0 %v2828, %s2861
    %v2863 = vpop.permute.xlu0 %2862
    %s2865 = sor.u32 256, 72
    %2866 = vbcast.lane.b32.xlu0 %v2828, %s2865
    %v2867 = vpop.permute.xlu0 %2866
    %s2869 = sor.u32 256, 80
    %2870 = vbcast.lane.b32.xlu0 %v2828, %s2869
    %v2871 = vpop.permute.xlu0 %2870
    %s2873 = sor.u32 256, 88
    %2874 = vbcast.lane.b32.xlu0 %v2828, %s2873
    %v2875 = vpop.permute.xlu0 %2874
    %s2877 = sor.u32 256, 96
    %2878 = vbcast.lane.b32.xlu0 %v2828, %s2877
    %v2879 = vpop.permute.xlu0 %2878
    %s2881 = sor.u32 256, 104
    %2882 = vbcast.lane.b32.xlu0 %v2828, %s2881
    %v2883 = vpop.permute.xlu0 %2882
    %s2885 = sor.u32 256, 112
    %2886 = vbcast.lane.b32.xlu0 %v2828, %s2885
    %v2887 = vpop.permute.xlu0 %2886
    %s2889 = sor.u32 256, 120
    %2890 = vbcast.lane.b32.xlu0 %v2828, %s2889
    %v2891 = vpop.permute.xlu0 %2890
    %v3020 = vmul.f32 %v1419, %v2362
    %v3021 = vmul.f32 %v1420, %v2366
    %v3022 = vmul.f32 %v1421, %v2370
    %v3023 = vmul.f32 %v1422, %v2374
    %v3024 = vmul.f32 %v1423, %v2378
    %v3025 = vmul.f32 %v1424, %v2382
    %v3026 = vmul.f32 %v1425, %v2386
    %v3027 = vmul.f32 %v1426, %v2390
    %v3028 = vmul.f32 %v1427, %v2394
    %v3029 = vmul.f32 %v1428, %v2398
    %v3030 = vmul.f32 %v1429, %v2402
    %v3031 = vmul.f32 %v1430, %v2406
    %v3032 = vmul.f32 %v1431, %v2410
    %v3033 = vmul.f32 %v1432, %v2414
    %v3034 = vmul.f32 %v1433, %v2418
    %v3035 = vmul.f32 %v1434, %v2422
    %v3036 = vmul.f32 %v1435, %v2429
    %v3037 = vmul.f32 %v1436, %v2433
    %v3038 = vmul.f32 %v1437, %v2437
    %v3039 = vmul.f32 %v1438, %v2441
    %v3040 = vmul.f32 %v1439, %v2445
    %v3041 = vmul.f32 %v1440, %v2449
    %v3042 = vmul.f32 %v1441, %v2453
    %v3043 = vmul.f32 %v1442, %v2457
    %v3044 = vmul.f32 %v1443, %v2461
    %v3045 = vmul.f32 %v1444, %v2465
    %v3046 = vmul.f32 %v1445, %v2469
    %v3047 = vmul.f32 %v1446, %v2473
    %v3048 = vmul.f32 %v1447, %v2477
    %v3049 = vmul.f32 %v1448, %v2481
    %v3050 = vmul.f32 %v1449, %v2485
    %v3051 = vmul.f32 %v1450, %v2489
    %v3052 = vmul.f32 %v1451, %v2496
    %v3053 = vmul.f32 %v1452, %v2500
    %v3054 = vmul.f32 %v1453, %v2504
    %v3055 = vmul.f32 %v1454, %v2508
    %v3056 = vmul.f32 %v1455, %v2512
    %v3057 = vmul.f32 %v1456, %v2516
    %v3058 = vmul.f32 %v1457, %v2520
    %v3059 = vmul.f32 %v1458, %v2524
    %v3060 = vmul.f32 %v1459, %v2528
    %v3061 = vmul.f32 %v1460, %v2532
    %v3062 = vmul.f32 %v1461, %v2536
    %v3063 = vmul.f32 %v1462, %v2540
    %v3064 = vmul.f32 %v1463, %v2544
    %v3065 = vmul.f32 %v1464, %v2548
    %v3066 = vmul.f32 %v1465, %v2552
    %v3067 = vmul.f32 %v1466, %v2556
    %v3068 = vmul.f32 %v1467, %v2563
    %v3069 = vmul.f32 %v1468, %v2567
    %v3070 = vmul.f32 %v1469, %v2571
    %v3071 = vmul.f32 %v1470, %v2575
    %v3072 = vmul.f32 %v1471, %v2579
    %v3073 = vmul.f32 %v1472, %v2583
    %v3074 = vmul.f32 %v1473, %v2587
    %v3075 = vmul.f32 %v1474, %v2591
    %v3076 = vmul.f32 %v1475, %v2595
    %v3077 = vmul.f32 %v1476, %v2599
    %v3078 = vmul.f32 %v1477, %v2603
    %v3079 = vmul.f32 %v1478, %v2607
    %v3080 = vmul.f32 %v1479, %v2611
    %v3081 = vmul.f32 %v1480, %v2615
    %v3082 = vmul.f32 %v1481, %v2619
    %v3083 = vmul.f32 %v1482, %v2623
    %v3084 = vmul.f32 %v1483, %v2630
    %v3085 = vmul.f32 %v1484, %v2634
    %v3086 = vmul.f32 %v1485, %v2638
    %v3087 = vmul.f32 %v1486, %v2642
    %v3088 = vmul.f32 %v1487, %v2646
    %v3089 = vmul.f32 %v1488, %v2650
    %v3090 = vmul.f32 %v1489, %v2654
    %v3091 = vmul.f32 %v1490, %v2658
    %v3092 = vmul.f32 %v1491, %v2662
    %v3093 = vmul.f32 %v1492, %v2666
    %v3094 = vmul.f32 %v1493, %v2670
    %v3095 = vmul.f32 %v1494, %v2674
    %v3096 = vmul.f32 %v1495, %v2678
    %v3097 = vmul.f32 %v1496, %v2682
    %v3098 = vmul.f32 %v1497, %v2686
    %v3099 = vmul.f32 %v1498, %v2690
    %v3100 = vmul.f32 %v1499, %v2697
    %v3101 = vmul.f32 %v1500, %v2701
    %v3102 = vmul.f32 %v1501, %v2705
    %v3103 = vmul.f32 %v1502, %v2709
    %v3104 = vmul.f32 %v1503, %v2713
    %v3105 = vmul.f32 %v1504, %v2717
    %v3106 = vmul.f32 %v1505, %v2721
    %v3107 = vmul.f32 %v1506, %v2725
    %v3108 = vmul.f32 %v1507, %v2729
    %v3109 = vmul.f32 %v1508, %v2733
    %v3110 = vmul.f32 %v1509, %v2737
    %v3111 = vmul.f32 %v1510, %v2741
    %v3112 = vmul.f32 %v1511, %v2745
    %v3113 = vmul.f32 %v1512, %v2749
    %v3114 = vmul.f32 %v1513, %v2753
    %v3115 = vmul.f32 %v1514, %v2757
    %v3116 = vmul.f32 %v1515, %v2764
    %v3117 = vmul.f32 %v1516, %v2768
    %v3118 = vmul.f32 %v1517, %v2772
    %v3119 = vmul.f32 %v1518, %v2776
    %v3120 = vmul.f32 %v1519, %v2780
    %v3121 = vmul.f32 %v1520, %v2784
    %v3122 = vmul.f32 %v1521, %v2788
    %v3123 = vmul.f32 %v1522, %v2792
    %v3124 = vmul.f32 %v1523, %v2796
    %v3125 = vmul.f32 %v1524, %v2800
    %v3126 = vmul.f32 %v1525, %v2804
    %v3127 = vmul.f32 %v1526, %v2808
    %v3128 = vmul.f32 %v1527, %v2812
    %v3129 = vmul.f32 %v1528, %v2816
    %v3130 = vmul.f32 %v1529, %v2820
    %v3131 = vmul.f32 %v1530, %v2824
    %v3132 = vmul.f32 %v1531, %v2831
    %v3133 = vmul.f32 %v1532, %v2835
    %v3134 = vmul.f32 %v1533, %v2839
    %v3135 = vmul.f32 %v1534, %v2843
    %v3136 = vmul.f32 %v1535, %v2847
    %v3137 = vmul.f32 %v1536, %v2851
    %v3138 = vmul.f32 %v1537, %v2855
    %v3139 = vmul.f32 %v1538, %v2859
    %v3140 = vmul.f32 %v1539, %v2863
    %v3141 = vmul.f32 %v1540, %v2867
    %v3142 = vmul.f32 %v1541, %v2871
    %v3143 = vmul.f32 %v1542, %v2875
    %v3144 = vmul.f32 %v1543, %v2879
    %v3145 = vmul.f32 %v1544, %v2883
    %v3146 = vmul.f32 %v1545, %v2887
    %v3147 = vmul.f32 %v1546, %v2891
    %3276 = vset.pattern.permute.xlu0 0
    %3277 = vperm.xlu0 %3276, %v3020
    %v3278 = vpop.permute.xlu0 %3277
    %3279 = vset.pattern.permute.xlu0 0
    %3280 = vperm.xlu0 %3279, %v3021
    %v3281 = vpop.permute.xlu0 %3280
    %3282 = vset.pattern.permute.xlu0 0
    %3283 = vperm.xlu0 %3282, %v3022
    %v3284 = vpop.permute.xlu0 %3283
    %3285 = vset.pattern.permute.xlu0 0
    %3286 = vperm.xlu0 %3285, %v3023
    %v3287 = vpop.permute.xlu0 %3286
    %3288 = vset.pattern.permute.xlu0 0
    %3289 = vperm.xlu0 %3288, %v3024
    %v3290 = vpop.permute.xlu0 %3289
    %3291 = vset.pattern.permute.xlu0 0
    %3292 = vperm.xlu0 %3291, %v3025
    %v3293 = vpop.permute.xlu0 %3292
    %3294 = vset.pattern.permute.xlu0 0
    %3295 = vperm.xlu0 %3294, %v3026
    %v3296 = vpop.permute.xlu0 %3295
    %3297 = vset.pattern.permute.xlu0 0
    %3298 = vperm.xlu0 %3297, %v3027
    %v3299 = vpop.permute.xlu0 %3298
    %3300 = vset.pattern.permute.xlu0 0
    %3301 = vperm.xlu0 %3300, %v3028
    %v3302 = vpop.permute.xlu0 %3301
    %3303 = vset.pattern.permute.xlu0 0
    %3304 = vperm.xlu0 %3303, %v3029
    %v3305 = vpop.permute.xlu0 %3304
    %3306 = vset.pattern.permute.xlu0 0
    %3307 = vperm.xlu0 %3306, %v3030
    %v3308 = vpop.permute.xlu0 %3307
    %3309 = vset.pattern.permute.xlu0 0
    %3310 = vperm.xlu0 %3309, %v3031
    %v3311 = vpop.permute.xlu0 %3310
    %3312 = vset.pattern.permute.xlu0 0
    %3313 = vperm.xlu0 %3312, %v3032
    %v3314 = vpop.permute.xlu0 %3313
    %3315 = vset.pattern.permute.xlu0 0
    %3316 = vperm.xlu0 %3315, %v3033
    %v3317 = vpop.permute.xlu0 %3316
    %3318 = vset.pattern.permute.xlu0 0
    %3319 = vperm.xlu0 %3318, %v3034
    %v3320 = vpop.permute.xlu0 %3319
    %3321 = vset.pattern.permute.xlu0 0
    %3322 = vperm.xlu0 %3321, %v3035
    %v3323 = vpop.permute.xlu0 %3322
    %3324 = vset.pattern.permute.xlu0 0
    %3325 = vperm.xlu0 %3324, %v3036
    %v3326 = vpop.permute.xlu0 %3325
    %3327 = vset.pattern.permute.xlu0 0
    %3328 = vperm.xlu0 %3327, %v3037
    %v3329 = vpop.permute.xlu0 %3328
    %3330 = vset.pattern.permute.xlu0 0
    %3331 = vperm.xlu0 %3330, %v3038
    %v3332 = vpop.permute.xlu0 %3331
    %3333 = vset.pattern.permute.xlu0 0
    %3334 = vperm.xlu0 %3333, %v3039
    %v3335 = vpop.permute.xlu0 %3334
    %3336 = vset.pattern.permute.xlu0 0
    %3337 = vperm.xlu0 %3336, %v3040
    %v3338 = vpop.permute.xlu0 %3337
    %3339 = vset.pattern.permute.xlu0 0
    %3340 = vperm.xlu0 %3339, %v3041
    %v3341 = vpop.permute.xlu0 %3340
    %3342 = vset.pattern.permute.xlu0 0
    %3343 = vperm.xlu0 %3342, %v3042
    %v3344 = vpop.permute.xlu0 %3343
    %3345 = vset.pattern.permute.xlu0 0
    %3346 = vperm.xlu0 %3345, %v3043
    %v3347 = vpop.permute.xlu0 %3346
    %3348 = vset.pattern.permute.xlu0 0
    %3349 = vperm.xlu0 %3348, %v3044
    %v3350 = vpop.permute.xlu0 %3349
    %3351 = vset.pattern.permute.xlu0 0
    %3352 = vperm.xlu0 %3351, %v3045
    %v3353 = vpop.permute.xlu0 %3352
    %3354 = vset.pattern.permute.xlu0 0
    %3355 = vperm.xlu0 %3354, %v3046
    %v3356 = vpop.permute.xlu0 %3355
    %3357 = vset.pattern.permute.xlu0 0
    %3358 = vperm.xlu0 %3357, %v3047
    %v3359 = vpop.permute.xlu0 %3358
    %3360 = vset.pattern.permute.xlu0 0
    %3361 = vperm.xlu0 %3360, %v3048
    %v3362 = vpop.permute.xlu0 %3361
    %3363 = vset.pattern.permute.xlu0 0
    %3364 = vperm.xlu0 %3363, %v3049
    %v3365 = vpop.permute.xlu0 %3364
    %3366 = vset.pattern.permute.xlu0 0
    %3367 = vperm.xlu0 %3366, %v3050
    %v3368 = vpop.permute.xlu0 %3367
    %3369 = vset.pattern.permute.xlu0 0
    %3370 = vperm.xlu0 %3369, %v3051
    %v3371 = vpop.permute.xlu0 %3370
    %3372 = vset.pattern.permute.xlu0 0
    %3373 = vperm.xlu0 %3372, %v3052
    %v3374 = vpop.permute.xlu0 %3373
    %3375 = vset.pattern.permute.xlu0 0
    %3376 = vperm.xlu0 %3375, %v3053
    %v3377 = vpop.permute.xlu0 %3376
    %3378 = vset.pattern.permute.xlu0 0
    %3379 = vperm.xlu0 %3378, %v3054
    %v3380 = vpop.permute.xlu0 %3379
    %3381 = vset.pattern.permute.xlu0 0
    %3382 = vperm.xlu0 %3381, %v3055
    %v3383 = vpop.permute.xlu0 %3382
    %3384 = vset.pattern.permute.xlu0 0
    %3385 = vperm.xlu0 %3384, %v3056
    %v3386 = vpop.permute.xlu0 %3385
    %3387 = vset.pattern.permute.xlu0 0
    %3388 = vperm.xlu0 %3387, %v3057
    %v3389 = vpop.permute.xlu0 %3388
    %3390 = vset.pattern.permute.xlu0 0
    %3391 = vperm.xlu0 %3390, %v3058
    %v3392 = vpop.permute.xlu0 %3391
    %3393 = vset.pattern.permute.xlu0 0
    %3394 = vperm.xlu0 %3393, %v3059
    %v3395 = vpop.permute.xlu0 %3394
    %3396 = vset.pattern.permute.xlu0 0
    %3397 = vperm.xlu0 %3396, %v3060
    %v3398 = vpop.permute.xlu0 %3397
    %3399 = vset.pattern.permute.xlu0 0
    %3400 = vperm.xlu0 %3399, %v3061
    %v3401 = vpop.permute.xlu0 %3400
    %3402 = vset.pattern.permute.xlu0 0
    %3403 = vperm.xlu0 %3402, %v3062
    %v3404 = vpop.permute.xlu0 %3403
    %3405 = vset.pattern.permute.xlu0 0
    %3406 = vperm.xlu0 %3405, %v3063
    %v3407 = vpop.permute.xlu0 %3406
    %3408 = vset.pattern.permute.xlu0 0
    %3409 = vperm.xlu0 %3408, %v3064
    %v3410 = vpop.permute.xlu0 %3409
    %3411 = vset.pattern.permute.xlu0 0
    %3412 = vperm.xlu0 %3411, %v3065
    %v3413 = vpop.permute.xlu0 %3412
    %3414 = vset.pattern.permute.xlu0 0
    %3415 = vperm.xlu0 %3414, %v3066
    %v3416 = vpop.permute.xlu0 %3415
    %3417 = vset.pattern.permute.xlu0 0
    %3418 = vperm.xlu0 %3417, %v3067
    %v3419 = vpop.permute.xlu0 %3418
    %3420 = vset.pattern.permute.xlu0 0
    %3421 = vperm.xlu0 %3420, %v3068
    %v3422 = vpop.permute.xlu0 %3421
    %3423 = vset.pattern.permute.xlu0 0
    %3424 = vperm.xlu0 %3423, %v3069
    %v3425 = vpop.permute.xlu0 %3424
    %3426 = vset.pattern.permute.xlu0 0
    %3427 = vperm.xlu0 %3426, %v3070
    %v3428 = vpop.permute.xlu0 %3427
    %3429 = vset.pattern.permute.xlu0 0
    %3430 = vperm.xlu0 %3429, %v3071
    %v3431 = vpop.permute.xlu0 %3430
    %3432 = vset.pattern.permute.xlu0 0
    %3433 = vperm.xlu0 %3432, %v3072
    %v3434 = vpop.permute.xlu0 %3433
    %3435 = vset.pattern.permute.xlu0 0
    %3436 = vperm.xlu0 %3435, %v3073
    %v3437 = vpop.permute.xlu0 %3436
    %3438 = vset.pattern.permute.xlu0 0
    %3439 = vperm.xlu0 %3438, %v3074
    %v3440 = vpop.permute.xlu0 %3439
    %3441 = vset.pattern.permute.xlu0 0
    %3442 = vperm.xlu0 %3441, %v3075
    %v3443 = vpop.permute.xlu0 %3442
    %3444 = vset.pattern.permute.xlu0 0
    %3445 = vperm.xlu0 %3444, %v3076
    %v3446 = vpop.permute.xlu0 %3445
    %3447 = vset.pattern.permute.xlu0 0
    %3448 = vperm.xlu0 %3447, %v3077
    %v3449 = vpop.permute.xlu0 %3448
    %3450 = vset.pattern.permute.xlu0 0
    %3451 = vperm.xlu0 %3450, %v3078
    %v3452 = vpop.permute.xlu0 %3451
    %3453 = vset.pattern.permute.xlu0 0
    %3454 = vperm.xlu0 %3453, %v3079
    %v3455 = vpop.permute.xlu0 %3454
    %3456 = vset.pattern.permute.xlu0 0
    %3457 = vperm.xlu0 %3456, %v3080
    %v3458 = vpop.permute.xlu0 %3457
    %3459 = vset.pattern.permute.xlu0 0
    %3460 = vperm.xlu0 %3459, %v3081
    %v3461 = vpop.permute.xlu0 %3460
    %3462 = vset.pattern.permute.xlu0 0
    %3463 = vperm.xlu0 %3462, %v3082
    %v3464 = vpop.permute.xlu0 %3463
    %3465 = vset.pattern.permute.xlu0 0
    %3466 = vperm.xlu0 %3465, %v3083
    %v3467 = vpop.permute.xlu0 %3466
    %3468 = vset.pattern.permute.xlu0 0
    %3469 = vperm.xlu0 %3468, %v3084
    %v3470 = vpop.permute.xlu0 %3469
    %3471 = vset.pattern.permute.xlu0 0
    %3472 = vperm.xlu0 %3471, %v3085
    %v3473 = vpop.permute.xlu0 %3472
    %3474 = vset.pattern.permute.xlu0 0
    %3475 = vperm.xlu0 %3474, %v3086
    %v3476 = vpop.permute.xlu0 %3475
    %3477 = vset.pattern.permute.xlu0 0
    %3478 = vperm.xlu0 %3477, %v3087
    %v3479 = vpop.permute.xlu0 %3478
    %3480 = vset.pattern.permute.xlu0 0
    %3481 = vperm.xlu0 %3480, %v3088
    %v3482 = vpop.permute.xlu0 %3481
    %3483 = vset.pattern.permute.xlu0 0
    %3484 = vperm.xlu0 %3483, %v3089
    %v3485 = vpop.permute.xlu0 %3484
    %3486 = vset.pattern.permute.xlu0 0
    %3487 = vperm.xlu0 %3486, %v3090
    %v3488 = vpop.permute.xlu0 %3487
    %3489 = vset.pattern.permute.xlu0 0
    %3490 = vperm.xlu0 %3489, %v3091
    %v3491 = vpop.permute.xlu0 %3490
    %3492 = vset.pattern.permute.xlu0 0
    %3493 = vperm.xlu0 %3492, %v3092
    %v3494 = vpop.permute.xlu0 %3493
    %3495 = vset.pattern.permute.xlu0 0
    %3496 = vperm.xlu0 %3495, %v3093
    %v3497 = vpop.permute.xlu0 %3496
    %3498 = vset.pattern.permute.xlu0 0
    %3499 = vperm.xlu0 %3498, %v3094
    %v3500 = vpop.permute.xlu0 %3499
    %3501 = vset.pattern.permute.xlu0 0
    %3502 = vperm.xlu0 %3501, %v3095
    %v3503 = vpop.permute.xlu0 %3502
    %3504 = vset.pattern.permute.xlu0 0
    %3505 = vperm.xlu0 %3504, %v3096
    %v3506 = vpop.permute.xlu0 %3505
    %3507 = vset.pattern.permute.xlu0 0
    %3508 = vperm.xlu0 %3507, %v3097
    %v3509 = vpop.permute.xlu0 %3508
    %3510 = vset.pattern.permute.xlu0 0
    %3511 = vperm.xlu0 %3510, %v3098
    %v3512 = vpop.permute.xlu0 %3511
    %3513 = vset.pattern.permute.xlu0 0
    %3514 = vperm.xlu0 %3513, %v3099
    %v3515 = vpop.permute.xlu0 %3514
    %3516 = vset.pattern.permute.xlu0 0
    %3517 = vperm.xlu0 %3516, %v3100
    %v3518 = vpop.permute.xlu0 %3517
    %3519 = vset.pattern.permute.xlu0 0
    %3520 = vperm.xlu0 %3519, %v3101
    %v3521 = vpop.permute.xlu0 %3520
    %3522 = vset.pattern.permute.xlu0 0
    %3523 = vperm.xlu0 %3522, %v3102
    %v3524 = vpop.permute.xlu0 %3523
    %3525 = vset.pattern.permute.xlu0 0
    %3526 = vperm.xlu0 %3525, %v3103
    %v3527 = vpop.permute.xlu0 %3526
    %3528 = vset.pattern.permute.xlu0 0
    %3529 = vperm.xlu0 %3528, %v3104
    %v3530 = vpop.permute.xlu0 %3529
    %3531 = vset.pattern.permute.xlu0 0
    %3532 = vperm.xlu0 %3531, %v3105
    %v3533 = vpop.permute.xlu0 %3532
    %3534 = vset.pattern.permute.xlu0 0
    %3535 = vperm.xlu0 %3534, %v3106
    %v3536 = vpop.permute.xlu0 %3535
    %3537 = vset.pattern.permute.xlu0 0
    %3538 = vperm.xlu0 %3537, %v3107
    %v3539 = vpop.permute.xlu0 %3538
    %3540 = vset.pattern.permute.xlu0 0
    %3541 = vperm.xlu0 %3540, %v3108
    %v3542 = vpop.permute.xlu0 %3541
    %3543 = vset.pattern.permute.xlu0 0
    %3544 = vperm.xlu0 %3543, %v3109
    %v3545 = vpop.permute.xlu0 %3544
    %3546 = vset.pattern.permute.xlu0 0
    %3547 = vperm.xlu0 %3546, %v3110
    %v3548 = vpop.permute.xlu0 %3547
    %3549 = vset.pattern.permute.xlu0 0
    %3550 = vperm.xlu0 %3549, %v3111
    %v3551 = vpop.permute.xlu0 %3550
    %3552 = vset.pattern.permute.xlu0 0
    %3553 = vperm.xlu0 %3552, %v3112
    %v3554 = vpop.permute.xlu0 %3553
    %3555 = vset.pattern.permute.xlu0 0
    %3556 = vperm.xlu0 %3555, %v3113
    %v3557 = vpop.permute.xlu0 %3556
    %3558 = vset.pattern.permute.xlu0 0
    %3559 = vperm.xlu0 %3558, %v3114
    %v3560 = vpop.permute.xlu0 %3559
    %3561 = vset.pattern.permute.xlu0 0
    %3562 = vperm.xlu0 %3561, %v3115
    %v3563 = vpop.permute.xlu0 %3562
    %3564 = vset.pattern.permute.xlu0 0
    %3565 = vperm.xlu0 %3564, %v3116
    %v3566 = vpop.permute.xlu0 %3565
    %3567 = vset.pattern.permute.xlu0 0
    %3568 = vperm.xlu0 %3567, %v3117
    %v3569 = vpop.permute.xlu0 %3568
    %3570 = vset.pattern.permute.xlu0 0
    %3571 = vperm.xlu0 %3570, %v3118
    %v3572 = vpop.permute.xlu0 %3571
    %3573 = vset.pattern.permute.xlu0 0
    %3574 = vperm.xlu0 %3573, %v3119
    %v3575 = vpop.permute.xlu0 %3574
    %3576 = vset.pattern.permute.xlu0 0
    %3577 = vperm.xlu0 %3576, %v3120
    %v3578 = vpop.permute.xlu0 %3577
    %3579 = vset.pattern.permute.xlu0 0
    %3580 = vperm.xlu0 %3579, %v3121
    %v3581 = vpop.permute.xlu0 %3580
    %3582 = vset.pattern.permute.xlu0 0
    %3583 = vperm.xlu0 %3582, %v3122
    %v3584 = vpop.permute.xlu0 %3583
    %3585 = vset.pattern.permute.xlu0 0
    %3586 = vperm.xlu0 %3585, %v3123
    %v3587 = vpop.permute.xlu0 %3586
    %3588 = vset.pattern.permute.xlu0 0
    %3589 = vperm.xlu0 %3588, %v3124
    %v3590 = vpop.permute.xlu0 %3589
    %3591 = vset.pattern.permute.xlu0 0
    %3592 = vperm.xlu0 %3591, %v3125
    %v3593 = vpop.permute.xlu0 %3592
    %3594 = vset.pattern.permute.xlu0 0
    %3595 = vperm.xlu0 %3594, %v3126
    %v3596 = vpop.permute.xlu0 %3595
    %3597 = vset.pattern.permute.xlu0 0
    %3598 = vperm.xlu0 %3597, %v3127
    %v3599 = vpop.permute.xlu0 %3598
    %3600 = vset.pattern.permute.xlu0 0
    %3601 = vperm.xlu0 %3600, %v3128
    %v3602 = vpop.permute.xlu0 %3601
    %3603 = vset.pattern.permute.xlu0 0
    %3604 = vperm.xlu0 %3603, %v3129
    %v3605 = vpop.permute.xlu0 %3604
    %3606 = vset.pattern.permute.xlu0 0
    %3607 = vperm.xlu0 %3606, %v3130
    %v3608 = vpop.permute.xlu0 %3607
    %3609 = vset.pattern.permute.xlu0 0
    %3610 = vperm.xlu0 %3609, %v3131
    %v3611 = vpop.permute.xlu0 %3610
    %3612 = vset.pattern.permute.xlu0 0
    %3613 = vperm.xlu0 %3612, %v3132
    %v3614 = vpop.permute.xlu0 %3613
    %3615 = vset.pattern.permute.xlu0 0
    %3616 = vperm.xlu0 %3615, %v3133
    %v3617 = vpop.permute.xlu0 %3616
    %3618 = vset.pattern.permute.xlu0 0
    %3619 = vperm.xlu0 %3618, %v3134
    %v3620 = vpop.permute.xlu0 %3619
    %3621 = vset.pattern.permute.xlu0 0
    %3622 = vperm.xlu0 %3621, %v3135
    %v3623 = vpop.permute.xlu0 %3622
    %3624 = vset.pattern.permute.xlu0 0
    %3625 = vperm.xlu0 %3624, %v3136
    %v3626 = vpop.permute.xlu0 %3625
    %3627 = vset.pattern.permute.xlu0 0
    %3628 = vperm.xlu0 %3627, %v3137
    %v3629 = vpop.permute.xlu0 %3628
    %3630 = vset.pattern.permute.xlu0 0
    %3631 = vperm.xlu0 %3630, %v3138
    %v3632 = vpop.permute.xlu0 %3631
    %3633 = vset.pattern.permute.xlu0 0
    %3634 = vperm.xlu0 %3633, %v3139
    %v3635 = vpop.permute.xlu0 %3634
    %3636 = vset.pattern.permute.xlu0 0
    %3637 = vperm.xlu0 %3636, %v3140
    %v3638 = vpop.permute.xlu0 %3637
    %3639 = vset.pattern.permute.xlu0 0
    %3640 = vperm.xlu0 %3639, %v3141
    %v3641 = vpop.permute.xlu0 %3640
    %3642 = vset.pattern.permute.xlu0 0
    %3643 = vperm.xlu0 %3642, %v3142
    %v3644 = vpop.permute.xlu0 %3643
    %3645 = vset.pattern.permute.xlu0 0
    %3646 = vperm.xlu0 %3645, %v3143
    %v3647 = vpop.permute.xlu0 %3646
    %3648 = vset.pattern.permute.xlu0 0
    %3649 = vperm.xlu0 %3648, %v3144
    %v3650 = vpop.permute.xlu0 %3649
    %3651 = vset.pattern.permute.xlu0 0
    %3652 = vperm.xlu0 %3651, %v3145
    %v3653 = vpop.permute.xlu0 %3652
    %3654 = vset.pattern.permute.xlu0 0
    %3655 = vperm.xlu0 %3654, %v3146
    %v3656 = vpop.permute.xlu0 %3655
    %3657 = vset.pattern.permute.xlu0 0
    %3658 = vperm.xlu0 %3657, %v3147
    %v3659 = vpop.permute.xlu0 %3658
    %v3660 = vlaneseq
    %v3661 = vshrl.u32 %v3660, 7
    %v3662 = vsub.s32 %v1676, %v3661
    %v3663 = vrot.slane %v3278, %v3662
    %v3664 = vlaneseq
    %v3665 = vshrl.u32 %v3664, 7
    %v3666 = vsub.s32 %v1681, %v3665
    %v3667 = vrot.slane %v3281, %v3666
    %v3668 = vsel %vm1686, %v3667, %v3663
    %v3669 = vlaneseq
    %v3670 = vshrl.u32 %v3669, 7
    %v3671 = vsub.s32 %v1688, %v3670
    %v3672 = vrot.slane %v3284, %v3671
    %v3673 = vsel %vm1693, %v3672, %v3668
    %v3674 = vlaneseq
    %v3675 = vshrl.u32 %v3674, 7
    %v3676 = vsub.s32 %v1695, %v3675
    %v3677 = vrot.slane %v3287, %v3676
    %v3678 = vsel %vm1700, %v3677, %v3673
    %v3679 = vlaneseq
    %v3680 = vshrl.u32 %v3679, 7
    %v3681 = vsub.s32 %v1702, %v3680
    %v3682 = vrot.slane %v3290, %v3681
    %v3683 = vsel %vm1707, %v3682, %v3678
    %v3684 = vlaneseq
    %v3685 = vshrl.u32 %v3684, 7
    %v3686 = vsub.s32 %v1709, %v3685
    %v3687 = vrot.slane %v3293, %v3686
    %v3688 = vsel %vm1714, %v3687, %v3683
    %v3689 = vlaneseq
    %v3690 = vshrl.u32 %v3689, 7
    %v3691 = vsub.s32 %v1716, %v3690
    %v3692 = vrot.slane %v3296, %v3691
    %v3693 = vsel %vm1721, %v3692, %v3688
    %v3694 = vlaneseq
    %v3695 = vshrl.u32 %v3694, 7
    %v3696 = vsub.s32 %v1723, %v3695
    %v3697 = vrot.slane %v3299, %v3696
    %v3698 = vsel %vm1728, %v3697, %v3693
    %v3699 = vlaneseq
    %v3700 = vshrl.u32 %v3699, 7
    %v3701 = vsub.s32 %v1730, %v3700
    %v3702 = vrot.slane %v3302, %v3701
    %v3703 = vsel %vm1735, %v3702, %v3698
    %v3704 = vlaneseq
    %v3705 = vshrl.u32 %v3704, 7
    %v3706 = vsub.s32 %v1737, %v3705
    %v3707 = vrot.slane %v3305, %v3706
    %v3708 = vsel %vm1742, %v3707, %v3703
    %v3709 = vlaneseq
    %v3710 = vshrl.u32 %v3709, 7
    %v3711 = vsub.s32 %v1744, %v3710
    %v3712 = vrot.slane %v3308, %v3711
    %v3713 = vsel %vm1749, %v3712, %v3708
    %v3714 = vlaneseq
    %v3715 = vshrl.u32 %v3714, 7
    %v3716 = vsub.s32 %v1751, %v3715
    %v3717 = vrot.slane %v3311, %v3716
    %v3718 = vsel %vm1756, %v3717, %v3713
    %v3719 = vlaneseq
    %v3720 = vshrl.u32 %v3719, 7
    %v3721 = vsub.s32 %v1758, %v3720
    %v3722 = vrot.slane %v3314, %v3721
    %v3723 = vsel %vm1763, %v3722, %v3718
    %v3724 = vlaneseq
    %v3725 = vshrl.u32 %v3724, 7
    %v3726 = vsub.s32 %v1765, %v3725
    %v3727 = vrot.slane %v3317, %v3726
    %v3728 = vsel %vm1770, %v3727, %v3723
    %v3729 = vlaneseq
    %v3730 = vshrl.u32 %v3729, 7
    %v3731 = vsub.s32 %v1772, %v3730
    %v3732 = vrot.slane %v3320, %v3731
    %v3733 = vsel %vm1777, %v3732, %v3728
    %v3734 = vlaneseq
    %v3735 = vshrl.u32 %v3734, 7
    %v3736 = vsub.s32 %v1779, %v3735
    %v3737 = vrot.slane %v3323, %v3736
    %v3738 = vsel %vm1784, %v3737, %v3733
    %v3739 = vlaneseq
    %v3740 = vshrl.u32 %v3739, 7
    %v3741 = vsub.s32 %v1676, %v3740
    %v3742 = vrot.slane %v3326, %v3741
    %v3743 = vlaneseq
    %v3744 = vshrl.u32 %v3743, 7
    %v3745 = vsub.s32 %v1681, %v3744
    %v3746 = vrot.slane %v3329, %v3745
    %v3747 = vsel %vm1686, %v3746, %v3742
    %v3748 = vlaneseq
    %v3749 = vshrl.u32 %v3748, 7
    %v3750 = vsub.s32 %v1688, %v3749
    %v3751 = vrot.slane %v3332, %v3750
    %v3752 = vsel %vm1693, %v3751, %v3747
    %v3753 = vlaneseq
    %v3754 = vshrl.u32 %v3753, 7
    %v3755 = vsub.s32 %v1695, %v3754
    %v3756 = vrot.slane %v3335, %v3755
    %v3757 = vsel %vm1700, %v3756, %v3752
    %v3758 = vlaneseq
    %v3759 = vshrl.u32 %v3758, 7
    %v3760 = vsub.s32 %v1702, %v3759
    %v3761 = vrot.slane %v3338, %v3760
    %v3762 = vsel %vm1707, %v3761, %v3757
    %v3763 = vlaneseq
    %v3764 = vshrl.u32 %v3763, 7
    %v3765 = vsub.s32 %v1709, %v3764
    %v3766 = vrot.slane %v3341, %v3765
    %v3767 = vsel %vm1714, %v3766, %v3762
    %v3768 = vlaneseq
    %v3769 = vshrl.u32 %v3768, 7
    %v3770 = vsub.s32 %v1716, %v3769
    %v3771 = vrot.slane %v3344, %v3770
    %v3772 = vsel %vm1721, %v3771, %v3767
    %v3773 = vlaneseq
    %v3774 = vshrl.u32 %v3773, 7
    %v3775 = vsub.s32 %v1723, %v3774
    %v3776 = vrot.slane %v3347, %v3775
    %v3777 = vsel %vm1728, %v3776, %v3772
    %v3778 = vlaneseq
    %v3779 = vshrl.u32 %v3778, 7
    %v3780 = vsub.s32 %v1730, %v3779
    %v3781 = vrot.slane %v3350, %v3780
    %v3782 = vsel %vm1735, %v3781, %v3777
    %v3783 = vlaneseq
    %v3784 = vshrl.u32 %v3783, 7
    %v3785 = vsub.s32 %v1737, %v3784
    %v3786 = vrot.slane %v3353, %v3785
    %v3787 = vsel %vm1742, %v3786, %v3782
    %v3788 = vlaneseq
    %v3789 = vshrl.u32 %v3788, 7
    %v3790 = vsub.s32 %v1744, %v3789
    %v3791 = vrot.slane %v3356, %v3790
    %v3792 = vsel %vm1749, %v3791, %v3787
    %v3793 = vlaneseq
    %v3794 = vshrl.u32 %v3793, 7
    %v3795 = vsub.s32 %v1751, %v3794
    %v3796 = vrot.slane %v3359, %v3795
    %v3797 = vsel %vm1756, %v3796, %v3792
    %v3798 = vlaneseq
    %v3799 = vshrl.u32 %v3798, 7
    %v3800 = vsub.s32 %v1758, %v3799
    %v3801 = vrot.slane %v3362, %v3800
    %v3802 = vsel %vm1763, %v3801, %v3797
    %v3803 = vlaneseq
    %v3804 = vshrl.u32 %v3803, 7
    %v3805 = vsub.s32 %v1765, %v3804
    %v3806 = vrot.slane %v3365, %v3805
    %v3807 = vsel %vm1770, %v3806, %v3802
    %v3808 = vlaneseq
    %v3809 = vshrl.u32 %v3808, 7
    %v3810 = vsub.s32 %v1772, %v3809
    %v3811 = vrot.slane %v3368, %v3810
    %v3812 = vsel %vm1777, %v3811, %v3807
    %v3813 = vlaneseq
    %v3814 = vshrl.u32 %v3813, 7
    %v3815 = vsub.s32 %v1779, %v3814
    %v3816 = vrot.slane %v3371, %v3815
    %v3817 = vsel %vm1784, %v3816, %v3812
    %v3818 = vlaneseq
    %v3819 = vshrl.u32 %v3818, 7
    %v3820 = vsub.s32 %v1676, %v3819
    %v3821 = vrot.slane %v3374, %v3820
    %v3822 = vlaneseq
    %v3823 = vshrl.u32 %v3822, 7
    %v3824 = vsub.s32 %v1681, %v3823
    %v3825 = vrot.slane %v3377, %v3824
    %v3826 = vsel %vm1686, %v3825, %v3821
    %v3827 = vlaneseq
    %v3828 = vshrl.u32 %v3827, 7
    %v3829 = vsub.s32 %v1688, %v3828
    %v3830 = vrot.slane %v3380, %v3829
    %v3831 = vsel %vm1693, %v3830, %v3826
    %v3832 = vlaneseq
    %v3833 = vshrl.u32 %v3832, 7
    %v3834 = vsub.s32 %v1695, %v3833
    %v3835 = vrot.slane %v3383, %v3834
    %v3836 = vsel %vm1700, %v3835, %v3831
    %v3837 = vlaneseq
    %v3838 = vshrl.u32 %v3837, 7
    %v3839 = vsub.s32 %v1702, %v3838
    %v3840 = vrot.slane %v3386, %v3839
    %v3841 = vsel %vm1707, %v3840, %v3836
    %v3842 = vlaneseq
    %v3843 = vshrl.u32 %v3842, 7
    %v3844 = vsub.s32 %v1709, %v3843
    %v3845 = vrot.slane %v3389, %v3844
    %v3846 = vsel %vm1714, %v3845, %v3841
    %v3847 = vlaneseq
    %v3848 = vshrl.u32 %v3847, 7
    %v3849 = vsub.s32 %v1716, %v3848
    %v3850 = vrot.slane %v3392, %v3849
    %v3851 = vsel %vm1721, %v3850, %v3846
    %v3852 = vlaneseq
    %v3853 = vshrl.u32 %v3852, 7
    %v3854 = vsub.s32 %v1723, %v3853
    %v3855 = vrot.slane %v3395, %v3854
    %v3856 = vsel %vm1728, %v3855, %v3851
    %v3857 = vlaneseq
    %v3858 = vshrl.u32 %v3857, 7
    %v3859 = vsub.s32 %v1730, %v3858
    %v3860 = vrot.slane %v3398, %v3859
    %v3861 = vsel %vm1735, %v3860, %v3856
    %v3862 = vlaneseq
    %v3863 = vshrl.u32 %v3862, 7
    %v3864 = vsub.s32 %v1737, %v3863
    %v3865 = vrot.slane %v3401, %v3864
    %v3866 = vsel %vm1742, %v3865, %v3861
    %v3867 = vlaneseq
    %v3868 = vshrl.u32 %v3867, 7
    %v3869 = vsub.s32 %v1744, %v3868
    %v3870 = vrot.slane %v3404, %v3869
    %v3871 = vsel %vm1749, %v3870, %v3866
    %v3872 = vlaneseq
    %v3873 = vshrl.u32 %v3872, 7
    %v3874 = vsub.s32 %v1751, %v3873
    %v3875 = vrot.slane %v3407, %v3874
    %v3876 = vsel %vm1756, %v3875, %v3871
    %v3877 = vlaneseq
    %v3878 = vshrl.u32 %v3877, 7
    %v3879 = vsub.s32 %v1758, %v3878
    %v3880 = vrot.slane %v3410, %v3879
    %v3881 = vsel %vm1763, %v3880, %v3876
    %v3882 = vlaneseq
    %v3883 = vshrl.u32 %v3882, 7
    %v3884 = vsub.s32 %v1765, %v3883
    %v3885 = vrot.slane %v3413, %v3884
    %v3886 = vsel %vm1770, %v3885, %v3881
    %v3887 = vlaneseq
    %v3888 = vshrl.u32 %v3887, 7
    %v3889 = vsub.s32 %v1772, %v3888
    %v3890 = vrot.slane %v3416, %v3889
    %v3891 = vsel %vm1777, %v3890, %v3886
    %v3892 = vlaneseq
    %v3893 = vshrl.u32 %v3892, 7
    %v3894 = vsub.s32 %v1779, %v3893
    %v3895 = vrot.slane %v3419, %v3894
    %v3896 = vsel %vm1784, %v3895, %v3891
    %v3897 = vlaneseq
    %v3898 = vshrl.u32 %v3897, 7
    %v3899 = vsub.s32 %v1676, %v3898
    %v3900 = vrot.slane %v3422, %v3899
    %v3901 = vlaneseq
    %v3902 = vshrl.u32 %v3901, 7
    %v3903 = vsub.s32 %v1681, %v3902
    %v3904 = vrot.slane %v3425, %v3903
    %v3905 = vsel %vm1686, %v3904, %v3900
    %v3906 = vlaneseq
    %v3907 = vshrl.u32 %v3906, 7
    %v3908 = vsub.s32 %v1688, %v3907
    %v3909 = vrot.slane %v3428, %v3908
    %v3910 = vsel %vm1693, %v3909, %v3905
    %v3911 = vlaneseq
    %v3912 = vshrl.u32 %v3911, 7
    %v3913 = vsub.s32 %v1695, %v3912
    %v3914 = vrot.slane %v3431, %v3913
    %v3915 = vsel %vm1700, %v3914, %v3910
    %v3916 = vlaneseq
    %v3917 = vshrl.u32 %v3916, 7
    %v3918 = vsub.s32 %v1702, %v3917
    %v3919 = vrot.slane %v3434, %v3918
    %v3920 = vsel %vm1707, %v3919, %v3915
    %v3921 = vlaneseq
    %v3922 = vshrl.u32 %v3921, 7
    %v3923 = vsub.s32 %v1709, %v3922
    %v3924 = vrot.slane %v3437, %v3923
    %v3925 = vsel %vm1714, %v3924, %v3920
    %v3926 = vlaneseq
    %v3927 = vshrl.u32 %v3926, 7
    %v3928 = vsub.s32 %v1716, %v3927
    %v3929 = vrot.slane %v3440, %v3928
    %v3930 = vsel %vm1721, %v3929, %v3925
    %v3931 = vlaneseq
    %v3932 = vshrl.u32 %v3931, 7
    %v3933 = vsub.s32 %v1723, %v3932
    %v3934 = vrot.slane %v3443, %v3933
    %v3935 = vsel %vm1728, %v3934, %v3930
    %v3936 = vlaneseq
    %v3937 = vshrl.u32 %v3936, 7
    %v3938 = vsub.s32 %v1730, %v3937
    %v3939 = vrot.slane %v3446, %v3938
    %v3940 = vsel %vm1735, %v3939, %v3935
    %v3941 = vlaneseq
    %v3942 = vshrl.u32 %v3941, 7
    %v3943 = vsub.s32 %v1737, %v3942
    %v3944 = vrot.slane %v3449, %v3943
    %v3945 = vsel %vm1742, %v3944, %v3940
    %v3946 = vlaneseq
    %v3947 = vshrl.u32 %v3946, 7
    %v3948 = vsub.s32 %v1744, %v3947
    %v3949 = vrot.slane %v3452, %v3948
    %v3950 = vsel %vm1749, %v3949, %v3945
    %v3951 = vlaneseq
    %v3952 = vshrl.u32 %v3951, 7
    %v3953 = vsub.s32 %v1751, %v3952
    %v3954 = vrot.slane %v3455, %v3953
    %v3955 = vsel %vm1756, %v3954, %v3950
    %v3956 = vlaneseq
    %v3957 = vshrl.u32 %v3956, 7
    %v3958 = vsub.s32 %v1758, %v3957
    %v3959 = vrot.slane %v3458, %v3958
    %v3960 = vsel %vm1763, %v3959, %v3955
    %v3961 = vlaneseq
    %v3962 = vshrl.u32 %v3961, 7
    %v3963 = vsub.s32 %v1765, %v3962
    %v3964 = vrot.slane %v3461, %v3963
    %v3965 = vsel %vm1770, %v3964, %v3960
    %v3966 = vlaneseq
    %v3967 = vshrl.u32 %v3966, 7
    %v3968 = vsub.s32 %v1772, %v3967
    %v3969 = vrot.slane %v3464, %v3968
    %v3970 = vsel %vm1777, %v3969, %v3965
    %v3971 = vlaneseq
    %v3972 = vshrl.u32 %v3971, 7
    %v3973 = vsub.s32 %v1779, %v3972
    %v3974 = vrot.slane %v3467, %v3973
    %v3975 = vsel %vm1784, %v3974, %v3970
    %v3976 = vlaneseq
    %v3977 = vshrl.u32 %v3976, 7
    %v3978 = vsub.s32 %v1676, %v3977
    %v3979 = vrot.slane %v3470, %v3978
    %v3980 = vlaneseq
    %v3981 = vshrl.u32 %v3980, 7
    %v3982 = vsub.s32 %v1681, %v3981
    %v3983 = vrot.slane %v3473, %v3982
    %v3984 = vsel %vm1686, %v3983, %v3979
    %v3985 = vlaneseq
    %v3986 = vshrl.u32 %v3985, 7
    %v3987 = vsub.s32 %v1688, %v3986
    %v3988 = vrot.slane %v3476, %v3987
    %v3989 = vsel %vm1693, %v3988, %v3984
    %v3990 = vlaneseq
    %v3991 = vshrl.u32 %v3990, 7
    %v3992 = vsub.s32 %v1695, %v3991
    %v3993 = vrot.slane %v3479, %v3992
    %v3994 = vsel %vm1700, %v3993, %v3989
    %v3995 = vlaneseq
    %v3996 = vshrl.u32 %v3995, 7
    %v3997 = vsub.s32 %v1702, %v3996
    %v3998 = vrot.slane %v3482, %v3997
    %v3999 = vsel %vm1707, %v3998, %v3994
    %v4000 = vlaneseq
    %v4001 = vshrl.u32 %v4000, 7
    %v4002 = vsub.s32 %v1709, %v4001
    %v4003 = vrot.slane %v3485, %v4002
    %v4004 = vsel %vm1714, %v4003, %v3999
    %v4005 = vlaneseq
    %v4006 = vshrl.u32 %v4005, 7
    %v4007 = vsub.s32 %v1716, %v4006
    %v4008 = vrot.slane %v3488, %v4007
    %v4009 = vsel %vm1721, %v4008, %v4004
    %v4010 = vlaneseq
    %v4011 = vshrl.u32 %v4010, 7
    %v4012 = vsub.s32 %v1723, %v4011
    %v4013 = vrot.slane %v3491, %v4012
    %v4014 = vsel %vm1728, %v4013, %v4009
    %v4015 = vlaneseq
    %v4016 = vshrl.u32 %v4015, 7
    %v4017 = vsub.s32 %v1730, %v4016
    %v4018 = vrot.slane %v3494, %v4017
    %v4019 = vsel %vm1735, %v4018, %v4014
    %v4020 = vlaneseq
    %v4021 = vshrl.u32 %v4020, 7
    %v4022 = vsub.s32 %v1737, %v4021
    %v4023 = vrot.slane %v3497, %v4022
    %v4024 = vsel %vm1742, %v4023, %v4019
    %v4025 = vlaneseq
    %v4026 = vshrl.u32 %v4025, 7
    %v4027 = vsub.s32 %v1744, %v4026
    %v4028 = vrot.slane %v3500, %v4027
    %v4029 = vsel %vm1749, %v4028, %v4024
    %v4030 = vlaneseq
    %v4031 = vshrl.u32 %v4030, 7
    %v4032 = vsub.s32 %v1751, %v4031
    %v4033 = vrot.slane %v3503, %v4032
    %v4034 = vsel %vm1756, %v4033, %v4029
    %v4035 = vlaneseq
    %v4036 = vshrl.u32 %v4035, 7
    %v4037 = vsub.s32 %v1758, %v4036
    %v4038 = vrot.slane %v3506, %v4037
    %v4039 = vsel %vm1763, %v4038, %v4034
    %v4040 = vlaneseq
    %v4041 = vshrl.u32 %v4040, 7
    %v4042 = vsub.s32 %v1765, %v4041
    %v4043 = vrot.slane %v3509, %v4042
    %v4044 = vsel %vm1770, %v4043, %v4039
    %v4045 = vlaneseq
    %v4046 = vshrl.u32 %v4045, 7
    %v4047 = vsub.s32 %v1772, %v4046
    %v4048 = vrot.slane %v3512, %v4047
    %v4049 = vsel %vm1777, %v4048, %v4044
    %v4050 = vlaneseq
    %v4051 = vshrl.u32 %v4050, 7
    %v4052 = vsub.s32 %v1779, %v4051
    %v4053 = vrot.slane %v3515, %v4052
    %v4054 = vsel %vm1784, %v4053, %v4049
    %v4055 = vlaneseq
    %v4056 = vshrl.u32 %v4055, 7
    %v4057 = vsub.s32 %v1676, %v4056
    %v4058 = vrot.slane %v3518, %v4057
    %v4059 = vlaneseq
    %v4060 = vshrl.u32 %v4059, 7
    %v4061 = vsub.s32 %v1681, %v4060
    %v4062 = vrot.slane %v3521, %v4061
    %v4063 = vsel %vm1686, %v4062, %v4058
    %v4064 = vlaneseq
    %v4065 = vshrl.u32 %v4064, 7
    %v4066 = vsub.s32 %v1688, %v4065
    %v4067 = vrot.slane %v3524, %v4066
    %v4068 = vsel %vm1693, %v4067, %v4063
    %v4069 = vlaneseq
    %v4070 = vshrl.u32 %v4069, 7
    %v4071 = vsub.s32 %v1695, %v4070
    %v4072 = vrot.slane %v3527, %v4071
    %v4073 = vsel %vm1700, %v4072, %v4068
    %v4074 = vlaneseq
    %v4075 = vshrl.u32 %v4074, 7
    %v4076 = vsub.s32 %v1702, %v4075
    %v4077 = vrot.slane %v3530, %v4076
    %v4078 = vsel %vm1707, %v4077, %v4073
    %v4079 = vlaneseq
    %v4080 = vshrl.u32 %v4079, 7
    %v4081 = vsub.s32 %v1709, %v4080
    %v4082 = vrot.slane %v3533, %v4081
    %v4083 = vsel %vm1714, %v4082, %v4078
    %v4084 = vlaneseq
    %v4085 = vshrl.u32 %v4084, 7
    %v4086 = vsub.s32 %v1716, %v4085
    %v4087 = vrot.slane %v3536, %v4086
    %v4088 = vsel %vm1721, %v4087, %v4083
    %v4089 = vlaneseq
    %v4090 = vshrl.u32 %v4089, 7
    %v4091 = vsub.s32 %v1723, %v4090
    %v4092 = vrot.slane %v3539, %v4091
    %v4093 = vsel %vm1728, %v4092, %v4088
    %v4094 = vlaneseq
    %v4095 = vshrl.u32 %v4094, 7
    %v4096 = vsub.s32 %v1730, %v4095
    %v4097 = vrot.slane %v3542, %v4096
    %v4098 = vsel %vm1735, %v4097, %v4093
    %v4099 = vlaneseq
    %v4100 = vshrl.u32 %v4099, 7
    %v4101 = vsub.s32 %v1737, %v4100
    %v4102 = vrot.slane %v3545, %v4101
    %v4103 = vsel %vm1742, %v4102, %v4098
    %v4104 = vlaneseq
    %v4105 = vshrl.u32 %v4104, 7
    %v4106 = vsub.s32 %v1744, %v4105
    %v4107 = vrot.slane %v3548, %v4106
    %v4108 = vsel %vm1749, %v4107, %v4103
    %v4109 = vlaneseq
    %v4110 = vshrl.u32 %v4109, 7
    %v4111 = vsub.s32 %v1751, %v4110
    %v4112 = vrot.slane %v3551, %v4111
    %v4113 = vsel %vm1756, %v4112, %v4108
    %v4114 = vlaneseq
    %v4115 = vshrl.u32 %v4114, 7
    %v4116 = vsub.s32 %v1758, %v4115
    %v4117 = vrot.slane %v3554, %v4116
    %v4118 = vsel %vm1763, %v4117, %v4113
    %v4119 = vlaneseq
    %v4120 = vshrl.u32 %v4119, 7
    %v4121 = vsub.s32 %v1765, %v4120
    %v4122 = vrot.slane %v3557, %v4121
    %v4123 = vsel %vm1770, %v4122, %v4118
    %v4124 = vlaneseq
    %v4125 = vshrl.u32 %v4124, 7
    %v4126 = vsub.s32 %v1772, %v4125
    %v4127 = vrot.slane %v3560, %v4126
    %v4128 = vsel %vm1777, %v4127, %v4123
    %v4129 = vlaneseq
    %v4130 = vshrl.u32 %v4129, 7
    %v4131 = vsub.s32 %v1779, %v4130
    %v4132 = vrot.slane %v3563, %v4131
    %v4133 = vsel %vm1784, %v4132, %v4128
    %v4134 = vlaneseq
    %v4135 = vshrl.u32 %v4134, 7
    %v4136 = vsub.s32 %v1676, %v4135
    %v4137 = vrot.slane %v3566, %v4136
    %v4138 = vlaneseq
    %v4139 = vshrl.u32 %v4138, 7
    %v4140 = vsub.s32 %v1681, %v4139
    %v4141 = vrot.slane %v3569, %v4140
    %v4142 = vsel %vm1686, %v4141, %v4137
    %v4143 = vlaneseq
    %v4144 = vshrl.u32 %v4143, 7
    %v4145 = vsub.s32 %v1688, %v4144
    %v4146 = vrot.slane %v3572, %v4145
    %v4147 = vsel %vm1693, %v4146, %v4142
    %v4148 = vlaneseq
    %v4149 = vshrl.u32 %v4148, 7
    %v4150 = vsub.s32 %v1695, %v4149
    %v4151 = vrot.slane %v3575, %v4150
    %v4152 = vsel %vm1700, %v4151, %v4147
    %v4153 = vlaneseq
    %v4154 = vshrl.u32 %v4153, 7
    %v4155 = vsub.s32 %v1702, %v4154
    %v4156 = vrot.slane %v3578, %v4155
    %v4157 = vsel %vm1707, %v4156, %v4152
    %v4158 = vlaneseq
    %v4159 = vshrl.u32 %v4158, 7
    %v4160 = vsub.s32 %v1709, %v4159
    %v4161 = vrot.slane %v3581, %v4160
    %v4162 = vsel %vm1714, %v4161, %v4157
    %v4163 = vlaneseq
    %v4164 = vshrl.u32 %v4163, 7
    %v4165 = vsub.s32 %v1716, %v4164
    %v4166 = vrot.slane %v3584, %v4165
    %v4167 = vsel %vm1721, %v4166, %v4162
    %v4168 = vlaneseq
    %v4169 = vshrl.u32 %v4168, 7
    %v4170 = vsub.s32 %v1723, %v4169
    %v4171 = vrot.slane %v3587, %v4170
    %v4172 = vsel %vm1728, %v4171, %v4167
    %v4173 = vlaneseq
    %v4174 = vshrl.u32 %v4173, 7
    %v4175 = vsub.s32 %v1730, %v4174
    %v4176 = vrot.slane %v3590, %v4175
    %v4177 = vsel %vm1735, %v4176, %v4172
    %v4178 = vlaneseq
    %v4179 = vshrl.u32 %v4178, 7
    %v4180 = vsub.s32 %v1737, %v4179
    %v4181 = vrot.slane %v3593, %v4180
    %v4182 = vsel %vm1742, %v4181, %v4177
    %v4183 = vlaneseq
    %v4184 = vshrl.u32 %v4183, 7
    %v4185 = vsub.s32 %v1744, %v4184
    %v4186 = vrot.slane %v3596, %v4185
    %v4187 = vsel %vm1749, %v4186, %v4182
    %v4188 = vlaneseq
    %v4189 = vshrl.u32 %v4188, 7
    %v4190 = vsub.s32 %v1751, %v4189
    %v4191 = vrot.slane %v3599, %v4190
    %v4192 = vsel %vm1756, %v4191, %v4187
    %v4193 = vlaneseq
    %v4194 = vshrl.u32 %v4193, 7
    %v4195 = vsub.s32 %v1758, %v4194
    %v4196 = vrot.slane %v3602, %v4195
    %v4197 = vsel %vm1763, %v4196, %v4192
    %v4198 = vlaneseq
    %v4199 = vshrl.u32 %v4198, 7
    %v4200 = vsub.s32 %v1765, %v4199
    %v4201 = vrot.slane %v3605, %v4200
    %v4202 = vsel %vm1770, %v4201, %v4197
    %v4203 = vlaneseq
    %v4204 = vshrl.u32 %v4203, 7
    %v4205 = vsub.s32 %v1772, %v4204
    %v4206 = vrot.slane %v3608, %v4205
    %v4207 = vsel %vm1777, %v4206, %v4202
    %v4208 = vlaneseq
    %v4209 = vshrl.u32 %v4208, 7
    %v4210 = vsub.s32 %v1779, %v4209
    %v4211 = vrot.slane %v3611, %v4210
    %v4212 = vsel %vm1784, %v4211, %v4207
    %v4213 = vlaneseq
    %v4214 = vshrl.u32 %v4213, 7
    %v4215 = vsub.s32 %v1676, %v4214
    %v4216 = vrot.slane %v3614, %v4215
    %v4217 = vlaneseq
    %v4218 = vshrl.u32 %v4217, 7
    %v4219 = vsub.s32 %v1681, %v4218
    %v4220 = vrot.slane %v3617, %v4219
    %v4221 = vsel %vm1686, %v4220, %v4216
    %v4222 = vlaneseq
    %v4223 = vshrl.u32 %v4222, 7
    %v4224 = vsub.s32 %v1688, %v4223
    %v4225 = vrot.slane %v3620, %v4224
    %v4226 = vsel %vm1693, %v4225, %v4221
    %v4227 = vlaneseq
    %v4228 = vshrl.u32 %v4227, 7
    %v4229 = vsub.s32 %v1695, %v4228
    %v4230 = vrot.slane %v3623, %v4229
    %v4231 = vsel %vm1700, %v4230, %v4226
    %v4232 = vlaneseq
    %v4233 = vshrl.u32 %v4232, 7
    %v4234 = vsub.s32 %v1702, %v4233
    %v4235 = vrot.slane %v3626, %v4234
    %v4236 = vsel %vm1707, %v4235, %v4231
    %v4237 = vlaneseq
    %v4238 = vshrl.u32 %v4237, 7
    %v4239 = vsub.s32 %v1709, %v4238
    %v4240 = vrot.slane %v3629, %v4239
    %v4241 = vsel %vm1714, %v4240, %v4236
    %v4242 = vlaneseq
    %v4243 = vshrl.u32 %v4242, 7
    %v4244 = vsub.s32 %v1716, %v4243
    %v4245 = vrot.slane %v3632, %v4244
    %v4246 = vsel %vm1721, %v4245, %v4241
    %v4247 = vlaneseq
    %v4248 = vshrl.u32 %v4247, 7
    %v4249 = vsub.s32 %v1723, %v4248
    %v4250 = vrot.slane %v3635, %v4249
    %v4251 = vsel %vm1728, %v4250, %v4246
    %v4252 = vlaneseq
    %v4253 = vshrl.u32 %v4252, 7
    %v4254 = vsub.s32 %v1730, %v4253
    %v4255 = vrot.slane %v3638, %v4254
    %v4256 = vsel %vm1735, %v4255, %v4251
    %v4257 = vlaneseq
    %v4258 = vshrl.u32 %v4257, 7
    %v4259 = vsub.s32 %v1737, %v4258
    %v4260 = vrot.slane %v3641, %v4259
    %v4261 = vsel %vm1742, %v4260, %v4256
    %v4262 = vlaneseq
    %v4263 = vshrl.u32 %v4262, 7
    %v4264 = vsub.s32 %v1744, %v4263
    %v4265 = vrot.slane %v3644, %v4264
    %v4266 = vsel %vm1749, %v4265, %v4261
    %v4267 = vlaneseq
    %v4268 = vshrl.u32 %v4267, 7
    %v4269 = vsub.s32 %v1751, %v4268
    %v4270 = vrot.slane %v3647, %v4269
    %v4271 = vsel %vm1756, %v4270, %v4266
    %v4272 = vlaneseq
    %v4273 = vshrl.u32 %v4272, 7
    %v4274 = vsub.s32 %v1758, %v4273
    %v4275 = vrot.slane %v3650, %v4274
    %v4276 = vsel %vm1763, %v4275, %v4271
    %v4277 = vlaneseq
    %v4278 = vshrl.u32 %v4277, 7
    %v4279 = vsub.s32 %v1765, %v4278
    %v4280 = vrot.slane %v3653, %v4279
    %v4281 = vsel %vm1770, %v4280, %v4276
    %v4282 = vlaneseq
    %v4283 = vshrl.u32 %v4282, 7
    %v4284 = vsub.s32 %v1772, %v4283
    %v4285 = vrot.slane %v3656, %v4284
    %v4286 = vsel %vm1777, %v4285, %v4281
    %v4287 = vlaneseq
    %v4288 = vshrl.u32 %v4287, 7
    %v4289 = vsub.s32 %v1779, %v4288
    %v4290 = vrot.slane %v3659, %v4289
    %v4291 = vsel %vm1784, %v4290, %v4286
    %v4292 = vsel %vm2339, %v3817, %v3738
    %v4293 = vsel %vm2341, %v3896, %v4292
    %v4294 = vsel %vm2343, %v3975, %v4293
    %v4295 = vsel %vm2345, %v4054, %v4294
    %v4296 = vsel %vm2347, %v4133, %v4295
    %v4297 = vsel %vm2349, %v4212, %v4296
    %v4298 = vsel %vm2351, %v4291, %v4297
    %4300 = vadd.xlane.f32.xlu0 %v4298
    %v4301 = vpop.xlane.xlu0 %4300
    %v4302 = vsub.f32 %v4301, 1.0
    %v4303 = vrcp.pop %v2355
    %v4304 = vmul.f32 %v4302, %v4303
    %v4305 = vsub.f32 %v24, %v4304
    %v4306 = vmax.f32 %v4305, 0.0
    %4307 = vst [vmem:[#allocation5] sm:$0xff] %v4306
    // Predicated region
    $region10: #{sparsemax.1} parent=1 // pred_check
      _
    $region11: #{sparsemax.1} parent=1 // pred_check_branch
      %4309 = sbr.rel (0) target = $region13
    $region12: #{sparsemax.1} parent=1 // pred_region
      %s4311 = ssub.s32 128, 128
      %4312 = vsyncadd [#allocation4], %s4311
      %s4314 = sshll.u32 [#allocation5], 4
      %s4315 = int_to_ptr.vmem [resolvable:$true] %s4314
      %4317 = dma.vmem_to_hbm [thread:$0]  %s4315, 128, %s1, [#allocation4]
    $region13: #{sparsemax.1} parent=1 // pred_fallthru
      _
    // Predicated region
    $region14: #{sparsemax.1} parent=1 // pred_check
      _
    $region15: #{sparsemax.1} parent=1 // pred_check_branch
      %4319 = sbr.rel (0) target = $region17
    $region16: #{sparsemax.1} parent=1 // pred_region
      %4320 = dma.done [#allocation4], 128
    $region17: #{sparsemax.1} parent=1 // pred_fallthru
      _
    %4321 = vsyncpa [#allocation3], 1
    %4322 = vsyncpa [#allocation4], 1

</llo_original>
